<compile_context>
chip_gen: v7x
topology: tpu7x:2x2x1
jax: 0.10.0
libtpu: 0.0.40
codegen_flags: <defaults>
</compile_context>

<pallas_src>
import functools

import jax
import jax.numpy as jnp
from jax.experimental import pallas as pl
from jax.experimental.pallas import tpu as pltpu


def _round_up(n, m):
    return ((n + m - 1) // m) * m


def _vmem_capacity_bytes():
    """Physical per-core VMEM capacity (fallback: conservative v7x 64 MiB)."""
    try:
        info = pltpu.get_tpu_info()
        cap = int(getattr(info, "vmem_capacity_bytes", 0))
        if cap > 0:
            return cap
    except Exception:
        pass
    return 64 << 20


def _default_weight_dtype():
    """int8 MXU operands on v5e/v6e; bf16 on v7x (no integer MXU) / unknown."""
    try:
        kind = jax.devices()[0].device_kind.lower()
    except Exception:
        return jnp.bfloat16
    if "v7" in kind:
        return jnp.bfloat16
    if "v5e" in kind or "v5 lite" in kind or "v5lite" in kind or "v6" in kind:
        return jnp.int8
    return jnp.bfloat16


def weight_quant_ternary(w):
    """WeightQuant.forward, factored into ternary int8 values + f32 scale.

    WeightQuant: s = 1/clamp(mean|w|, 1e-5);  wq = clip(round(w*s), -1, 1) / s.
    Returns (clip(round(w*s), -1, 1) as int8, 1/s as f32) so the kernel applies
    the scale on the matmul accumulator instead of dequantizing the whole
    weight each grid step.
    """
    w = w.astype(jnp.float32)
    s = 1.0 / jnp.maximum(jnp.mean(jnp.abs(w)), 1e-5)
    tern = jnp.clip(jnp.round(w * s), -1.0, 1.0)
    return tern.astype(jnp.int8), (1.0 / s).astype(jnp.float32)


def bitnet_mlp_kernel(x_ref, guw_ref, dw_ref, rw_ref, sc_ref, o_ref, *, eps):
    # x_ref  : (TM, H)   token tile
    # guw_ref: (H, 2I)   fused [gate^T | up^T] ternary weights (int8 or bf16)
    # dw_ref : (I, H)    ternary down_proj weight (pre-transposed)
    # rw_ref : (1, I)    RMSNorm weight (f32)
    # sc_ref : (3,)      f32 weight scales [gate, up, down] in SMEM
    # o_ref  : (TM, H)
    int_path = jnp.issubdtype(guw_ref.dtype, jnp.integer)
    op_dtype = jnp.int8 if int_path else jnp.bfloat16
    acc_dtype = jnp.int32 if int_path else jnp.float32
    I = dw_ref.shape[0]

    x = x_ref[...].astype(jnp.float32)

    # --- ActQuant (shared by gate/up): keep the int8 grid, fold 1/s into the
    # matmul epilogue.  Quantized values (|v| <= 128) are exact in either
    # operand dtype, so accumulation is exact.
    row_max = jnp.maximum(jnp.max(jnp.abs(x), axis=-1, keepdims=True), 1e-5)
    s_x = 127.0 / row_max
    xi = jnp.clip(jnp.round(x * s_x), -128.0, 127.0).astype(op_dtype)
    inv_sx = 1.0 / s_x                                           # (TM, 1)

    # --- fused gate|up BitLinear: ONE MXU matmul, then per-half epilogue
    # scale (activation dequant * weight scale).  I is lane-aligned for real
    # BitNet shapes, so the slices are free.
    gu = jnp.dot(xi, guw_ref[...], preferred_element_type=acc_dtype)
    gu = gu.astype(jnp.float32)
    gate = gu[:, :I] * (inv_sx * sc_ref[0])
    up = gu[:, I:] * (inv_sx * sc_ref[1])

    # --- squared ReLU.
    h = jnp.square(jnp.maximum(gate, 0.0)) * up

    # --- BitNetRMSNorm over the intermediate dim (fp32; cast back to the
    # activation dtype before the elementwise weight, mirroring the module).
    var = jnp.mean(h * h, axis=-1, keepdims=True)
    hn = h * jax.lax.rsqrt(var + eps)
    hn = rw_ref[...] * hn.astype(x_ref.dtype).astype(jnp.float32)

    # --- down_proj BitLinear (same quantization scheme).
    row_max2 = jnp.maximum(jnp.max(jnp.abs(hn), axis=-1, keepdims=True), 1e-5)
    s_h = 127.0 / row_max2
    hi = jnp.clip(jnp.round(hn * s_h), -128.0, 127.0).astype(op_dtype)
    inv_sh = 1.0 / s_h

    out = jnp.dot(hi, dw_ref[...], preferred_element_type=acc_dtype)
    out = out.astype(jnp.float32) * (inv_sh * sc_ref[2])
    o_ref[...] = out.astype(o_ref.dtype)


def bitnet_mlp(x, gate_w, up_w, down_w, rms_w, *, eps=1e-6, tm=256,
               weight_dtype=None, single_buffer_weights=True,
               vmem_limit_bytes=None):
    """x: (B, S, H).  gate_w/up_w: (I, H).  down_w: (H, I).  rms_w: (I,)."""
    B, S, H = x.shape
    I = gate_w.shape[0]
    M = B * S

    if weight_dtype is None:
        weight_dtype = _default_weight_dtype()
    weight_dtype = jnp.dtype(weight_dtype)

    vmem_cap = _vmem_capacity_bytes()
    act_itemsize = jnp.dtype(x.dtype).itemsize
    w_itemsize = weight_dtype.itemsize
    w_buf = 1 if single_buffer_weights else 2

    def footprint(t):
        w_bytes = w_buf * w_itemsize * (2 * H * I + I * H)   # fused gate/up + down
        small = w_buf * 4 * (I + 8)                          # rmsnorm weight row
        act_bytes = 2 * 2 * t * H * act_itemsize             # x/out tiles, dbl-buffered
        tmp_bytes = 3 * 4 * t * (2 * I)                      # gu / h / hn f32 temporaries
        return w_bytes + small + act_bytes + tmp_bytes

    # Token tile: large (amortizes per-step overhead, fills the MXU), aligned
    # to the packed sublane count of the activation dtype, clamped for tiny M.
    row_align = 32 // act_itemsize
    tm = max(row_align, min(_round_up(tm, row_align), _round_up(M, row_align)))
    # v7x megacore: guarantee >= 2 grid steps whenever M allows it.
    if _round_up(M, row_align) >= 2 * row_align:
        tm = min(tm, _round_up((M + 1) // 2, row_align))
    # Shrink tm while the estimated footprint exceeds ~80% of physical VMEM.
    while tm > row_align and footprint(tm) > int(0.8 * vmem_cap):
        tm = max(row_align, _round_up(tm // 2, row_align))
    # TODO(synk): if footprint(row_align) still exceeds VMEM (very large H*I on
    # v7x), stream weights over an inner "arbitrary" I-tile axis instead of
    # keeping them resident (two-pass RMSNorm + accumulated down_proj).

    M_pad = _round_up(M, tm)
    x2 = x.reshape(M, H)
    if M_pad != M:
        x2 = jnp.pad(x2, ((0, M_pad - M), (0, 0)))

    # Offline weight preprocessing: ternary values + f32 scales, pre-transposed
    # so the kernel contracts the last dim of x directly; gate/up fused.
    gw_t, sg = weight_quant_ternary(gate_w)          # values (I, H)
    uw_t, su = weight_quant_ternary(up_w)
    dw_t, sd = weight_quant_ternary(down_w)
    guw = jnp.concatenate([gw_t.T, uw_t.T], axis=1).astype(weight_dtype)  # (H, 2I)
    dwt = dw_t.T.astype(weight_dtype)                                     # (I, H)
    scales = jnp.stack([sg, su, sd]).astype(jnp.float32)                  # (3,) SMEM
    rw2 = rms_w.reshape(1, I).astype(jnp.float32)

    if vmem_limit_bytes is None:
        vmem_limit_bytes = int(1.3 * footprint(tm)) + (4 << 20)
        vmem_limit_bytes = max(vmem_limit_bytes, 32 << 20)
        vmem_limit_bytes = min(vmem_limit_bytes, vmem_cap - (2 << 20))

    # Grid-invariant weight blocks: single-buffer them (double-buffering a
    # constant block only doubles its VMEM footprint, hides nothing).
    wkw = dict(pipeline_mode=pl.Buffered(1)) if single_buffer_weights else {}

    grid = (M_pad // tm,)
    out = pl.pallas_call(
        functools.partial(bitnet_mlp_kernel, eps=eps),
        out_shape=jax.ShapeDtypeStruct((M_pad, H), x.dtype),
        grid_spec=pltpu.PrefetchScalarGridSpec(
            num_scalar_prefetch=0,
            grid=grid,
            in_specs=[
                pl.BlockSpec((tm, H), lambda i: (i, 0)),            # x tile
                pl.BlockSpec((H, 2 * I), lambda i: (0, 0), **wkw),  # [gate|up]^T resident
                pl.BlockSpec((I, H), lambda i: (0, 0), **wkw),      # down^T resident
                pl.BlockSpec((1, I), lambda i: (0, 0), **wkw),      # rmsnorm weight
                pl.BlockSpec(memory_space=pltpu.MemorySpace.SMEM),  # w scales
            ],
            out_specs=pl.BlockSpec((tm, H), lambda i: (i, 0)),
        ),
        compiler_params=pltpu.CompilerParams(
            dimension_semantics=("parallel",),
            vmem_limit_bytes=int(vmem_limit_bytes)),
    )(x2, guw, dwt, rw2, scales)

    return out[:M].reshape(B, S, H)


def bitnet_mlp_ref(x, gate_w, up_w, down_w, rms_w, eps=1e-6):
    """Pure-JAX reference mirroring the PyTorch module op-for-op."""
    hi_p = jax.lax.Precision.HIGHEST

    def weight_quant(w):
        w = w.astype(jnp.float32)
        s = 1.0 / jnp.maximum(jnp.mean(jnp.abs(w)), 1e-5)
        return jnp.clip(jnp.round(w * s), -1.0, 1.0) / s

    def act_quant(v):
        s = 127.0 / jnp.maximum(jnp.max(jnp.abs(v), axis=-1, keepdims=True), 1e-5)
        return jnp.clip(jnp.round(v * s), -128.0, 127.0) / s

    xq = act_quant(x.astype(jnp.float32))
    gate = jnp.dot(xq, weight_quant(gate_w).T, precision=hi_p)
    up = jnp.dot(xq, weight_quant(up_w).T, precision=hi_p)
    h = jnp.square(jnp.maximum(gate, 0.0)) * up
    var = jnp.mean(h * h, axis=-1, keepdims=True)
    hn = rms_w.astype(jnp.float32) * (h * jax.lax.rsqrt(var + eps))
    hq = act_quant(hn)
    return jnp.dot(hq, weight_quant(down_w).T, precision=hi_p).astype(x.dtype)


if __name__ == "__main__":
    B, S, H, I = 2, 8, 256, 512     # batch, seq, hidden_size, intermediate_size
    eps = 1e-6

    key = jax.random.PRNGKey(0)
    kx, kg, ku, kd = jax.random.split(key, 4)
    x = jax.random.normal(kx, (B, S, H), dtype=jnp.float32)
    # Deterministic nn.Linear-like init; RMSNorm weight = ones.
    gate_w = jax.random.normal(kg, (I, H), dtype=jnp.float32) * (1.0 / H) ** 0.5
    up_w = jax.random.normal(ku, (I, H), dtype=jnp.float32) * (1.0 / H) ** 0.5
    down_w = jax.random.normal(kd, (H, I), dtype=jnp.float32) * (1.0 / I) ** 0.5
    rms_w = jnp.ones((I,), dtype=jnp.float32)

    try:
        out = jax.block_until_ready(
            bitnet_mlp(x, gate_w, up_w, down_w, rms_w, eps=eps))
    except Exception:
        # Safety net for unexpected generations: conservative bf16 operands,
        # default (double) buffering.  Same math, runs everywhere.
        out = jax.block_until_ready(
            bitnet_mlp(x, gate_w, up_w, down_w, rms_w, eps=eps,
                       weight_dtype=jnp.bfloat16, single_buffer_weights=False))

    ref = bitnet_mlp_ref(x, gate_w, up_w, down_w, rms_w, eps=eps)

    assert out.shape == (B, S, H)
    # Integer x ternary products accumulate exactly (int32 or f32) and the
    # (de)quantization scales are folded into the matmul epilogue; vs. the
    # op-for-op reference this can flip an occasional round() at a fake-quant
    # boundary (<= 1 int8 step, ~1e-3 on an O(1) output), hence 1e-2 tolerance.
    assert jnp.allclose(out, ref, atol=1e-2, rtol=1e-2), "mismatch vs reference"

    print("KERNEL_OK")
</pallas_src>

<mosaic_0001>
module attributes {stable_mosaic.version = 11 : i64} {
  func.func @bitnet_mlp_kernel(%arg0: i32, %arg1: memref<8x256xf32, #tpu.memory_space<vmem>>, %arg2: memref<256x1024xbf16, #tpu.memory_space<vmem>>, %arg3: memref<512x256xbf16, #tpu.memory_space<vmem>>, %arg4: memref<1x512xf32, #tpu.memory_space<vmem>>, %arg5: memref<3xf32, #tpu.memory_space<smem>>, %arg6: memref<8x256xf32, #tpu.memory_space<vmem>>) attributes {dimension_semantics = [#tpu.dimension_semantics<parallel>], iteration_bounds = array<i64: 2>, scalar_prefetch = 0 : i64, scratch_operands = 0 : i64, tpu.core_type = #tpu.core_type<tc>, window_params = [{transform_indices = @transform_0, window_bounds = array<i64: 8, 256>}, {pipeline_mode = #tpu.pipeline_mode<synchronous>, transform_indices = @transform_1, window_bounds = array<i64: 256, 1024>}, {pipeline_mode = #tpu.pipeline_mode<synchronous>, transform_indices = @transform_2, window_bounds = array<i64: 512, 256>}, {pipeline_mode = #tpu.pipeline_mode<synchronous>, transform_indices = @transform_3, window_bounds = array<i64: 1, 512>}, {transform_indices = @transform_4, window_bounds = array<i64: 3>}, {transform_indices = @transform_5, window_bounds = array<i64: 8, 256>}]} {
    %c0 = arith.constant 0 : index
    %c0_0 = arith.constant 0 : index
    %0 = vector.load %arg1[%c0, %c0_0] : memref<8x256xf32, #tpu.memory_space<vmem>>, vector<8x256xf32>
    %1 = math.absf %0 : vector<8x256xf32>
    %cst = arith.constant dense<0xFF800000> : vector<8xf32>
    %2 = vector.multi_reduction <maximumf>, %1, %cst [1] : vector<8x256xf32> to vector<8xf32>
    %3 = vector.shape_cast %2 : vector<8xf32> to vector<8x1xf32>
    %cst_1 = arith.constant 9.99999974E-6 : f32
    %4 = vector.broadcast %cst_1 : f32 to vector<8x1xf32>
    %5 = arith.maximumf %3, %4 : vector<8x1xf32>
    %cst_2 = arith.constant 1.270000e+02 : f32
    %6 = vector.broadcast %cst_2 : f32 to vector<8x1xf32>
    %7 = arith.divf %6, %5 : vector<8x1xf32>
    %8 = vector.broadcast %7 : vector<8x1xf32> to vector<8x256xf32>
    %9 = arith.mulf %0, %8 : vector<8x256xf32>
    %10 = math.roundeven %9 : vector<8x256xf32>
    %cst_3 = arith.constant -1.280000e+02 : f32
    %cst_4 = arith.constant 1.270000e+02 : f32
    %11 = vector.broadcast %cst_3 : f32 to vector<8x256xf32>
    %12 = arith.maximumf %11, %10 : vector<8x256xf32>
    %13 = vector.broadcast %cst_4 : f32 to vector<8x256xf32>
    %14 = arith.minimumf %13, %12 : vector<8x256xf32>
    %15 = arith.truncf %14 : vector<8x256xf32> to vector<8x256xbf16>
    %cst_5 = arith.constant 1.000000e+00 : f32
    %16 = vector.broadcast %cst_5 : f32 to vector<8x1xf32>
    %17 = arith.divf %16, %7 : vector<8x1xf32>
    %c0_6 = arith.constant 0 : index
    %c0_7 = arith.constant 0 : index
    %18 = vector.load %arg2[%c0_6, %c0_7] : memref<256x1024xbf16, #tpu.memory_space<vmem>>, vector<256x1024xbf16>
    %cst_8 = arith.constant dense<0.000000e+00> : vector<8x1024xf32>
    %19 = tpu.matmul %15, %18, %cst_8 {dimension_numbers = #tpu.dot_dimension_numbers<[1], [0], [0], [1], [0, 0, 1, 1], [], []>} : vector<8x256xbf16>, vector<256x1024xbf16>, vector<8x1024xf32> -> vector<8x1024xf32>
    %20 = vector.extract_strided_slice %19 {offsets = [0, 0], sizes = [8, 512], strides = [1, 1]} : vector<8x1024xf32> to vector<8x512xf32>
    %c0_9 = arith.constant 0 : index
    %21 = memref.load %arg5[%c0_9] : memref<3xf32, #tpu.memory_space<smem>>
    %22 = vector.broadcast %21 : f32 to vector<8x1xf32>
    %23 = arith.mulf %17, %22 : vector<8x1xf32>
    %24 = vector.broadcast %23 : vector<8x1xf32> to vector<8x512xf32>
    %25 = arith.mulf %20, %24 : vector<8x512xf32>
    %26 = vector.extract_strided_slice %19 {offsets = [0, 512], sizes = [8, 512], strides = [1, 1]} : vector<8x1024xf32> to vector<8x512xf32>
    %c1 = arith.constant 1 : index
    %27 = memref.load %arg5[%c1] : memref<3xf32, #tpu.memory_space<smem>>
    %28 = vector.broadcast %27 : f32 to vector<8x1xf32>
    %29 = arith.mulf %17, %28 : vector<8x1xf32>
    %30 = vector.broadcast %29 : vector<8x1xf32> to vector<8x512xf32>
    %31 = arith.mulf %26, %30 : vector<8x512xf32>
    %cst_10 = arith.constant 0.000000e+00 : f32
    %32 = vector.broadcast %cst_10 : f32 to vector<8x512xf32>
    %33 = arith.maximumf %25, %32 : vector<8x512xf32>
    %34 = arith.mulf %33, %33 : vector<8x512xf32>
    %35 = arith.mulf %34, %31 : vector<8x512xf32>
    %36 = arith.mulf %35, %35 : vector<8x512xf32>
    %cst_11 = arith.constant dense<0.000000e+00> : vector<8xf32>
    %37 = vector.multi_reduction <add>, %36, %cst_11 [1] : vector<8x512xf32> to vector<8xf32>
    %38 = vector.shape_cast %37 : vector<8xf32> to vector<8x1xf32>
    %cst_12 = arith.constant 5.120000e+02 : f32
    %39 = vector.broadcast %cst_12 : f32 to vector<8x1xf32>
    %40 = arith.divf %38, %39 : vector<8x1xf32>
    %cst_13 = arith.constant 9.99999997E-7 : f32
    %41 = vector.broadcast %cst_13 : f32 to vector<8x1xf32>
    %42 = arith.addf %40, %41 : vector<8x1xf32>
    %43 = math.rsqrt %42 : vector<8x1xf32>
    %44 = vector.broadcast %43 : vector<8x1xf32> to vector<8x512xf32>
    %45 = arith.mulf %35, %44 : vector<8x512xf32>
    %c0_14 = arith.constant 0 : index
    %c0_15 = arith.constant 0 : index
    %46 = vector.load %arg4[%c0_14, %c0_15] : memref<1x512xf32, #tpu.memory_space<vmem>>, vector<1x512xf32>
    %47 = vector.broadcast %46 : vector<1x512xf32> to vector<8x512xf32>
    %48 = arith.mulf %47, %45 : vector<8x512xf32>
    %49 = math.absf %48 : vector<8x512xf32>
    %cst_16 = arith.constant dense<0xFF800000> : vector<8xf32>
    %50 = vector.multi_reduction <maximumf>, %49, %cst_16 [1] : vector<8x512xf32> to vector<8xf32>
    %51 = vector.shape_cast %50 : vector<8xf32> to vector<8x1xf32>
    %cst_17 = arith.constant 9.99999974E-6 : f32
    %52 = vector.broadcast %cst_17 : f32 to vector<8x1xf32>
    %53 = arith.maximumf %51, %52 : vector<8x1xf32>
    %cst_18 = arith.constant 1.270000e+02 : f32
    %54 = vector.broadcast %cst_18 : f32 to vector<8x1xf32>
    %55 = arith.divf %54, %53 : vector<8x1xf32>
    %56 = vector.broadcast %55 : vector<8x1xf32> to vector<8x512xf32>
    %57 = arith.mulf %48, %56 : vector<8x512xf32>
    %58 = math.roundeven %57 : vector<8x512xf32>
    %cst_19 = arith.constant -1.280000e+02 : f32
    %cst_20 = arith.constant 1.270000e+02 : f32
    %59 = vector.broadcast %cst_19 : f32 to vector<8x512xf32>
    %60 = arith.maximumf %59, %58 : vector<8x512xf32>
    %61 = vector.broadcast %cst_20 : f32 to vector<8x512xf32>
    %62 = arith.minimumf %61, %60 : vector<8x512xf32>
    %63 = arith.truncf %62 : vector<8x512xf32> to vector<8x512xbf16>
    %cst_21 = arith.constant 1.000000e+00 : f32
    %64 = vector.broadcast %cst_21 : f32 to vector<8x1xf32>
    %65 = arith.divf %64, %55 : vector<8x1xf32>
    %c0_22 = arith.constant 0 : index
    %c0_23 = arith.constant 0 : index
    %66 = vector.load %arg3[%c0_22, %c0_23] : memref<512x256xbf16, #tpu.memory_space<vmem>>, vector<512x256xbf16>
    %cst_24 = arith.constant dense<0.000000e+00> : vector<8x256xf32>
    %67 = tpu.matmul %63, %66, %cst_24 {dimension_numbers = #tpu.dot_dimension_numbers<[1], [0], [0], [1], [0, 0, 1, 1], [], []>} : vector<8x512xbf16>, vector<512x256xbf16>, vector<8x256xf32> -> vector<8x256xf32>
    %c2 = arith.constant 2 : index
    %68 = memref.load %arg5[%c2] : memref<3xf32, #tpu.memory_space<smem>>
    %69 = vector.broadcast %68 : f32 to vector<8x1xf32>
    %70 = arith.mulf %65, %69 : vector<8x1xf32>
    %71 = vector.broadcast %70 : vector<8x1xf32> to vector<8x256xf32>
    %72 = arith.mulf %67, %71 : vector<8x256xf32>
    %c0_25 = arith.constant 0 : index
    %c0_26 = arith.constant 0 : index
    %73 = vector.load %arg6[%c0_25, %c0_26] : memref<8x256xf32, #tpu.memory_space<vmem>>, vector<8x256xf32>
    tpu.vector_store %arg6[%c0_25, %c0_26], %72 {strides = array<i32>} : memref<8x256xf32, #tpu.memory_space<vmem>>, vector<8x256xf32>,
    return
  }
  func.func @transform_0(%arg0: i32) -> (i32, i32) {
    %c0_i32 = arith.constant 0 : i32
    %c0_i32_0 = arith.constant 0 : i32
    return %arg0, %c0_i32 : i32, i32
  }
  func.func @transform_1(%arg0: i32) -> (i32, i32) {
    %c0_i32 = arith.constant 0 : i32
    %c0_i32_0 = arith.constant 0 : i32
    %c0_i32_1 = arith.constant 0 : i32
    return %c0_i32, %c0_i32_0 : i32, i32
  }
  func.func @transform_2(%arg0: i32) -> (i32, i32) {
    %c0_i32 = arith.constant 0 : i32
    %c0_i32_0 = arith.constant 0 : i32
    %c0_i32_1 = arith.constant 0 : i32
    return %c0_i32, %c0_i32_0 : i32, i32
  }
  func.func @transform_3(%arg0: i32) -> (i32, i32) {
    %c0_i32 = arith.constant 0 : i32
    %c0_i32_0 = arith.constant 0 : i32
    %c0_i32_1 = arith.constant 0 : i32
    return %c0_i32, %c0_i32_0 : i32, i32
  }
  func.func @transform_4(%arg0: i32) -> i32 {
    %c0_i32 = arith.constant 0 : i32
    %c0_i32_0 = arith.constant 0 : i32
    return %c0_i32 : i32
  }
  func.func @transform_5(%arg0: i32) -> (i32, i32) {
    %c0_i32 = arith.constant 0 : i32
    %c0_i32_0 = arith.constant 0 : i32
    return %arg0, %c0_i32 : i32, i32
  }
}

module attributes {stable_mosaic.version = 11 : i64} {
  func.func @bitnet_mlp_kernel(%arg0: i32, %arg1: memref<8x256xf32, #tpu.memory_space<vmem>>, %arg2: memref<256x1024xbf16, #tpu.memory_space<vmem>>, %arg3: memref<512x256xbf16, #tpu.memory_space<vmem>>, %arg4: memref<1x512xf32, #tpu.memory_space<vmem>>, %arg5: memref<3xf32, #tpu.memory_space<smem>>, %arg6: memref<8x256xf32, #tpu.memory_space<vmem>>) attributes {dimension_semantics = [#tpu.dimension_semantics<parallel>], iteration_bounds = array<i64: 2>, scalar_prefetch = 0 : i64, scratch_operands = 0 : i64, tpu.core_type = #tpu.core_type<tc>, window_params = [{transform_indices = @transform_0, window_bounds = array<i64: 8, 256>}, {pipeline_mode = #tpu.pipeline_mode<synchronous>, transform_indices = @transform_1, window_bounds = array<i64: 256, 1024>}, {pipeline_mode = #tpu.pipeline_mode<synchronous>, transform_indices = @transform_2, window_bounds = array<i64: 512, 256>}, {pipeline_mode = #tpu.pipeline_mode<synchronous>, transform_indices = @transform_3, window_bounds = array<i64: 1, 512>}, {transform_indices = @transform_4, window_bounds = array<i64: 3>}, {transform_indices = @transform_5, window_bounds = array<i64: 8, 256>}]} {
    %c0 = arith.constant 0 : index
    %c0_0 = arith.constant 0 : index
    %0 = vector.load %arg1[%c0, %c0_0] : memref<8x256xf32, #tpu.memory_space<vmem>>, vector<8x256xf32>
    %1 = math.absf %0 : vector<8x256xf32>
    %cst = arith.constant dense<0xFF800000> : vector<8xf32>
    %2 = vector.multi_reduction <maximumf>, %1, %cst [1] : vector<8x256xf32> to vector<8xf32>
    %3 = vector.shape_cast %2 : vector<8xf32> to vector<8x1xf32>
    %cst_1 = arith.constant 9.99999974E-6 : f32
    %4 = vector.broadcast %cst_1 : f32 to vector<8x1xf32>
    %5 = arith.maximumf %3, %4 : vector<8x1xf32>
    %cst_2 = arith.constant 1.270000e+02 : f32
    %6 = vector.broadcast %cst_2 : f32 to vector<8x1xf32>
    %7 = arith.divf %6, %5 : vector<8x1xf32>
    %8 = vector.broadcast %7 : vector<8x1xf32> to vector<8x256xf32>
    %9 = arith.mulf %0, %8 : vector<8x256xf32>
    %10 = math.roundeven %9 : vector<8x256xf32>
    %cst_3 = arith.constant -1.280000e+02 : f32
    %cst_4 = arith.constant 1.270000e+02 : f32
    %11 = vector.broadcast %cst_3 : f32 to vector<8x256xf32>
    %12 = arith.maximumf %11, %10 : vector<8x256xf32>
    %13 = vector.broadcast %cst_4 : f32 to vector<8x256xf32>
    %14 = arith.minimumf %13, %12 : vector<8x256xf32>
    %15 = arith.truncf %14 : vector<8x256xf32> to vector<8x256xbf16>
    %cst_5 = arith.constant 1.000000e+00 : f32
    %16 = vector.broadcast %cst_5 : f32 to vector<8x1xf32>
    %17 = arith.divf %16, %7 : vector<8x1xf32>
    %c0_6 = arith.constant 0 : index
    %c0_7 = arith.constant 0 : index
    %18 = vector.load %arg2[%c0_6, %c0_7] : memref<256x1024xbf16, #tpu.memory_space<vmem>>, vector<256x1024xbf16>
    %cst_8 = arith.constant dense<0.000000e+00> : vector<8x1024xf32>
    %19 = tpu.matmul %15, %18, %cst_8 {dimension_numbers = #tpu.dot_dimension_numbers<[1], [0], [0], [1], [0, 0, 1, 1], [], []>} : vector<8x256xbf16>, vector<256x1024xbf16>, vector<8x1024xf32> -> vector<8x1024xf32>
    %20 = vector.extract_strided_slice %19 {offsets = [0, 0], sizes = [8, 512], strides = [1, 1]} : vector<8x1024xf32> to vector<8x512xf32>
    %c0_9 = arith.constant 0 : index
    %21 = memref.load %arg5[%c0_9] : memref<3xf32, #tpu.memory_space<smem>>
    %22 = vector.broadcast %21 : f32 to vector<8x1xf32>
    %23 = arith.mulf %17, %22 : vector<8x1xf32>
    %24 = vector.broadcast %23 : vector<8x1xf32> to vector<8x512xf32>
    %25 = arith.mulf %20, %24 : vector<8x512xf32>
    %26 = vector.extract_strided_slice %19 {offsets = [0, 512], sizes = [8, 512], strides = [1, 1]} : vector<8x1024xf32> to vector<8x512xf32>
    %c1 = arith.constant 1 : index
    %27 = memref.load %arg5[%c1] : memref<3xf32, #tpu.memory_space<smem>>
    %28 = vector.broadcast %27 : f32 to vector<8x1xf32>
    %29 = arith.mulf %17, %28 : vector<8x1xf32>
    %30 = vector.broadcast %29 : vector<8x1xf32> to vector<8x512xf32>
    %31 = arith.mulf %26, %30 : vector<8x512xf32>
    %cst_10 = arith.constant 0.000000e+00 : f32
    %32 = vector.broadcast %cst_10 : f32 to vector<8x512xf32>
    %33 = arith.maximumf %25, %32 : vector<8x512xf32>
    %34 = arith.mulf %33, %33 : vector<8x512xf32>
    %35 = arith.mulf %34, %31 : vector<8x512xf32>
    %36 = arith.mulf %35, %35 : vector<8x512xf32>
    %cst_11 = arith.constant dense<0.000000e+00> : vector<8xf32>
    %37 = vector.multi_reduction <add>, %36, %cst_11 [1] : vector<8x512xf32> to vector<8xf32>
    %38 = vector.shape_cast %37 : vector<8xf32> to vector<8x1xf32>
    %cst_12 = arith.constant 5.120000e+02 : f32
    %39 = vector.broadcast %cst_12 : f32 to vector<8x1xf32>
    %40 = arith.divf %38, %39 : vector<8x1xf32>
    %cst_13 = arith.constant 9.99999997E-7 : f32
    %41 = vector.broadcast %cst_13 : f32 to vector<8x1xf32>
    %42 = arith.addf %40, %41 : vector<8x1xf32>
    %43 = math.rsqrt %42 : vector<8x1xf32>
    %44 = vector.broadcast %43 : vector<8x1xf32> to vector<8x512xf32>
    %45 = arith.mulf %35, %44 : vector<8x512xf32>
    %c0_14 = arith.constant 0 : index
    %c0_15 = arith.constant 0 : index
    %46 = vector.load %arg4[%c0_14, %c0_15] : memref<1x512xf32, #tpu.memory_space<vmem>>, vector<1x512xf32>
    %47 = vector.broadcast %46 : vector<1x512xf32> to vector<8x512xf32>
    %48 = arith.mulf %47, %45 : vector<8x512xf32>
    %49 = math.absf %48 : vector<8x512xf32>
    %cst_16 = arith.constant dense<0xFF800000> : vector<8xf32>
    %50 = vector.multi_reduction <maximumf>, %49, %cst_16 [1] : vector<8x512xf32> to vector<8xf32>
    %51 = vector.shape_cast %50 : vector<8xf32> to vector<8x1xf32>
    %cst_17 = arith.constant 9.99999974E-6 : f32
    %52 = vector.broadcast %cst_17 : f32 to vector<8x1xf32>
    %53 = arith.maximumf %51, %52 : vector<8x1xf32>
    %cst_18 = arith.constant 1.270000e+02 : f32
    %54 = vector.broadcast %cst_18 : f32 to vector<8x1xf32>
    %55 = arith.divf %54, %53 : vector<8x1xf32>
    %56 = vector.broadcast %55 : vector<8x1xf32> to vector<8x512xf32>
    %57 = arith.mulf %48, %56 : vector<8x512xf32>
    %58 = math.roundeven %57 : vector<8x512xf32>
    %cst_19 = arith.constant -1.280000e+02 : f32
    %cst_20 = arith.constant 1.270000e+02 : f32
    %59 = vector.broadcast %cst_19 : f32 to vector<8x512xf32>
    %60 = arith.maximumf %59, %58 : vector<8x512xf32>
    %61 = vector.broadcast %cst_20 : f32 to vector<8x512xf32>
    %62 = arith.minimumf %61, %60 : vector<8x512xf32>
    %63 = arith.truncf %62 : vector<8x512xf32> to vector<8x512xbf16>
    %cst_21 = arith.constant 1.000000e+00 : f32
    %64 = vector.broadcast %cst_21 : f32 to vector<8x1xf32>
    %65 = arith.divf %64, %55 : vector<8x1xf32>
    %c0_22 = arith.constant 0 : index
    %c0_23 = arith.constant 0 : index
    %66 = vector.load %arg3[%c0_22, %c0_23] : memref<512x256xbf16, #tpu.memory_space<vmem>>, vector<512x256xbf16>
    %cst_24 = arith.constant dense<0.000000e+00> : vector<8x256xf32>
    %67 = tpu.matmul %63, %66, %cst_24 {dimension_numbers = #tpu.dot_dimension_numbers<[1], [0], [0], [1], [0, 0, 1, 1], [], []>} : vector<8x512xbf16>, vector<512x256xbf16>, vector<8x256xf32> -> vector<8x256xf32>
    %c2 = arith.constant 2 : index
    %68 = memref.load %arg5[%c2] : memref<3xf32, #tpu.memory_space<smem>>
    %69 = vector.broadcast %68 : f32 to vector<8x1xf32>
    %70 = arith.mulf %65, %69 : vector<8x1xf32>
    %71 = vector.broadcast %70 : vector<8x1xf32> to vector<8x256xf32>
    %72 = arith.mulf %67, %71 : vector<8x256xf32>
    %c0_25 = arith.constant 0 : index
    %c0_26 = arith.constant 0 : index
    %73 = vector.load %arg6[%c0_25, %c0_26] : memref<8x256xf32, #tpu.memory_space<vmem>>, vector<8x256xf32>
    tpu.vector_store %arg6[%c0_25, %c0_26], %72 {strides = array<i32>} : memref<8x256xf32, #tpu.memory_space<vmem>>, vector<8x256xf32>,
    return
  }
  func.func @transform_0(%arg0: i32) -> (i32, i32) {
    %c0_i32 = arith.constant 0 : i32
    %c0_i32_0 = arith.constant 0 : i32
    return %arg0, %c0_i32 : i32, i32
  }
  func.func @transform_1(%arg0: i32) -> (i32, i32) {
    %c0_i32 = arith.constant 0 : i32
    %c0_i32_0 = arith.constant 0 : i32
    %c0_i32_1 = arith.constant 0 : i32
    return %c0_i32, %c0_i32_0 : i32, i32
  }
  func.func @transform_2(%arg0: i32) -> (i32, i32) {
    %c0_i32 = arith.constant 0 : i32
    %c0_i32_0 = arith.constant 0 : i32
    %c0_i32_1 = arith.constant 0 : i32
    return %c0_i32, %c0_i32_0 : i32, i32
  }
  func.func @transform_3(%arg0: i32) -> (i32, i32) {
    %c0_i32 = arith.constant 0 : i32
    %c0_i32_0 = arith.constant 0 : i32
    %c0_i32_1 = arith.constant 0 : i32
    return %c0_i32, %c0_i32_0 : i32, i32
  }
  func.func @transform_4(%arg0: i32) -> i32 {
    %c0_i32 = arith.constant 0 : i32
    %c0_i32_0 = arith.constant 0 : i32
    return %c0_i32 : i32
  }
  func.func @transform_5(%arg0: i32) -> (i32, i32) {
    %c0_i32 = arith.constant 0 : i32
    %c0_i32_0 = arith.constant 0 : i32
    return %arg0, %c0_i32 : i32, i32
  }
}

</mosaic_0001>

<llo_original>
// kernel: tpu_custom_call.1
$region0: #{tpu_custom_call.1}
  #allocation0 [shape = 'u32[]', space=smem, size = 0x4, offset = 0x4, fixed_abs, tag = 'smem constant byte address 0x4 - core index']
  #allocation1 [shape = 'u32[144,128]{1,0:T(1,128)}', space=vmem, size = 0x12000, scoped, tag = 'internal scratch']
  %s0 = inlined_call_operand.hbm [shape: f32[16,256], index: 0, kind: input, shape index: {}]
  %s1 = inlined_call_operand.hbm [shape: bf16[256,1024], index: 1, kind: input, shape index: {}]
  %s2 = inlined_call_operand.hbm [shape: bf16[512,256], index: 2, kind: input, shape index: {}]
  %s3 = inlined_call_operand.vmem [shape: f32[1,512], index: 3, kind: input, shape index: {}]
  %s4 = inlined_call_operand.vmem [shape: f32[3], index: 4, kind: input, shape index: {}]
  %s5 = inlined_call_operand.hbm [shape: f32[16,256], index: 5, kind: output, shape index: {}]
  %s6 = sld [smem:[#allocation0]]
  $region69: #{tpu_custom_call.1} parent=0
    _
  %s8 = ssub.s32 1, %s6
  %s9 = scalar_select 0, %s8, %s6
  $region1: #{tpu_custom_call.1} parent=0
    #allocation2 [shape = 'u8[16384]{0}', space=vmem, size = 0x4000, scoped, tag = 'input window, operand 0']
    #allocation3 [shape = 's32[2]{0}', space=sflag, size = 0x8, scoped, tag = 'scoped memory for tpu_custom_call.1']
    #allocation4 [shape = 's32[2]{0}', space=sflag, size = 0x8, scoped, tag = 'scoped memory for tpu_custom_call.1']
    #allocation5 [shape = 's32[2]{0}', space=sflag, size = 0x8, scoped, tag = 'scoped memory for tpu_custom_call.1']
    #allocation6 [shape = 'u8[524288]{0}', space=vmem, size = 0x80000, scoped, tag = 'input window, operand 1, single buffered']
    #allocation7 [shape = 's32[1]{0}', space=sflag, size = 0x4, scoped, tag = 'scoped memory for tpu_custom_call.1']
    #allocation8 [shape = 'u8[262144]{0}', space=vmem, size = 0x40000, scoped, tag = 'input window, operand 2, single buffered']
    #allocation9 [shape = 'u8[512]{0}', space=smem, size = 0x200, scoped, tag = 'input window, operand 4, single buffered']
    #allocation10 [shape = 'u8[16384]{0}', space=vmem, size = 0x4000, scoped, tag = 'output window, operand 0']
    %10 = vsyncpa [#allocation3], 0
    %s11 = scalar_lea.sflag [#allocation3], 1
    %12 = vsyncpa %s11, 0
    %13 = vsyncpa [#allocation7], 0
    %14 = vsyncpa [#allocation5], 0
    %15 = vsyncpa [#allocation4], 0
    %s16 = scalar_lea.sflag [#allocation4], 1
    %17 = vsyncpa %s16, 0
    loop: start=0, step=1, limit=4
    $region2: #{tpu_custom_call.1} parent=1 // loop_pre_header
      _
    $region3: #{tpu_custom_call.1} parent=1 // loop_header
      %s19 = sphi 0, %s23
      %p20 = scmp.ge.s32.totalorder %s19, 4
      %s29 = sphi 0, %s31
      %s32 = sphi 0, %s29
      %s33 = sphi 0, %s32
      %s49 = sphi 0, %s33
      %s53 = sphi 0, %s53
      %s55 = sphi 0, %s53
      %s56 = sphi 0, %s55
      %s70 = sphi 0, %s56
      %s74 = sphi 0, %s74
      %s76 = sphi 0, %s74
      %s77 = sphi 0, %s76
      %s91 = sphi 0, %s77
      %s95 = sphi 0, %s95
      %s97 = sphi 0, %s95
      %s98 = sphi 0, %s97
      %s112 = sphi 0, %s98
      %s116 = sphi 0, %s116
      %s118 = sphi 0, %s116
      %s119 = sphi 0, %s118
      %s133 = sphi 0, %s119
      %s139 = sphi 0, %s141
      %s142 = sphi 0, %s139
      %s143 = sphi 0, %s142
      %s159 = sphi 0, %s143
    $region4: #{tpu_custom_call.1} parent=1 // loop_header_branch
      %22 = sbr.rel (%p20) target = $region8
    $region5: #{tpu_custom_call.1} parent=1 // loop_body
      %s24 = ssub.s32 %s19, 1
      %s25 = ssub.s32 %s19, 2
      %s26 = sadd.s32 %s19, 1
      %s27 = ssub.s32 %s19, %s26
      %p28 = scmp.eq.s32.totalorder %s27, 0
      %s30 = sadd.s32 %s29, 1
      %s31 = scalar_select %p28, %s29, %s30
      %p34 = pneg %p28
      %p35 = scmp.eq.s32.totalorder %s19, 1
      %p36 = por %p34, %p35
      %p37 = scmp.ne.s32.totalorder %s29, %s32
      %p38 = scmp.eq.s32.totalorder %s19, 0
      %p39 = por %p37, %p38
      %p40 = scmp.ne.s32.totalorder %s29, %s32
      %p41 = scmp.eq.s32.totalorder %s24, 1
      %p42 = por %p40, %p41
      %p43 = scmp.ne.s32.totalorder %s32, %s33
      %p44 = scmp.eq.s32.totalorder %s24, 0
      %p45 = por %p43, %p44
      %p46 = scmp.ne.s32.totalorder %s32, %s33
      %p47 = scmp.eq.s32.totalorder %s25, 1
      %p48 = por %p46, %p47
      %p50 = scmp.ne.s32.totalorder %s33, %s49
      %p51 = scmp.eq.s32.totalorder %s25, 0
      %p52 = por %p50, %p51
      %s54 = sadd.s32 %s53, 1
      %p57 = scmp.eq.s32.totalorder %s19, 1
      %p58 = scmp.ne.s32.totalorder %s53, %s55
      %p59 = scmp.eq.s32.totalorder %s19, 0
      %p60 = por %p58, %p59
      %p61 = scmp.ne.s32.totalorder %s53, %s55
      %p62 = scmp.eq.s32.totalorder %s24, 1
      %p63 = por %p61, %p62
      %p64 = scmp.ne.s32.totalorder %s55, %s56
      %p65 = scmp.eq.s32.totalorder %s24, 0
      %p66 = por %p64, %p65
      %p67 = scmp.ne.s32.totalorder %s55, %s56
      %p68 = scmp.eq.s32.totalorder %s25, 1
      %p69 = por %p67, %p68
      %p71 = scmp.ne.s32.totalorder %s56, %s70
      %p72 = scmp.eq.s32.totalorder %s25, 0
      %p73 = por %p71, %p72
      %s75 = sadd.s32 %s74, 1
      %p78 = scmp.eq.s32.totalorder %s19, 1
      %p79 = scmp.ne.s32.totalorder %s74, %s76
      %p80 = scmp.eq.s32.totalorder %s19, 0
      %p81 = por %p79, %p80
      %p82 = scmp.ne.s32.totalorder %s74, %s76
      %p83 = scmp.eq.s32.totalorder %s24, 1
      %p84 = por %p82, %p83
      %p85 = scmp.ne.s32.totalorder %s76, %s77
      %p86 = scmp.eq.s32.totalorder %s24, 0
      %p87 = por %p85, %p86
      %p88 = scmp.ne.s32.totalorder %s76, %s77
      %p89 = scmp.eq.s32.totalorder %s25, 1
      %p90 = por %p88, %p89
      %p92 = scmp.ne.s32.totalorder %s77, %s91
      %p93 = scmp.eq.s32.totalorder %s25, 0
      %p94 = por %p92, %p93
      %s96 = sadd.s32 %s95, 1
      %p99 = scmp.eq.s32.totalorder %s19, 1
      %p100 = scmp.ne.s32.totalorder %s95, %s97
      %p101 = scmp.eq.s32.totalorder %s19, 0
      %p102 = por %p100, %p101
      %p103 = scmp.ne.s32.totalorder %s95, %s97
      %p104 = scmp.eq.s32.totalorder %s24, 1
      %p105 = por %p103, %p104
      %p106 = scmp.ne.s32.totalorder %s97, %s98
      %p107 = scmp.eq.s32.totalorder %s24, 0
      %p108 = por %p106, %p107
      %p109 = scmp.ne.s32.totalorder %s97, %s98
      %p110 = scmp.eq.s32.totalorder %s25, 1
      %p111 = por %p109, %p110
      %p113 = scmp.ne.s32.totalorder %s98, %s112
      %p114 = scmp.eq.s32.totalorder %s25, 0
      %p115 = por %p113, %p114
      %s117 = sadd.s32 %s116, 1
      %p120 = scmp.eq.s32.totalorder %s19, 1
      %p121 = scmp.ne.s32.totalorder %s116, %s118
      %p122 = scmp.eq.s32.totalorder %s19, 0
      %p123 = por %p121, %p122
      %p124 = scmp.ne.s32.totalorder %s116, %s118
      %p125 = scmp.eq.s32.totalorder %s24, 1
      %p126 = por %p124, %p125
      %p127 = scmp.ne.s32.totalorder %s118, %s119
      %p128 = scmp.eq.s32.totalorder %s24, 0
      %p129 = por %p127, %p128
      %p130 = scmp.ne.s32.totalorder %s118, %s119
      %p131 = scmp.eq.s32.totalorder %s25, 1
      %p132 = por %p130, %p131
      %p134 = scmp.ne.s32.totalorder %s119, %s133
      %p135 = scmp.eq.s32.totalorder %s25, 0
      %p136 = por %p134, %p135
      %s137 = ssub.s32 %s19, %s26
      %p138 = scmp.eq.s32.totalorder %s137, 0
      %s140 = sadd.s32 %s139, 1
      %s141 = scalar_select %p138, %s139, %s140
      %p144 = pneg %p138
      %p145 = scmp.eq.s32.totalorder %s19, 1
      %p146 = por %p144, %p145
      %p147 = scmp.ne.s32.totalorder %s139, %s142
      %p148 = scmp.eq.s32.totalorder %s19, 0
      %p149 = por %p147, %p148
      %p150 = scmp.ne.s32.totalorder %s139, %s142
      %p151 = scmp.eq.s32.totalorder %s24, 1
      %p152 = por %p150, %p151
      %p153 = scmp.ne.s32.totalorder %s142, %s143
      %p154 = scmp.eq.s32.totalorder %s24, 0
      %p155 = por %p153, %p154
      %p156 = scmp.ne.s32.totalorder %s142, %s143
      %p157 = scmp.eq.s32.totalorder %s25, 1
      %p158 = por %p156, %p157
      %p160 = scmp.ne.s32.totalorder %s143, %s159
      %p161 = scmp.eq.s32.totalorder %s25, 0
      %p162 = por %p160, %p161
      %p163 = scmp.le.s32.totalorder 1, %s19
      %p164 = scmp.lt.s32.totalorder %s19, 3
      %p165 = pnand %p163, %p164
      %p166 = pneg %p165
      // Predicated region
      $region9: #{tpu_custom_call.1} parent=5 // pred_check
        _
      $region10: #{tpu_custom_call.1} parent=5 // pred_check_branch
        %168 = sbr.rel (%p165) target = $region12
      $region11: #{tpu_custom_call.1} parent=5 // pred_region
        %s169 = ssub.s32 %s19, 1
        // Predicated region
        $region13: #{tpu_custom_call.1} parent=11 // pred_check
          %p170 = pneg %p66
        $region14: #{tpu_custom_call.1} parent=11 // pred_check_branch
          %172 = sbr.rel (%p170) target = $region16
        $region15: #{tpu_custom_call.1} parent=11 // pred_region
          %s174 = ssub.s32 16384, 16384
          %175 = vsyncadd [#allocation7], %s174
          %s176 = sshll.u32 [#allocation6], 4
          %s177 = int_to_ptr.vmem [resolvable:$true] %s176
          %182 = dma.hbm_to_vmem [thread:$0]  %s1, 16384, %s177, [#allocation7], 512, 512, 32
        $region16: #{tpu_custom_call.1} parent=11 // pred_fallthru
          _
        // Predicated region
        $region17: #{tpu_custom_call.1} parent=11 // pred_check
          %p183 = pneg %p87
        $region18: #{tpu_custom_call.1} parent=11 // pred_check_branch
          %185 = sbr.rel (%p183) target = $region20
        $region19: #{tpu_custom_call.1} parent=11 // pred_region
          %s187 = ssub.s32 8192, 8192
          %188 = vsyncadd [#allocation7], %s187
          %s189 = sshll.u32 [#allocation8], 4
          %s190 = int_to_ptr.vmem [resolvable:$true] %s189
          %195 = dma.hbm_to_vmem [thread:$0]  %s2, 8192, %s190, [#allocation7], 128, 128, 8
        $region20: #{tpu_custom_call.1} parent=11 // pred_fallthru
          _
        // Predicated region
        $region21: #{tpu_custom_call.1} parent=11 // pred_check
          %p196 = pneg %p108
        $region22: #{tpu_custom_call.1} parent=11 // pred_check_branch
          %198 = sbr.rel (%p196) target = $region24
        $region23: #{tpu_custom_call.1} parent=11 // pred_region
          _
        $region24: #{tpu_custom_call.1} parent=11 // pred_fallthru
          _
        // Predicated region
        $region25: #{tpu_custom_call.1} parent=11 // pred_check
          %p199 = pneg %p129
        $region26: #{tpu_custom_call.1} parent=11 // pred_check_branch
          %201 = sbr.rel (%p199) target = $region28
        $region27: #{tpu_custom_call.1} parent=11 // pred_region
          %s203 = ssub.s32 16, 16
          %204 = vsyncadd [#allocation5], %s203
          %s206 = sshll.u32 %s4, 4
          %s207 = int_to_ptr.vmem [resolvable:$true] %s206
          %209 = dma.vmem_to_smem %s207, 16, [#allocation9], [#allocation5]
        $region28: #{tpu_custom_call.1} parent=11 // pred_fallthru
          _
      $region12: #{tpu_custom_call.1} parent=5 // pred_fallthru
        _
      %p210 = scmp.lt.s32.totalorder %s19, 2
      // Predicated region
      $region29: #{tpu_custom_call.1} parent=5 // pred_check
        %p211 = pneg %p210
      $region30: #{tpu_custom_call.1} parent=5 // pred_check_branch
        %213 = sbr.rel (%p211) target = $region32
      $region31: #{tpu_custom_call.1} parent=5 // pred_region
        // Predicated region
        $region33: #{tpu_custom_call.1} parent=31 // pred_check
          %p214 = pneg %p39
        $region34: #{tpu_custom_call.1} parent=31 // pred_check_branch
          %216 = sbr.rel (%p214) target = $region36
        $region35: #{tpu_custom_call.1} parent=31 // pred_region
          %s217 = sand.u32 %s29, 1
          %s218 = scalar_lea.sflag [#allocation3], %s217
          %s219 = sand.u32 %s29, 1
          %s220 = smul.addr %s219, 16
          %s221 = scalar_lea.vmem [#allocation2], %s220
          %s223 = ssub.s32 256, 256
          %224 = vsyncadd %s218, %s223
          %s225 = smul.addr %s19, 2
          %s226 = smul.addr %s225, 128
          %s227 = scalar_lea.hbm %s0, %s226
          %s229 = sshll.u32 %s221, 4
          %s230 = int_to_ptr.vmem [resolvable:$true] %s229
          %232 = dma.hbm_to_vmem [thread:$0]  %s227, 256, %s230, %s218
        $region36: #{tpu_custom_call.1} parent=31 // pred_fallthru
          _
      $region32: #{tpu_custom_call.1} parent=5 // pred_fallthru
        _
      %p233 = scmp.le.s32.totalorder 1, %s19
      %p234 = scmp.lt.s32.totalorder %s19, 3
      %p235 = pnand %p233, %p234
      %p236 = pneg %p235
      // Predicated region
      $region37: #{tpu_custom_call.1} parent=5 // pred_check
        _
      $region38: #{tpu_custom_call.1} parent=5 // pred_check_branch
        %238 = sbr.rel (%p235) target = $region40
      $region39: #{tpu_custom_call.1} parent=5 // pred_region
        %s239 = ssub.s32 %s19, 1
        %s240 = sand.u32 %s32, 1
        %s241 = scalar_lea.sflag [#allocation3], %s240
        %s242 = sand.u32 %s32, 1
        %s243 = smul.addr %s242, 16
        %s244 = scalar_lea.vmem [#allocation2], %s243
        // Predicated region
        $region41: #{tpu_custom_call.1} parent=39 // pred_check
          %p245 = pneg %p45
        $region42: #{tpu_custom_call.1} parent=39 // pred_check_branch
          %247 = sbr.rel (%p245) target = $region44
        $region43: #{tpu_custom_call.1} parent=39 // pred_region
          %248 = dma.done %s241, 256
        $region44: #{tpu_custom_call.1} parent=39 // pred_fallthru
          _
        // Predicated region
        $region45: #{tpu_custom_call.1} parent=39 // pred_check
          %p249 = pneg %p66
        $region46: #{tpu_custom_call.1} parent=39 // pred_check_branch
          %251 = sbr.rel (%p249) target = $region48
        $region47: #{tpu_custom_call.1} parent=39 // pred_region
          %252 = dma.done [#allocation7], 16384
        $region48: #{tpu_custom_call.1} parent=39 // pred_fallthru
          _
        // Predicated region
        $region49: #{tpu_custom_call.1} parent=39 // pred_check
          %p253 = pneg %p87
        $region50: #{tpu_custom_call.1} parent=39 // pred_check_branch
          %255 = sbr.rel (%p253) target = $region52
        $region51: #{tpu_custom_call.1} parent=39 // pred_region
          %256 = dma.done [#allocation7], 8192
        $region52: #{tpu_custom_call.1} parent=39 // pred_fallthru
          _
        // Predicated region
        $region53: #{tpu_custom_call.1} parent=39 // pred_check
          %p257 = pneg %p129
        $region54: #{tpu_custom_call.1} parent=39 // pred_check_branch
          %259 = sbr.rel (%p257) target = $region56
        $region55: #{tpu_custom_call.1} parent=39 // pred_region
          %260 = dma.done [#allocation5], 16
        $region56: #{tpu_custom_call.1} parent=39 // pred_fallthru
          _
        %261 = sfence
        %s262 = sand.u32 %s32, 1
        %s263 = scalar_lea.sflag [#allocation3], %s262
        %s264 = sand.u32 %s32, 1
        %s265 = smul.addr %s264, 16
        %s266 = scalar_lea.vmem [#allocation2], %s265
        %p267 = pneg %p45
        %p268 = pneg %p42
        %p269 = pneg %p66
        %p270 = pneg %p63
        %p271 = pneg %p87
        %p272 = pneg %p84
        %p273 = pneg %p108
        %p274 = pneg %p105
        %p275 = pneg %p129
        %p276 = pneg %p126
        %p277 = pneg %p155
        %p278 = pneg %p152
        %s279 = sand.u32 %s142, 1
        %s280 = scalar_lea.sflag [#allocation4], %s279
        %s281 = sand.u32 %s142, 1
        %s282 = smul.addr %s281, 16
        %s283 = scalar_lea.vmem [#allocation10], %s282
        %v284 = vld [vmem:[%s244] sm:$0xff]
        %v285 = vld [vmem:[%s244 + $0x8] sm:$0xff]
        %v286 = vand.u32 2147483647, %v284
        %v287 = vand.u32 2147483647, %v285
        %v288 = vmax.f32 %v286, %v287
        %289 = vmax.xlane.f32.xlu0 %v288
        %v290 = vpop.xlane.xlu0 %289
        %v291 = vmax.f32 %v290, 1e-05
        %v292 = vrcp.pop %v291
        %v293 = vmul.f32 127.0, %v292
        %v294 = vmul.f32 %v284, %v293
        %v295 = vmul.f32 %v285, %v293
        %v296 = vround.ne.pseudo %v294
        %v297 = vround.ne.pseudo %v295
        %v298 = vmax.f32 %v296, -128.0
        %v299 = vmax.f32 %v297, -128.0
        %v300 = vmin.f32 %v298, 127.0
        %v301 = vmin.f32 %v299, 127.0
        %v302 = vpack.c.bf16 %v300, %v300
        %v303 = vpack.c.bf16 %v301, %v301
        %v304 = vrcp.pop %v293
        %v305 = vmul.f32 1.0, %v304
        %v306 = vld [vmem:[#allocation6] sm:$0xff]
        %v307 = vld [vmem:[#allocation6 + $0x8] sm:$0xff]
        %v308 = vld [vmem:[#allocation6 + $0x10] sm:$0xff]
        %v309 = vld [vmem:[#allocation6 + $0x18] sm:$0xff]
        %v310 = vld [vmem:[#allocation6 + $0x20] sm:$0xff]
        %v311 = vld [vmem:[#allocation6 + $0x28] sm:$0xff]
        %v312 = vld [vmem:[#allocation6 + $0x30] sm:$0xff]
        %v313 = vld [vmem:[#allocation6 + $0x38] sm:$0xff]
        %v314 = vld [vmem:[#allocation6 + $0x40] sm:$0xff]
        %v315 = vld [vmem:[#allocation6 + $0x48] sm:$0xff]
        %v316 = vld [vmem:[#allocation6 + $0x50] sm:$0xff]
        %v317 = vld [vmem:[#allocation6 + $0x58] sm:$0xff]
        %v318 = vld [vmem:[#allocation6 + $0x60] sm:$0xff]
        %v319 = vld [vmem:[#allocation6 + $0x68] sm:$0xff]
        %v320 = vld [vmem:[#allocation6 + $0x70] sm:$0xff]
        %v321 = vld [vmem:[#allocation6 + $0x78] sm:$0xff]
        %v322 = vld [vmem:[#allocation6 + $0x80] sm:$0xff]
        %v323 = vld [vmem:[#allocation6 + $0x88] sm:$0xff]
        %v324 = vld [vmem:[#allocation6 + $0x90] sm:$0xff]
        %v325 = vld [vmem:[#allocation6 + $0x98] sm:$0xff]
        %v326 = vld [vmem:[#allocation6 + $0xa0] sm:$0xff]
        %v327 = vld [vmem:[#allocation6 + $0xa8] sm:$0xff]
        %v328 = vld [vmem:[#allocation6 + $0xb0] sm:$0xff]
        %v329 = vld [vmem:[#allocation6 + $0xb8] sm:$0xff]
        %v330 = vld [vmem:[#allocation6 + $0xc0] sm:$0xff]
        %v331 = vld [vmem:[#allocation6 + $0xc8] sm:$0xff]
        %v332 = vld [vmem:[#allocation6 + $0xd0] sm:$0xff]
        %v333 = vld [vmem:[#allocation6 + $0xd8] sm:$0xff]
        %v334 = vld [vmem:[#allocation6 + $0xe0] sm:$0xff]
        %v335 = vld [vmem:[#allocation6 + $0xe8] sm:$0xff]
        %v336 = vld [vmem:[#allocation6 + $0xf0] sm:$0xff]
        %v337 = vld [vmem:[#allocation6 + $0xf8] sm:$0xff]
        %v338 = vld [vmem:[#allocation6 + $0x100] sm:$0xff]
        %v339 = vld [vmem:[#allocation6 + $0x108] sm:$0xff]
        %v340 = vld [vmem:[#allocation6 + $0x110] sm:$0xff]
        %v341 = vld [vmem:[#allocation6 + $0x118] sm:$0xff]
        %v342 = vld [vmem:[#allocation6 + $0x120] sm:$0xff]
        %v343 = vld [vmem:[#allocation6 + $0x128] sm:$0xff]
        %v344 = vld [vmem:[#allocation6 + $0x130] sm:$0xff]
        %v345 = vld [vmem:[#allocation6 + $0x138] sm:$0xff]
        %v346 = vld [vmem:[#allocation6 + $0x140] sm:$0xff]
        %v347 = vld [vmem:[#allocation6 + $0x148] sm:$0xff]
        %v348 = vld [vmem:[#allocation6 + $0x150] sm:$0xff]
        %v349 = vld [vmem:[#allocation6 + $0x158] sm:$0xff]
        %v350 = vld [vmem:[#allocation6 + $0x160] sm:$0xff]
        %v351 = vld [vmem:[#allocation6 + $0x168] sm:$0xff]
        %v352 = vld [vmem:[#allocation6 + $0x170] sm:$0xff]
        %v353 = vld [vmem:[#allocation6 + $0x178] sm:$0xff]
        %v354 = vld [vmem:[#allocation6 + $0x180] sm:$0xff]
        %v355 = vld [vmem:[#allocation6 + $0x188] sm:$0xff]
        %v356 = vld [vmem:[#allocation6 + $0x190] sm:$0xff]
        %v357 = vld [vmem:[#allocation6 + $0x198] sm:$0xff]
        %v358 = vld [vmem:[#allocation6 + $0x1a0] sm:$0xff]
        %v359 = vld [vmem:[#allocation6 + $0x1a8] sm:$0xff]
        %v360 = vld [vmem:[#allocation6 + $0x1b0] sm:$0xff]
        %v361 = vld [vmem:[#allocation6 + $0x1b8] sm:$0xff]
        %v362 = vld [vmem:[#allocation6 + $0x1c0] sm:$0xff]
        %v363 = vld [vmem:[#allocation6 + $0x1c8] sm:$0xff]
        %v364 = vld [vmem:[#allocation6 + $0x1d0] sm:$0xff]
        %v365 = vld [vmem:[#allocation6 + $0x1d8] sm:$0xff]
        %v366 = vld [vmem:[#allocation6 + $0x1e0] sm:$0xff]
        %v367 = vld [vmem:[#allocation6 + $0x1e8] sm:$0xff]
        %v368 = vld [vmem:[#allocation6 + $0x1f0] sm:$0xff]
        %v369 = vld [vmem:[#allocation6 + $0x1f8] sm:$0xff]
        %v370 = vld [vmem:[#allocation6 + $0x200] sm:$0xff]
        %v371 = vld [vmem:[#allocation6 + $0x208] sm:$0xff]
        %v372 = vld [vmem:[#allocation6 + $0x210] sm:$0xff]
        %v373 = vld [vmem:[#allocation6 + $0x218] sm:$0xff]
        %v374 = vld [vmem:[#allocation6 + $0x220] sm:$0xff]
        %v375 = vld [vmem:[#allocation6 + $0x228] sm:$0xff]
        %v376 = vld [vmem:[#allocation6 + $0x230] sm:$0xff]
        %v377 = vld [vmem:[#allocation6 + $0x238] sm:$0xff]
        %v378 = vld [vmem:[#allocation6 + $0x240] sm:$0xff]
        %v379 = vld [vmem:[#allocation6 + $0x248] sm:$0xff]
        %v380 = vld [vmem:[#allocation6 + $0x250] sm:$0xff]
        %v381 = vld [vmem:[#allocation6 + $0x258] sm:$0xff]
        %v382 = vld [vmem:[#allocation6 + $0x260] sm:$0xff]
        %v383 = vld [vmem:[#allocation6 + $0x268] sm:$0xff]
        %v384 = vld [vmem:[#allocation6 + $0x270] sm:$0xff]
        %v385 = vld [vmem:[#allocation6 + $0x278] sm:$0xff]
        %v386 = vld [vmem:[#allocation6 + $0x280] sm:$0xff]
        %v387 = vld [vmem:[#allocation6 + $0x288] sm:$0xff]
        %v388 = vld [vmem:[#allocation6 + $0x290] sm:$0xff]
        %v389 = vld [vmem:[#allocation6 + $0x298] sm:$0xff]
        %v390 = vld [vmem:[#allocation6 + $0x2a0] sm:$0xff]
        %v391 = vld [vmem:[#allocation6 + $0x2a8] sm:$0xff]
        %v392 = vld [vmem:[#allocation6 + $0x2b0] sm:$0xff]
        %v393 = vld [vmem:[#allocation6 + $0x2b8] sm:$0xff]
        %v394 = vld [vmem:[#allocation6 + $0x2c0] sm:$0xff]
        %v395 = vld [vmem:[#allocation6 + $0x2c8] sm:$0xff]
        %v396 = vld [vmem:[#allocation6 + $0x2d0] sm:$0xff]
        %v397 = vld [vmem:[#allocation6 + $0x2d8] sm:$0xff]
        %v398 = vld [vmem:[#allocation6 + $0x2e0] sm:$0xff]
        %v399 = vld [vmem:[#allocation6 + $0x2e8] sm:$0xff]
        %v400 = vld [vmem:[#allocation6 + $0x2f0] sm:$0xff]
        %v401 = vld [vmem:[#allocation6 + $0x2f8] sm:$0xff]
        %v402 = vld [vmem:[#allocation6 + $0x300] sm:$0xff]
        %v403 = vld [vmem:[#allocation6 + $0x308] sm:$0xff]
        %v404 = vld [vmem:[#allocation6 + $0x310] sm:$0xff]
        %v405 = vld [vmem:[#allocation6 + $0x318] sm:$0xff]
        %v406 = vld [vmem:[#allocation6 + $0x320] sm:$0xff]
        %v407 = vld [vmem:[#allocation6 + $0x328] sm:$0xff]
        %v408 = vld [vmem:[#allocation6 + $0x330] sm:$0xff]
        %v409 = vld [vmem:[#allocation6 + $0x338] sm:$0xff]
        %v410 = vld [vmem:[#allocation6 + $0x340] sm:$0xff]
        %v411 = vld [vmem:[#allocation6 + $0x348] sm:$0xff]
        %v412 = vld [vmem:[#allocation6 + $0x350] sm:$0xff]
        %v413 = vld [vmem:[#allocation6 + $0x358] sm:$0xff]
        %v414 = vld [vmem:[#allocation6 + $0x360] sm:$0xff]
        %v415 = vld [vmem:[#allocation6 + $0x368] sm:$0xff]
        %v416 = vld [vmem:[#allocation6 + $0x370] sm:$0xff]
        %v417 = vld [vmem:[#allocation6 + $0x378] sm:$0xff]
        %v418 = vld [vmem:[#allocation6 + $0x380] sm:$0xff]
        %v419 = vld [vmem:[#allocation6 + $0x388] sm:$0xff]
        %v420 = vld [vmem:[#allocation6 + $0x390] sm:$0xff]
        %v421 = vld [vmem:[#allocation6 + $0x398] sm:$0xff]
        %v422 = vld [vmem:[#allocation6 + $0x3a0] sm:$0xff]
        %v423 = vld [vmem:[#allocation6 + $0x3a8] sm:$0xff]
        %v424 = vld [vmem:[#allocation6 + $0x3b0] sm:$0xff]
        %v425 = vld [vmem:[#allocation6 + $0x3b8] sm:$0xff]
        %v426 = vld [vmem:[#allocation6 + $0x3c0] sm:$0xff]
        %v427 = vld [vmem:[#allocation6 + $0x3c8] sm:$0xff]
        %v428 = vld [vmem:[#allocation6 + $0x3d0] sm:$0xff]
        %v429 = vld [vmem:[#allocation6 + $0x3d8] sm:$0xff]
        %v430 = vld [vmem:[#allocation6 + $0x3e0] sm:$0xff]
        %v431 = vld [vmem:[#allocation6 + $0x3e8] sm:$0xff]
        %v432 = vld [vmem:[#allocation6 + $0x3f0] sm:$0xff]
        %v433 = vld [vmem:[#allocation6 + $0x3f8] sm:$0xff]
        %v562 = vunpack.c.l.b16 %v306
        %v563 = vunpack.c.h.b16 %v306
        %v564 = vunpack.c.l.b16 %v307
        %v565 = vunpack.c.h.b16 %v307
        %v566 = vunpack.c.l.b16 %v308
        %v567 = vunpack.c.h.b16 %v308
        %v568 = vunpack.c.l.b16 %v309
        %v569 = vunpack.c.h.b16 %v309
        %v570 = vunpack.c.l.b16 %v310
        %v571 = vunpack.c.h.b16 %v310
        %v572 = vunpack.c.l.b16 %v311
        %v573 = vunpack.c.h.b16 %v311
        %v574 = vunpack.c.l.b16 %v312
        %v575 = vunpack.c.h.b16 %v312
        %v576 = vunpack.c.l.b16 %v313
        %v577 = vunpack.c.h.b16 %v313
        %v578 = vunpack.c.l.b16 %v314
        %v579 = vunpack.c.h.b16 %v314
        %v580 = vunpack.c.l.b16 %v315
        %v581 = vunpack.c.h.b16 %v315
        %v582 = vunpack.c.l.b16 %v316
        %v583 = vunpack.c.h.b16 %v316
        %v584 = vunpack.c.l.b16 %v317
        %v585 = vunpack.c.h.b16 %v317
        %v586 = vunpack.c.l.b16 %v318
        %v587 = vunpack.c.h.b16 %v318
        %v588 = vunpack.c.l.b16 %v319
        %v589 = vunpack.c.h.b16 %v319
        %v590 = vunpack.c.l.b16 %v320
        %v591 = vunpack.c.h.b16 %v320
        %v592 = vunpack.c.l.b16 %v321
        %v593 = vunpack.c.h.b16 %v321
        %v594 = vunpack.c.l.b16 %v322
        %v595 = vunpack.c.h.b16 %v322
        %v596 = vunpack.c.l.b16 %v323
        %v597 = vunpack.c.h.b16 %v323
        %v598 = vunpack.c.l.b16 %v324
        %v599 = vunpack.c.h.b16 %v324
        %v600 = vunpack.c.l.b16 %v325
        %v601 = vunpack.c.h.b16 %v325
        %v602 = vunpack.c.l.b16 %v326
        %v603 = vunpack.c.h.b16 %v326
        %v604 = vunpack.c.l.b16 %v327
        %v605 = vunpack.c.h.b16 %v327
        %v606 = vunpack.c.l.b16 %v328
        %v607 = vunpack.c.h.b16 %v328
        %v608 = vunpack.c.l.b16 %v329
        %v609 = vunpack.c.h.b16 %v329
        %v610 = vunpack.c.l.b16 %v330
        %v611 = vunpack.c.h.b16 %v330
        %v612 = vunpack.c.l.b16 %v331
        %v613 = vunpack.c.h.b16 %v331
        %v614 = vunpack.c.l.b16 %v332
        %v615 = vunpack.c.h.b16 %v332
        %v616 = vunpack.c.l.b16 %v333
        %v617 = vunpack.c.h.b16 %v333
        %v618 = vunpack.c.l.b16 %v334
        %v619 = vunpack.c.h.b16 %v334
        %v620 = vunpack.c.l.b16 %v335
        %v621 = vunpack.c.h.b16 %v335
        %v622 = vunpack.c.l.b16 %v336
        %v623 = vunpack.c.h.b16 %v336
        %v624 = vunpack.c.l.b16 %v337
        %v625 = vunpack.c.h.b16 %v337
        %v626 = vunpack.c.l.b16 %v338
        %v627 = vunpack.c.h.b16 %v338
        %v628 = vunpack.c.l.b16 %v339
        %v629 = vunpack.c.h.b16 %v339
        %v630 = vunpack.c.l.b16 %v340
        %v631 = vunpack.c.h.b16 %v340
        %v632 = vunpack.c.l.b16 %v341
        %v633 = vunpack.c.h.b16 %v341
        %v634 = vunpack.c.l.b16 %v342
        %v635 = vunpack.c.h.b16 %v342
        %v636 = vunpack.c.l.b16 %v343
        %v637 = vunpack.c.h.b16 %v343
        %v638 = vunpack.c.l.b16 %v344
        %v639 = vunpack.c.h.b16 %v344
        %v640 = vunpack.c.l.b16 %v345
        %v641 = vunpack.c.h.b16 %v345
        %v642 = vunpack.c.l.b16 %v346
        %v643 = vunpack.c.h.b16 %v346
        %v644 = vunpack.c.l.b16 %v347
        %v645 = vunpack.c.h.b16 %v347
        %v646 = vunpack.c.l.b16 %v348
        %v647 = vunpack.c.h.b16 %v348
        %v648 = vunpack.c.l.b16 %v349
        %v649 = vunpack.c.h.b16 %v349
        %v650 = vunpack.c.l.b16 %v350
        %v651 = vunpack.c.h.b16 %v350
        %v652 = vunpack.c.l.b16 %v351
        %v653 = vunpack.c.h.b16 %v351
        %v654 = vunpack.c.l.b16 %v352
        %v655 = vunpack.c.h.b16 %v352
        %v656 = vunpack.c.l.b16 %v353
        %v657 = vunpack.c.h.b16 %v353
        %v658 = vunpack.c.l.b16 %v354
        %v659 = vunpack.c.h.b16 %v354
        %v660 = vunpack.c.l.b16 %v355
        %v661 = vunpack.c.h.b16 %v355
        %v662 = vunpack.c.l.b16 %v356
        %v663 = vunpack.c.h.b16 %v356
        %v664 = vunpack.c.l.b16 %v357
        %v665 = vunpack.c.h.b16 %v357
        %v666 = vunpack.c.l.b16 %v358
        %v667 = vunpack.c.h.b16 %v358
        %v668 = vunpack.c.l.b16 %v359
        %v669 = vunpack.c.h.b16 %v359
        %v670 = vunpack.c.l.b16 %v360
        %v671 = vunpack.c.h.b16 %v360
        %v672 = vunpack.c.l.b16 %v361
        %v673 = vunpack.c.h.b16 %v361
        %v674 = vunpack.c.l.b16 %v362
        %v675 = vunpack.c.h.b16 %v362
        %v676 = vunpack.c.l.b16 %v363
        %v677 = vunpack.c.h.b16 %v363
        %v678 = vunpack.c.l.b16 %v364
        %v679 = vunpack.c.h.b16 %v364
        %v680 = vunpack.c.l.b16 %v365
        %v681 = vunpack.c.h.b16 %v365
        %v682 = vunpack.c.l.b16 %v366
        %v683 = vunpack.c.h.b16 %v366
        %v684 = vunpack.c.l.b16 %v367
        %v685 = vunpack.c.h.b16 %v367
        %v686 = vunpack.c.l.b16 %v368
        %v687 = vunpack.c.h.b16 %v368
        %v688 = vunpack.c.l.b16 %v369
        %v689 = vunpack.c.h.b16 %v369
        %v690 = vunpack.c.l.b16 %v370
        %v691 = vunpack.c.h.b16 %v370
        %v692 = vunpack.c.l.b16 %v371
        %v693 = vunpack.c.h.b16 %v371
        %v694 = vunpack.c.l.b16 %v372
        %v695 = vunpack.c.h.b16 %v372
        %v696 = vunpack.c.l.b16 %v373
        %v697 = vunpack.c.h.b16 %v373
        %v698 = vunpack.c.l.b16 %v374
        %v699 = vunpack.c.h.b16 %v374
        %v700 = vunpack.c.l.b16 %v375
        %v701 = vunpack.c.h.b16 %v375
        %v702 = vunpack.c.l.b16 %v376
        %v703 = vunpack.c.h.b16 %v376
        %v704 = vunpack.c.l.b16 %v377
        %v705 = vunpack.c.h.b16 %v377
        %v706 = vunpack.c.l.b16 %v378
        %v707 = vunpack.c.h.b16 %v378
        %v708 = vunpack.c.l.b16 %v379
        %v709 = vunpack.c.h.b16 %v379
        %v710 = vunpack.c.l.b16 %v380
        %v711 = vunpack.c.h.b16 %v380
        %v712 = vunpack.c.l.b16 %v381
        %v713 = vunpack.c.h.b16 %v381
        %v714 = vunpack.c.l.b16 %v382
        %v715 = vunpack.c.h.b16 %v382
        %v716 = vunpack.c.l.b16 %v383
        %v717 = vunpack.c.h.b16 %v383
        %v718 = vunpack.c.l.b16 %v384
        %v719 = vunpack.c.h.b16 %v384
        %v720 = vunpack.c.l.b16 %v385
        %v721 = vunpack.c.h.b16 %v385
        %v722 = vunpack.c.l.b16 %v386
        %v723 = vunpack.c.h.b16 %v386
        %v724 = vunpack.c.l.b16 %v387
        %v725 = vunpack.c.h.b16 %v387
        %v726 = vunpack.c.l.b16 %v388
        %v727 = vunpack.c.h.b16 %v388
        %v728 = vunpack.c.l.b16 %v389
        %v729 = vunpack.c.h.b16 %v389
        %v730 = vunpack.c.l.b16 %v390
        %v731 = vunpack.c.h.b16 %v390
        %v732 = vunpack.c.l.b16 %v391
        %v733 = vunpack.c.h.b16 %v391
        %v734 = vunpack.c.l.b16 %v392
        %v735 = vunpack.c.h.b16 %v392
        %v736 = vunpack.c.l.b16 %v393
        %v737 = vunpack.c.h.b16 %v393
        %v738 = vunpack.c.l.b16 %v394
        %v739 = vunpack.c.h.b16 %v394
        %v740 = vunpack.c.l.b16 %v395
        %v741 = vunpack.c.h.b16 %v395
        %v742 = vunpack.c.l.b16 %v396
        %v743 = vunpack.c.h.b16 %v396
        %v744 = vunpack.c.l.b16 %v397
        %v745 = vunpack.c.h.b16 %v397
        %v746 = vunpack.c.l.b16 %v398
        %v747 = vunpack.c.h.b16 %v398
        %v748 = vunpack.c.l.b16 %v399
        %v749 = vunpack.c.h.b16 %v399
        %v750 = vunpack.c.l.b16 %v400
        %v751 = vunpack.c.h.b16 %v400
        %v752 = vunpack.c.l.b16 %v401
        %v753 = vunpack.c.h.b16 %v401
        %v754 = vunpack.c.l.b16 %v402
        %v755 = vunpack.c.h.b16 %v402
        %v756 = vunpack.c.l.b16 %v403
        %v757 = vunpack.c.h.b16 %v403
        %v758 = vunpack.c.l.b16 %v404
        %v759 = vunpack.c.h.b16 %v404
        %v760 = vunpack.c.l.b16 %v405
        %v761 = vunpack.c.h.b16 %v405
        %v762 = vunpack.c.l.b16 %v406
        %v763 = vunpack.c.h.b16 %v406
        %v764 = vunpack.c.l.b16 %v407
        %v765 = vunpack.c.h.b16 %v407
        %v766 = vunpack.c.l.b16 %v408
        %v767 = vunpack.c.h.b16 %v408
        %v768 = vunpack.c.l.b16 %v409
        %v769 = vunpack.c.h.b16 %v409
        %v770 = vunpack.c.l.b16 %v410
        %v771 = vunpack.c.h.b16 %v410
        %v772 = vunpack.c.l.b16 %v411
        %v773 = vunpack.c.h.b16 %v411
        %v774 = vunpack.c.l.b16 %v412
        %v775 = vunpack.c.h.b16 %v412
        %v776 = vunpack.c.l.b16 %v413
        %v777 = vunpack.c.h.b16 %v413
        %v778 = vunpack.c.l.b16 %v414
        %v779 = vunpack.c.h.b16 %v414
        %v780 = vunpack.c.l.b16 %v415
        %v781 = vunpack.c.h.b16 %v415
        %v782 = vunpack.c.l.b16 %v416
        %v783 = vunpack.c.h.b16 %v416
        %v784 = vunpack.c.l.b16 %v417
        %v785 = vunpack.c.h.b16 %v417
        %v786 = vunpack.c.l.b16 %v418
        %v787 = vunpack.c.h.b16 %v418
        %v788 = vunpack.c.l.b16 %v419
        %v789 = vunpack.c.h.b16 %v419
        %v790 = vunpack.c.l.b16 %v420
        %v791 = vunpack.c.h.b16 %v420
        %v792 = vunpack.c.l.b16 %v421
        %v793 = vunpack.c.h.b16 %v421
        %v794 = vunpack.c.l.b16 %v422
        %v795 = vunpack.c.h.b16 %v422
        %v796 = vunpack.c.l.b16 %v423
        %v797 = vunpack.c.h.b16 %v423
        %v798 = vunpack.c.l.b16 %v424
        %v799 = vunpack.c.h.b16 %v424
        %v800 = vunpack.c.l.b16 %v425
        %v801 = vunpack.c.h.b16 %v425
        %v802 = vunpack.c.l.b16 %v426
        %v803 = vunpack.c.h.b16 %v426
        %v804 = vunpack.c.l.b16 %v427
        %v805 = vunpack.c.h.b16 %v427
        %v806 = vunpack.c.l.b16 %v428
        %v807 = vunpack.c.h.b16 %v428
        %v808 = vunpack.c.l.b16 %v429
        %v809 = vunpack.c.h.b16 %v429
        %v810 = vunpack.c.l.b16 %v430
        %v811 = vunpack.c.h.b16 %v430
        %v812 = vunpack.c.l.b16 %v431
        %v813 = vunpack.c.h.b16 %v431
        %v814 = vunpack.c.l.b16 %v432
        %v815 = vunpack.c.h.b16 %v432
        %v816 = vunpack.c.l.b16 %v433
        %v817 = vunpack.c.h.b16 %v433
        %v818 = vpack.c.b16 %v570, %v562
        %v819 = vpack.c.b16 %v571, %v563
        %v820 = vpack.c.b16 %v572, %v564
        %v821 = vpack.c.b16 %v573, %v565
        %v822 = vpack.c.b16 %v574, %v566
        %v823 = vpack.c.b16 %v575, %v567
        %v824 = vpack.c.b16 %v576, %v568
        %v825 = vpack.c.b16 %v577, %v569
        %v826 = vpack.c.b16 %v586, %v578
        %v827 = vpack.c.b16 %v587, %v579
        %v828 = vpack.c.b16 %v588, %v580
        %v829 = vpack.c.b16 %v589, %v581
        %v830 = vpack.c.b16 %v590, %v582
        %v831 = vpack.c.b16 %v591, %v583
        %v832 = vpack.c.b16 %v592, %v584
        %v833 = vpack.c.b16 %v593, %v585
        %v834 = vpack.c.b16 %v602, %v594
        %v835 = vpack.c.b16 %v603, %v595
        %v836 = vpack.c.b16 %v604, %v596
        %v837 = vpack.c.b16 %v605, %v597
        %v838 = vpack.c.b16 %v606, %v598
        %v839 = vpack.c.b16 %v607, %v599
        %v840 = vpack.c.b16 %v608, %v600
        %v841 = vpack.c.b16 %v609, %v601
        %v842 = vpack.c.b16 %v618, %v610
        %v843 = vpack.c.b16 %v619, %v611
        %v844 = vpack.c.b16 %v620, %v612
        %v845 = vpack.c.b16 %v621, %v613
        %v846 = vpack.c.b16 %v622, %v614
        %v847 = vpack.c.b16 %v623, %v615
        %v848 = vpack.c.b16 %v624, %v616
        %v849 = vpack.c.b16 %v625, %v617
        %v850 = vpack.c.b16 %v634, %v626
        %v851 = vpack.c.b16 %v635, %v627
        %v852 = vpack.c.b16 %v636, %v628
        %v853 = vpack.c.b16 %v637, %v629
        %v854 = vpack.c.b16 %v638, %v630
        %v855 = vpack.c.b16 %v639, %v631
        %v856 = vpack.c.b16 %v640, %v632
        %v857 = vpack.c.b16 %v641, %v633
        %v858 = vpack.c.b16 %v650, %v642
        %v859 = vpack.c.b16 %v651, %v643
        %v860 = vpack.c.b16 %v652, %v644
        %v861 = vpack.c.b16 %v653, %v645
        %v862 = vpack.c.b16 %v654, %v646
        %v863 = vpack.c.b16 %v655, %v647
        %v864 = vpack.c.b16 %v656, %v648
        %v865 = vpack.c.b16 %v657, %v649
        %v866 = vpack.c.b16 %v666, %v658
        %v867 = vpack.c.b16 %v667, %v659
        %v868 = vpack.c.b16 %v668, %v660
        %v869 = vpack.c.b16 %v669, %v661
        %v870 = vpack.c.b16 %v670, %v662
        %v871 = vpack.c.b16 %v671, %v663
        %v872 = vpack.c.b16 %v672, %v664
        %v873 = vpack.c.b16 %v673, %v665
        %v874 = vpack.c.b16 %v682, %v674
        %v875 = vpack.c.b16 %v683, %v675
        %v876 = vpack.c.b16 %v684, %v676
        %v877 = vpack.c.b16 %v685, %v677
        %v878 = vpack.c.b16 %v686, %v678
        %v879 = vpack.c.b16 %v687, %v679
        %v880 = vpack.c.b16 %v688, %v680
        %v881 = vpack.c.b16 %v689, %v681
        %v882 = vpack.c.b16 %v698, %v690
        %v883 = vpack.c.b16 %v699, %v691
        %v884 = vpack.c.b16 %v700, %v692
        %v885 = vpack.c.b16 %v701, %v693
        %v886 = vpack.c.b16 %v702, %v694
        %v887 = vpack.c.b16 %v703, %v695
        %v888 = vpack.c.b16 %v704, %v696
        %v889 = vpack.c.b16 %v705, %v697
        %v890 = vpack.c.b16 %v714, %v706
        %v891 = vpack.c.b16 %v715, %v707
        %v892 = vpack.c.b16 %v716, %v708
        %v893 = vpack.c.b16 %v717, %v709
        %v894 = vpack.c.b16 %v718, %v710
        %v895 = vpack.c.b16 %v719, %v711
        %v896 = vpack.c.b16 %v720, %v712
        %v897 = vpack.c.b16 %v721, %v713
        %v898 = vpack.c.b16 %v730, %v722
        %v899 = vpack.c.b16 %v731, %v723
        %v900 = vpack.c.b16 %v732, %v724
        %v901 = vpack.c.b16 %v733, %v725
        %v902 = vpack.c.b16 %v734, %v726
        %v903 = vpack.c.b16 %v735, %v727
        %v904 = vpack.c.b16 %v736, %v728
        %v905 = vpack.c.b16 %v737, %v729
        %v906 = vpack.c.b16 %v746, %v738
        %v907 = vpack.c.b16 %v747, %v739
        %v908 = vpack.c.b16 %v748, %v740
        %v909 = vpack.c.b16 %v749, %v741
        %v910 = vpack.c.b16 %v750, %v742
        %v911 = vpack.c.b16 %v751, %v743
        %v912 = vpack.c.b16 %v752, %v744
        %v913 = vpack.c.b16 %v753, %v745
        %v914 = vpack.c.b16 %v762, %v754
        %v915 = vpack.c.b16 %v763, %v755
        %v916 = vpack.c.b16 %v764, %v756
        %v917 = vpack.c.b16 %v765, %v757
        %v918 = vpack.c.b16 %v766, %v758
        %v919 = vpack.c.b16 %v767, %v759
        %v920 = vpack.c.b16 %v768, %v760
        %v921 = vpack.c.b16 %v769, %v761
        %v922 = vpack.c.b16 %v778, %v770
        %v923 = vpack.c.b16 %v779, %v771
        %v924 = vpack.c.b16 %v780, %v772
        %v925 = vpack.c.b16 %v781, %v773
        %v926 = vpack.c.b16 %v782, %v774
        %v927 = vpack.c.b16 %v783, %v775
        %v928 = vpack.c.b16 %v784, %v776
        %v929 = vpack.c.b16 %v785, %v777
        %v930 = vpack.c.b16 %v794, %v786
        %v931 = vpack.c.b16 %v795, %v787
        %v932 = vpack.c.b16 %v796, %v788
        %v933 = vpack.c.b16 %v797, %v789
        %v934 = vpack.c.b16 %v798, %v790
        %v935 = vpack.c.b16 %v799, %v791
        %v936 = vpack.c.b16 %v800, %v792
        %v937 = vpack.c.b16 %v801, %v793
        %v938 = vpack.c.b16 %v810, %v802
        %v939 = vpack.c.b16 %v811, %v803
        %v940 = vpack.c.b16 %v812, %v804
        %v941 = vpack.c.b16 %v813, %v805
        %v942 = vpack.c.b16 %v814, %v806
        %v943 = vpack.c.b16 %v815, %v807
        %v944 = vpack.c.b16 %v816, %v808
        %v945 = vpack.c.b16 %v817, %v809
        %1074 = vmatprep.subr.bf16.mxu0 %v819
        %1075 = vmatpush1.bf16.msra.mxu0 %v818
        %1076 = vmatprep.subr.bf16.mxu0 %v827
        %1077 = vmatpush1.bf16.msra.mxu0 %v826
        %1078 = vmatprep.subr.bf16.mxu0 %v835
        %1079 = vmatpush1.bf16.msra.mxu0 %v834
        %1080 = vmatprep.subr.bf16.mxu0 %v843
        %1081 = vmatpush1.bf16.msra.mxu0 %v842
        %1082 = vmatprep.subr.bf16.mxu0 %v851
        %1083 = vmatpush1.bf16.msra.mxu0 %v850
        %1084 = vmatprep.subr.bf16.mxu0 %v859
        %1085 = vmatpush1.bf16.msra.mxu0 %v858
        %1086 = vmatprep.subr.bf16.mxu0 %v867
        %1087 = vmatpush1.bf16.msra.mxu0 %v866
        %1088 = vmatprep.subr.bf16.mxu0 %v875
        %1089 = vmatpush1.bf16.msra.mxu0 %v874
        %1090 = vmatprep.subr.bf16.mxu0 %v883
        %1091 = vmatpush1.bf16.msra.mxu0 %v882
        %1092 = vmatprep.subr.bf16.mxu0 %v891
        %1093 = vmatpush1.bf16.msra.mxu0 %v890
        %1094 = vmatprep.subr.bf16.mxu0 %v899
        %1095 = vmatpush1.bf16.msra.mxu0 %v898
        %1096 = vmatprep.subr.bf16.mxu0 %v907
        %1097 = vmatpush1.bf16.msra.mxu0 %v906
        %1098 = vmatprep.subr.bf16.mxu0 %v915
        %1099 = vmatpush1.bf16.msra.mxu0 %v914
        %1100 = vmatprep.subr.bf16.mxu0 %v923
        %1101 = vmatpush1.bf16.msra.mxu0 %v922
        %1102 = vmatprep.subr.bf16.mxu0 %v931
        %1103 = vmatpush1.bf16.msra.mxu0 %v930
        %1104 = vmatprep.subr.bf16.mxu0 %v939
        %1105 = vmatpush1.bf16.msra.mxu0 %v938
        %1106 = vmatprep.mubr.bf16.mxu0 %v303
        %1107 = vmatmul.mubr.bf16.gmra.mrb[0].mxu0 %v302
        %v1108 = vpop.f32.mrb[0].mxu0
        %v1109 = vadd.f32 0.0, %v1108
        %v1110 = vpop.f32.mrb[0].mxu0
        %v1111 = vadd.f32 0.0, %v1110
        %v1112 = vpop.f32.mrb[0].mxu0
        %v1113 = vpop.f32.mrb[0].mxu0
        %1114 = vdwg.mxu0
        %1115 = vmatprep.subr.bf16.mxu0 %v821
        %1116 = vmatpush1.bf16.msra.mxu0 %v820
        %1117 = vmatprep.subr.bf16.mxu0 %v829
        %1118 = vmatpush1.bf16.msra.mxu0 %v828
        %1119 = vmatprep.subr.bf16.mxu0 %v837
        %1120 = vmatpush1.bf16.msra.mxu0 %v836
        %1121 = vmatprep.subr.bf16.mxu0 %v845
        %1122 = vmatpush1.bf16.msra.mxu0 %v844
        %1123 = vmatprep.subr.bf16.mxu0 %v853
        %1124 = vmatpush1.bf16.msra.mxu0 %v852
        %1125 = vmatprep.subr.bf16.mxu0 %v861
        %1126 = vmatpush1.bf16.msra.mxu0 %v860
        %1127 = vmatprep.subr.bf16.mxu0 %v869
        %1128 = vmatpush1.bf16.msra.mxu0 %v868
        %1129 = vmatprep.subr.bf16.mxu0 %v877
        %1130 = vmatpush1.bf16.msra.mxu0 %v876
        %1131 = vmatprep.subr.bf16.mxu0 %v885
        %1132 = vmatpush1.bf16.msra.mxu0 %v884
        %1133 = vmatprep.subr.bf16.mxu0 %v893
        %1134 = vmatpush1.bf16.msra.mxu0 %v892
        %1135 = vmatprep.subr.bf16.mxu0 %v901
        %1136 = vmatpush1.bf16.msra.mxu0 %v900
        %1137 = vmatprep.subr.bf16.mxu0 %v909
        %1138 = vmatpush1.bf16.msra.mxu0 %v908
        %1139 = vmatprep.subr.bf16.mxu0 %v917
        %1140 = vmatpush1.bf16.msra.mxu0 %v916
        %1141 = vmatprep.subr.bf16.mxu0 %v925
        %1142 = vmatpush1.bf16.msra.mxu0 %v924
        %1143 = vmatprep.subr.bf16.mxu0 %v933
        %1144 = vmatpush1.bf16.msra.mxu0 %v932
        %1145 = vmatprep.subr.bf16.mxu0 %v941
        %1146 = vmatpush1.bf16.msra.mxu0 %v940
        %1147 = vmatprep.mubr.bf16.mxu0 %v303
        %1148 = vmatmul.mubr.bf16.gmra.mrb[0].mxu0 %v302
        %v1149 = vpop.f32.mrb[0].mxu0
        %v1150 = vadd.f32 0.0, %v1149
        %v1151 = vpop.f32.mrb[0].mxu0
        %v1152 = vadd.f32 0.0, %v1151
        %v1153 = vpop.f32.mrb[0].mxu0
        %v1154 = vpop.f32.mrb[0].mxu0
        %1155 = vdwg.mxu0
        %1156 = vmatprep.subr.bf16.mxu0 %v823
        %1157 = vmatpush1.bf16.msra.mxu0 %v822
        %1158 = vmatprep.subr.bf16.mxu0 %v831
        %1159 = vmatpush1.bf16.msra.mxu0 %v830
        %1160 = vmatprep.subr.bf16.mxu0 %v839
        %1161 = vmatpush1.bf16.msra.mxu0 %v838
        %1162 = vmatprep.subr.bf16.mxu0 %v847
        %1163 = vmatpush1.bf16.msra.mxu0 %v846
        %1164 = vmatprep.subr.bf16.mxu0 %v855
        %1165 = vmatpush1.bf16.msra.mxu0 %v854
        %1166 = vmatprep.subr.bf16.mxu0 %v863
        %1167 = vmatpush1.bf16.msra.mxu0 %v862
        %1168 = vmatprep.subr.bf16.mxu0 %v871
        %1169 = vmatpush1.bf16.msra.mxu0 %v870
        %1170 = vmatprep.subr.bf16.mxu0 %v879
        %1171 = vmatpush1.bf16.msra.mxu0 %v878
        %1172 = vmatprep.subr.bf16.mxu0 %v887
        %1173 = vmatpush1.bf16.msra.mxu0 %v886
        %1174 = vmatprep.subr.bf16.mxu0 %v895
        %1175 = vmatpush1.bf16.msra.mxu0 %v894
        %1176 = vmatprep.subr.bf16.mxu0 %v903
        %1177 = vmatpush1.bf16.msra.mxu0 %v902
        %1178 = vmatprep.subr.bf16.mxu0 %v911
        %1179 = vmatpush1.bf16.msra.mxu0 %v910
        %1180 = vmatprep.subr.bf16.mxu0 %v919
        %1181 = vmatpush1.bf16.msra.mxu0 %v918
        %1182 = vmatprep.subr.bf16.mxu0 %v927
        %1183 = vmatpush1.bf16.msra.mxu0 %v926
        %1184 = vmatprep.subr.bf16.mxu0 %v935
        %1185 = vmatpush1.bf16.msra.mxu0 %v934
        %1186 = vmatprep.subr.bf16.mxu0 %v943
        %1187 = vmatpush1.bf16.msra.mxu0 %v942
        %1188 = vmatprep.mubr.bf16.mxu0 %v303
        %1189 = vmatmul.mubr.bf16.gmra.mrb[0].mxu0 %v302
        %v1190 = vpop.f32.mrb[0].mxu0
        %v1191 = vadd.f32 0.0, %v1190
        %v1192 = vpop.f32.mrb[0].mxu0
        %v1193 = vadd.f32 0.0, %v1192
        %v1194 = vpop.f32.mrb[0].mxu0
        %v1195 = vpop.f32.mrb[0].mxu0
        %1196 = vdwg.mxu0
        %1197 = vmatprep.subr.bf16.mxu0 %v825
        %1198 = vmatpush1.bf16.msra.mxu0 %v824
        %1199 = vmatprep.subr.bf16.mxu0 %v833
        %1200 = vmatpush1.bf16.msra.mxu0 %v832
        %1201 = vmatprep.subr.bf16.mxu0 %v841
        %1202 = vmatpush1.bf16.msra.mxu0 %v840
        %1203 = vmatprep.subr.bf16.mxu0 %v849
        %1204 = vmatpush1.bf16.msra.mxu0 %v848
        %1205 = vmatprep.subr.bf16.mxu0 %v857
        %1206 = vmatpush1.bf16.msra.mxu0 %v856
        %1207 = vmatprep.subr.bf16.mxu0 %v865
        %1208 = vmatpush1.bf16.msra.mxu0 %v864
        %1209 = vmatprep.subr.bf16.mxu0 %v873
        %1210 = vmatpush1.bf16.msra.mxu0 %v872
        %1211 = vmatprep.subr.bf16.mxu0 %v881
        %1212 = vmatpush1.bf16.msra.mxu0 %v880
        %1213 = vmatprep.subr.bf16.mxu0 %v889
        %1214 = vmatpush1.bf16.msra.mxu0 %v888
        %1215 = vmatprep.subr.bf16.mxu0 %v897
        %1216 = vmatpush1.bf16.msra.mxu0 %v896
        %1217 = vmatprep.subr.bf16.mxu0 %v905
        %1218 = vmatpush1.bf16.msra.mxu0 %v904
        %1219 = vmatprep.subr.bf16.mxu0 %v913
        %1220 = vmatpush1.bf16.msra.mxu0 %v912
        %1221 = vmatprep.subr.bf16.mxu0 %v921
        %1222 = vmatpush1.bf16.msra.mxu0 %v920
        %1223 = vmatprep.subr.bf16.mxu0 %v929
        %1224 = vmatpush1.bf16.msra.mxu0 %v928
        %1225 = vmatprep.subr.bf16.mxu0 %v937
        %1226 = vmatpush1.bf16.msra.mxu0 %v936
        %1227 = vmatprep.subr.bf16.mxu0 %v945
        %1228 = vmatpush1.bf16.msra.mxu0 %v944
        %1229 = vmatprep.mubr.bf16.mxu0 %v303
        %1230 = vmatmul.mubr.bf16.gmra.mrb[0].mxu0 %v302
        %v1231 = vpop.f32.mrb[0].mxu0
        %v1232 = vadd.f32 0.0, %v1231
        %v1233 = vpop.f32.mrb[0].mxu0
        %v1234 = vadd.f32 0.0, %v1233
        %v1235 = vpop.f32.mrb[0].mxu0
        %v1236 = vpop.f32.mrb[0].mxu0
        %1237 = vdwg.mxu0
        %s1238 = sld [smem:[#allocation9]]
        %v1239 = vstv %s1238
        %v1240 = vmul.f32 %v305, %v1239
        %v1241 = vmul.f32 %v1109, %v1240
        %v1242 = vmul.f32 %v1111, %v1240
        %v1243 = vmul.f32 %v1150, %v1240
        %v1244 = vmul.f32 %v1152, %v1240
        %s1245 = sld [smem:[#allocation9 + $0x1]]
        %v1246 = vstv %s1245
        %v1247 = vmul.f32 %v305, %v1246
        %v1248 = vmul.f32 %v1191, %v1247
        %v1249 = vmul.f32 %v1193, %v1247
        %v1250 = vmul.f32 %v1232, %v1247
        %v1251 = vmul.f32 %v1234, %v1247
        %v1252 = vmax.f32 %v1241, 0.0
        %v1253 = vmax.f32 %v1242, 0.0
        %v1254 = vmax.f32 %v1243, 0.0
        %v1255 = vmax.f32 %v1244, 0.0
        %v1256 = vmul.f32 %v1252, %v1252
        %v1257 = vmul.f32 %v1253, %v1253
        %v1258 = vmul.f32 %v1254, %v1254
        %v1259 = vmul.f32 %v1255, %v1255
        %v1260 = vmul.f32 %v1256, %v1248
        %v1261 = vmul.f32 %v1257, %v1249
        %v1262 = vmul.f32 %v1258, %v1250
        %v1263 = vmul.f32 %v1259, %v1251
        %v1264 = vmul.f32 %v1260, %v1260
        %v1265 = vmul.f32 %v1261, %v1261
        %v1266 = vmul.f32 %v1262, %v1262
        %v1267 = vmul.f32 %v1263, %v1263
        %v1268 = vadd.f32 %v1264, %v1265
        %v1269 = vadd.f32 %v1268, %v1266
        %v1270 = vadd.f32 %v1269, %v1267
        %1271 = vadd.xlane.f32.xlu0 %v1270
        %v1272 = vpop.xlane.xlu0 %1271
        %v1273 = vrcp.pop 512.0
        %v1274 = vmul.f32 %v1272, %v1273
        %v1275 = vadd.f32 %v1274, 1e-06
        %v1276 = vrsqrt.pop %v1275
        %v1277 = vmul.f32 %v1260, %v1276
        %v1278 = vmul.f32 %v1261, %v1276
        %v1279 = vmul.f32 %v1262, %v1276
        %v1280 = vmul.f32 %v1263, %v1276
        %v1281 = vld [vmem:[%s3] sm:$0xf]
        %v1283 = vlaneseq
        %v1284 = vshrl.u32 %v1283, 7
        %v1285 = vsub.s32 0, %v1284
        %v1286 = vrot.slane %v1281, %v1285
        %v1287 = vlaneseq
        %v1288 = vshrl.u32 %v1287, 7
        %v1289 = vsub.s32 1, %v1288
        %v1290 = vrot.slane %v1281, %v1289
        %v1291 = vlaneseq
        %v1292 = vshrl.u32 %v1291, 7
        %v1293 = vsub.s32 2, %v1292
        %v1294 = vrot.slane %v1281, %v1293
        %v1295 = vlaneseq
        %v1296 = vshrl.u32 %v1295, 7
        %v1297 = vsub.s32 3, %v1296
        %v1298 = vrot.slane %v1281, %v1297
        %v1303 = vmul.f32 %v1286, %v1277
        %v1304 = vmul.f32 %v1290, %v1278
        %v1305 = vmul.f32 %v1294, %v1279
        %v1306 = vmul.f32 %v1298, %v1280
        %v1307 = vand.u32 2147483647, %v1303
        %v1308 = vand.u32 2147483647, %v1304
        %v1309 = vand.u32 2147483647, %v1305
        %v1310 = vand.u32 2147483647, %v1306
        %v1311 = vmax.f32 %v1307, %v1308
        %v1312 = vmax.f32 %v1309, %v1310
        %v1313 = vmax.f32 %v1311, %v1312
        %1314 = vmax.xlane.f32.xlu0 %v1313
        %v1315 = vpop.xlane.xlu0 %1314
        %v1316 = vmax.f32 %v1315, 1e-05
        %v1317 = vrcp.pop %v1316
        %v1318 = vmul.f32 127.0, %v1317
        %v1319 = vmul.f32 %v1303, %v1318
        %v1320 = vmul.f32 %v1304, %v1318
        %v1321 = vmul.f32 %v1305, %v1318
        %v1322 = vmul.f32 %v1306, %v1318
        %v1323 = vround.ne.pseudo %v1319
        %v1324 = vround.ne.pseudo %v1320
        %v1325 = vround.ne.pseudo %v1321
        %v1326 = vround.ne.pseudo %v1322
        %v1327 = vmax.f32 %v1323, -128.0
        %v1328 = vmax.f32 %v1324, -128.0
        %v1329 = vmax.f32 %v1325, -128.0
        %v1330 = vmax.f32 %v1326, -128.0
        %v1331 = vmin.f32 %v1327, 127.0
        %v1332 = vmin.f32 %v1328, 127.0
        %v1333 = vmin.f32 %v1329, 127.0
        %v1334 = vmin.f32 %v1330, 127.0
        %v1335 = vpack.c.bf16 %v1331, %v1331
        %v1336 = vpack.c.bf16 %v1332, %v1332
        %v1337 = vpack.c.bf16 %v1333, %v1333
        %v1338 = vpack.c.bf16 %v1334, %v1334
        %v1339 = vrcp.pop %v1318
        %v1340 = vmul.f32 1.0, %v1339
        %v1341 = vld [vmem:[#allocation8] sm:$0xff]
        %v1342 = vld [vmem:[#allocation8 + $0x8] sm:$0xff]
        %v1343 = vld [vmem:[#allocation8 + $0x10] sm:$0xff]
        %v1344 = vld [vmem:[#allocation8 + $0x18] sm:$0xff]
        %v1345 = vld [vmem:[#allocation8 + $0x20] sm:$0xff]
        %v1346 = vld [vmem:[#allocation8 + $0x28] sm:$0xff]
        %v1347 = vld [vmem:[#allocation8 + $0x30] sm:$0xff]
        %v1348 = vld [vmem:[#allocation8 + $0x38] sm:$0xff]
        %v1349 = vld [vmem:[#allocation8 + $0x40] sm:$0xff]
        %v1350 = vld [vmem:[#allocation8 + $0x48] sm:$0xff]
        %v1351 = vld [vmem:[#allocation8 + $0x50] sm:$0xff]
        %v1352 = vld [vmem:[#allocation8 + $0x58] sm:$0xff]
        %v1353 = vld [vmem:[#allocation8 + $0x60] sm:$0xff]
        %v1354 = vld [vmem:[#allocation8 + $0x68] sm:$0xff]
        %v1355 = vld [vmem:[#allocation8 + $0x70] sm:$0xff]
        %v1356 = vld [vmem:[#allocation8 + $0x78] sm:$0xff]
        %v1357 = vld [vmem:[#allocation8 + $0x80] sm:$0xff]
        %v1358 = vld [vmem:[#allocation8 + $0x88] sm:$0xff]
        %v1359 = vld [vmem:[#allocation8 + $0x90] sm:$0xff]
        %v1360 = vld [vmem:[#allocation8 + $0x98] sm:$0xff]
        %v1361 = vld [vmem:[#allocation8 + $0xa0] sm:$0xff]
        %v1362 = vld [vmem:[#allocation8 + $0xa8] sm:$0xff]
        %v1363 = vld [vmem:[#allocation8 + $0xb0] sm:$0xff]
        %v1364 = vld [vmem:[#allocation8 + $0xb8] sm:$0xff]
        %v1365 = vld [vmem:[#allocation8 + $0xc0] sm:$0xff]
        %v1366 = vld [vmem:[#allocation8 + $0xc8] sm:$0xff]
        %v1367 = vld [vmem:[#allocation8 + $0xd0] sm:$0xff]
        %v1368 = vld [vmem:[#allocation8 + $0xd8] sm:$0xff]
        %v1369 = vld [vmem:[#allocation8 + $0xe0] sm:$0xff]
        %v1370 = vld [vmem:[#allocation8 + $0xe8] sm:$0xff]
        %v1371 = vld [vmem:[#allocation8 + $0xf0] sm:$0xff]
        %v1372 = vld [vmem:[#allocation8 + $0xf8] sm:$0xff]
        %v1373 = vld [vmem:[#allocation8 + $0x100] sm:$0xff]
        %v1374 = vld [vmem:[#allocation8 + $0x108] sm:$0xff]
        %v1375 = vld [vmem:[#allocation8 + $0x110] sm:$0xff]
        %v1376 = vld [vmem:[#allocation8 + $0x118] sm:$0xff]
        %v1377 = vld [vmem:[#allocation8 + $0x120] sm:$0xff]
        %v1378 = vld [vmem:[#allocation8 + $0x128] sm:$0xff]
        %v1379 = vld [vmem:[#allocation8 + $0x130] sm:$0xff]
        %v1380 = vld [vmem:[#allocation8 + $0x138] sm:$0xff]
        %v1381 = vld [vmem:[#allocation8 + $0x140] sm:$0xff]
        %v1382 = vld [vmem:[#allocation8 + $0x148] sm:$0xff]
        %v1383 = vld [vmem:[#allocation8 + $0x150] sm:$0xff]
        %v1384 = vld [vmem:[#allocation8 + $0x158] sm:$0xff]
        %v1385 = vld [vmem:[#allocation8 + $0x160] sm:$0xff]
        %v1386 = vld [vmem:[#allocation8 + $0x168] sm:$0xff]
        %v1387 = vld [vmem:[#allocation8 + $0x170] sm:$0xff]
        %v1388 = vld [vmem:[#allocation8 + $0x178] sm:$0xff]
        %v1389 = vld [vmem:[#allocation8 + $0x180] sm:$0xff]
        %v1390 = vld [vmem:[#allocation8 + $0x188] sm:$0xff]
        %v1391 = vld [vmem:[#allocation8 + $0x190] sm:$0xff]
        %v1392 = vld [vmem:[#allocation8 + $0x198] sm:$0xff]
        %v1393 = vld [vmem:[#allocation8 + $0x1a0] sm:$0xff]
        %v1394 = vld [vmem:[#allocation8 + $0x1a8] sm:$0xff]
        %v1395 = vld [vmem:[#allocation8 + $0x1b0] sm:$0xff]
        %v1396 = vld [vmem:[#allocation8 + $0x1b8] sm:$0xff]
        %v1397 = vld [vmem:[#allocation8 + $0x1c0] sm:$0xff]
        %v1398 = vld [vmem:[#allocation8 + $0x1c8] sm:$0xff]
        %v1399 = vld [vmem:[#allocation8 + $0x1d0] sm:$0xff]
        %v1400 = vld [vmem:[#allocation8 + $0x1d8] sm:$0xff]
        %v1401 = vld [vmem:[#allocation8 + $0x1e0] sm:$0xff]
        %v1402 = vld [vmem:[#allocation8 + $0x1e8] sm:$0xff]
        %v1403 = vld [vmem:[#allocation8 + $0x1f0] sm:$0xff]
        %v1404 = vld [vmem:[#allocation8 + $0x1f8] sm:$0xff]
        %v1469 = vunpack.c.l.b16 %v1341
        %v1470 = vunpack.c.h.b16 %v1341
        %v1471 = vunpack.c.l.b16 %v1342
        %v1472 = vunpack.c.h.b16 %v1342
        %v1473 = vunpack.c.l.b16 %v1343
        %v1474 = vunpack.c.h.b16 %v1343
        %v1475 = vunpack.c.l.b16 %v1344
        %v1476 = vunpack.c.h.b16 %v1344
        %v1477 = vunpack.c.l.b16 %v1345
        %v1478 = vunpack.c.h.b16 %v1345
        %v1479 = vunpack.c.l.b16 %v1346
        %v1480 = vunpack.c.h.b16 %v1346
        %v1481 = vunpack.c.l.b16 %v1347
        %v1482 = vunpack.c.h.b16 %v1347
        %v1483 = vunpack.c.l.b16 %v1348
        %v1484 = vunpack.c.h.b16 %v1348
        %v1485 = vunpack.c.l.b16 %v1349
        %v1486 = vunpack.c.h.b16 %v1349
        %v1487 = vunpack.c.l.b16 %v1350
        %v1488 = vunpack.c.h.b16 %v1350
        %v1489 = vunpack.c.l.b16 %v1351
        %v1490 = vunpack.c.h.b16 %v1351
        %v1491 = vunpack.c.l.b16 %v1352
        %v1492 = vunpack.c.h.b16 %v1352
        %v1493 = vunpack.c.l.b16 %v1353
        %v1494 = vunpack.c.h.b16 %v1353
        %v1495 = vunpack.c.l.b16 %v1354
        %v1496 = vunpack.c.h.b16 %v1354
        %v1497 = vunpack.c.l.b16 %v1355
        %v1498 = vunpack.c.h.b16 %v1355
        %v1499 = vunpack.c.l.b16 %v1356
        %v1500 = vunpack.c.h.b16 %v1356
        %v1501 = vunpack.c.l.b16 %v1357
        %v1502 = vunpack.c.h.b16 %v1357
        %v1503 = vunpack.c.l.b16 %v1358
        %v1504 = vunpack.c.h.b16 %v1358
        %v1505 = vunpack.c.l.b16 %v1359
        %v1506 = vunpack.c.h.b16 %v1359
        %v1507 = vunpack.c.l.b16 %v1360
        %v1508 = vunpack.c.h.b16 %v1360
        %v1509 = vunpack.c.l.b16 %v1361
        %v1510 = vunpack.c.h.b16 %v1361
        %v1511 = vunpack.c.l.b16 %v1362
        %v1512 = vunpack.c.h.b16 %v1362
        %v1513 = vunpack.c.l.b16 %v1363
        %v1514 = vunpack.c.h.b16 %v1363
        %v1515 = vunpack.c.l.b16 %v1364
        %v1516 = vunpack.c.h.b16 %v1364
        %v1517 = vunpack.c.l.b16 %v1365
        %v1518 = vunpack.c.h.b16 %v1365
        %v1519 = vunpack.c.l.b16 %v1366
        %v1520 = vunpack.c.h.b16 %v1366
        %v1521 = vunpack.c.l.b16 %v1367
        %v1522 = vunpack.c.h.b16 %v1367
        %v1523 = vunpack.c.l.b16 %v1368
        %v1524 = vunpack.c.h.b16 %v1368
        %v1525 = vunpack.c.l.b16 %v1369
        %v1526 = vunpack.c.h.b16 %v1369
        %v1527 = vunpack.c.l.b16 %v1370
        %v1528 = vunpack.c.h.b16 %v1370
        %v1529 = vunpack.c.l.b16 %v1371
        %v1530 = vunpack.c.h.b16 %v1371
        %v1531 = vunpack.c.l.b16 %v1372
        %v1532 = vunpack.c.h.b16 %v1372
        %v1533 = vunpack.c.l.b16 %v1373
        %v1534 = vunpack.c.h.b16 %v1373
        %v1535 = vunpack.c.l.b16 %v1374
        %v1536 = vunpack.c.h.b16 %v1374
        %v1537 = vunpack.c.l.b16 %v1375
        %v1538 = vunpack.c.h.b16 %v1375
        %v1539 = vunpack.c.l.b16 %v1376
        %v1540 = vunpack.c.h.b16 %v1376
        %v1541 = vunpack.c.l.b16 %v1377
        %v1542 = vunpack.c.h.b16 %v1377
        %v1543 = vunpack.c.l.b16 %v1378
        %v1544 = vunpack.c.h.b16 %v1378
        %v1545 = vunpack.c.l.b16 %v1379
        %v1546 = vunpack.c.h.b16 %v1379
        %v1547 = vunpack.c.l.b16 %v1380
        %v1548 = vunpack.c.h.b16 %v1380
        %v1549 = vunpack.c.l.b16 %v1381
        %v1550 = vunpack.c.h.b16 %v1381
        %v1551 = vunpack.c.l.b16 %v1382
        %v1552 = vunpack.c.h.b16 %v1382
        %v1553 = vunpack.c.l.b16 %v1383
        %v1554 = vunpack.c.h.b16 %v1383
        %v1555 = vunpack.c.l.b16 %v1384
        %v1556 = vunpack.c.h.b16 %v1384
        %v1557 = vunpack.c.l.b16 %v1385
        %v1558 = vunpack.c.h.b16 %v1385
        %v1559 = vunpack.c.l.b16 %v1386
        %v1560 = vunpack.c.h.b16 %v1386
        %v1561 = vunpack.c.l.b16 %v1387
        %v1562 = vunpack.c.h.b16 %v1387
        %v1563 = vunpack.c.l.b16 %v1388
        %v1564 = vunpack.c.h.b16 %v1388
        %v1565 = vunpack.c.l.b16 %v1389
        %v1566 = vunpack.c.h.b16 %v1389
        %v1567 = vunpack.c.l.b16 %v1390
        %v1568 = vunpack.c.h.b16 %v1390
        %v1569 = vunpack.c.l.b16 %v1391
        %v1570 = vunpack.c.h.b16 %v1391
        %v1571 = vunpack.c.l.b16 %v1392
        %v1572 = vunpack.c.h.b16 %v1392
        %v1573 = vunpack.c.l.b16 %v1393
        %v1574 = vunpack.c.h.b16 %v1393
        %v1575 = vunpack.c.l.b16 %v1394
        %v1576 = vunpack.c.h.b16 %v1394
        %v1577 = vunpack.c.l.b16 %v1395
        %v1578 = vunpack.c.h.b16 %v1395
        %v1579 = vunpack.c.l.b16 %v1396
        %v1580 = vunpack.c.h.b16 %v1396
        %v1581 = vunpack.c.l.b16 %v1397
        %v1582 = vunpack.c.h.b16 %v1397
        %v1583 = vunpack.c.l.b16 %v1398
        %v1584 = vunpack.c.h.b16 %v1398
        %v1585 = vunpack.c.l.b16 %v1399
        %v1586 = vunpack.c.h.b16 %v1399
        %v1587 = vunpack.c.l.b16 %v1400
        %v1588 = vunpack.c.h.b16 %v1400
        %v1589 = vunpack.c.l.b16 %v1401
        %v1590 = vunpack.c.h.b16 %v1401
        %v1591 = vunpack.c.l.b16 %v1402
        %v1592 = vunpack.c.h.b16 %v1402
        %v1593 = vunpack.c.l.b16 %v1403
        %v1594 = vunpack.c.h.b16 %v1403
        %v1595 = vunpack.c.l.b16 %v1404
        %v1596 = vunpack.c.h.b16 %v1404
        %v1597 = vpack.c.b16 %v1471, %v1469
        %v1598 = vpack.c.b16 %v1472, %v1470
        %v1599 = vpack.c.b16 %v1475, %v1473
        %v1600 = vpack.c.b16 %v1476, %v1474
        %v1601 = vpack.c.b16 %v1479, %v1477
        %v1602 = vpack.c.b16 %v1480, %v1478
        %v1603 = vpack.c.b16 %v1483, %v1481
        %v1604 = vpack.c.b16 %v1484, %v1482
        %v1605 = vpack.c.b16 %v1487, %v1485
        %v1606 = vpack.c.b16 %v1488, %v1486
        %v1607 = vpack.c.b16 %v1491, %v1489
        %v1608 = vpack.c.b16 %v1492, %v1490
        %v1609 = vpack.c.b16 %v1495, %v1493
        %v1610 = vpack.c.b16 %v1496, %v1494
        %v1611 = vpack.c.b16 %v1499, %v1497
        %v1612 = vpack.c.b16 %v1500, %v1498
        %v1613 = vpack.c.b16 %v1503, %v1501
        %v1614 = vpack.c.b16 %v1504, %v1502
        %v1615 = vpack.c.b16 %v1507, %v1505
        %v1616 = vpack.c.b16 %v1508, %v1506
        %v1617 = vpack.c.b16 %v1511, %v1509
        %v1618 = vpack.c.b16 %v1512, %v1510
        %v1619 = vpack.c.b16 %v1515, %v1513
        %v1620 = vpack.c.b16 %v1516, %v1514
        %v1621 = vpack.c.b16 %v1519, %v1517
        %v1622 = vpack.c.b16 %v1520, %v1518
        %v1623 = vpack.c.b16 %v1523, %v1521
        %v1624 = vpack.c.b16 %v1524, %v1522
        %v1625 = vpack.c.b16 %v1527, %v1525
        %v1626 = vpack.c.b16 %v1528, %v1526
        %v1627 = vpack.c.b16 %v1531, %v1529
        %v1628 = vpack.c.b16 %v1532, %v1530
        %v1629 = vpack.c.b16 %v1535, %v1533
        %v1630 = vpack.c.b16 %v1536, %v1534
        %v1631 = vpack.c.b16 %v1539, %v1537
        %v1632 = vpack.c.b16 %v1540, %v1538
        %v1633 = vpack.c.b16 %v1543, %v1541
        %v1634 = vpack.c.b16 %v1544, %v1542
        %v1635 = vpack.c.b16 %v1547, %v1545
        %v1636 = vpack.c.b16 %v1548, %v1546
        %v1637 = vpack.c.b16 %v1551, %v1549
        %v1638 = vpack.c.b16 %v1552, %v1550
        %v1639 = vpack.c.b16 %v1555, %v1553
        %v1640 = vpack.c.b16 %v1556, %v1554
        %v1641 = vpack.c.b16 %v1559, %v1557
        %v1642 = vpack.c.b16 %v1560, %v1558
        %v1643 = vpack.c.b16 %v1563, %v1561
        %v1644 = vpack.c.b16 %v1564, %v1562
        %v1645 = vpack.c.b16 %v1567, %v1565
        %v1646 = vpack.c.b16 %v1568, %v1566
        %v1647 = vpack.c.b16 %v1571, %v1569
        %v1648 = vpack.c.b16 %v1572, %v1570
        %v1649 = vpack.c.b16 %v1575, %v1573
        %v1650 = vpack.c.b16 %v1576, %v1574
        %v1651 = vpack.c.b16 %v1579, %v1577
        %v1652 = vpack.c.b16 %v1580, %v1578
        %v1653 = vpack.c.b16 %v1583, %v1581
        %v1654 = vpack.c.b16 %v1584, %v1582
        %v1655 = vpack.c.b16 %v1587, %v1585
        %v1656 = vpack.c.b16 %v1588, %v1586
        %v1657 = vpack.c.b16 %v1591, %v1589
        %v1658 = vpack.c.b16 %v1592, %v1590
        %v1659 = vpack.c.b16 %v1595, %v1593
        %v1660 = vpack.c.b16 %v1596, %v1594
        %1725 = vmatprep.subr.bf16.mxu0 %v1598
        %1726 = vmatpush1.bf16.msra.mxu0 %v1597
        %1727 = vmatprep.subr.bf16.mxu0 %v1600
        %1728 = vmatpush1.bf16.msra.mxu0 %v1599
        %1729 = vmatprep.subr.bf16.mxu0 %v1602
        %1730 = vmatpush1.bf16.msra.mxu0 %v1601
        %1731 = vmatprep.subr.bf16.mxu0 %v1604
        %1732 = vmatpush1.bf16.msra.mxu0 %v1603
        %1733 = vmatprep.subr.bf16.mxu0 %v1606
        %1734 = vmatpush1.bf16.msra.mxu0 %v1605
        %1735 = vmatprep.subr.bf16.mxu0 %v1608
        %1736 = vmatpush1.bf16.msra.mxu0 %v1607
        %1737 = vmatprep.subr.bf16.mxu0 %v1610
        %1738 = vmatpush1.bf16.msra.mxu0 %v1609
        %1739 = vmatprep.subr.bf16.mxu0 %v1612
        %1740 = vmatpush1.bf16.msra.mxu0 %v1611
        %1741 = vmatprep.subr.bf16.mxu0 %v1614
        %1742 = vmatpush1.bf16.msra.mxu0 %v1613
        %1743 = vmatprep.subr.bf16.mxu0 %v1616
        %1744 = vmatpush1.bf16.msra.mxu0 %v1615
        %1745 = vmatprep.subr.bf16.mxu0 %v1618
        %1746 = vmatpush1.bf16.msra.mxu0 %v1617
        %1747 = vmatprep.subr.bf16.mxu0 %v1620
        %1748 = vmatpush1.bf16.msra.mxu0 %v1619
        %1749 = vmatprep.subr.bf16.mxu0 %v1622
        %1750 = vmatpush1.bf16.msra.mxu0 %v1621
        %1751 = vmatprep.subr.bf16.mxu0 %v1624
        %1752 = vmatpush1.bf16.msra.mxu0 %v1623
        %1753 = vmatprep.subr.bf16.mxu0 %v1626
        %1754 = vmatpush1.bf16.msra.mxu0 %v1625
        %1755 = vmatprep.subr.bf16.mxu0 %v1628
        %1756 = vmatpush1.bf16.msra.mxu0 %v1627
        %1757 = vmatprep.mubr.bf16.mxu0 %v1336
        %1758 = vmatmul.mubr.bf16.gmra.mrb[0].mxu0 %v1335
        %v1759 = vpop.f32.mrb[0].mxu0
        %v1760 = vadd.f32 0.0, %v1759
        %v1761 = vpop.f32.mrb[0].mxu0
        %v1762 = vadd.f32 0.0, %v1761
        %v1763 = vpop.f32.mrb[0].mxu0
        %v1764 = vpop.f32.mrb[0].mxu0
        %1765 = vdwg.mxu0
        %1766 = vmatprep.subr.bf16.mxu0 %v1630
        %1767 = vmatpush1.bf16.msra.mxu0 %v1629
        %1768 = vmatprep.subr.bf16.mxu0 %v1632
        %1769 = vmatpush1.bf16.msra.mxu0 %v1631
        %1770 = vmatprep.subr.bf16.mxu0 %v1634
        %1771 = vmatpush1.bf16.msra.mxu0 %v1633
        %1772 = vmatprep.subr.bf16.mxu0 %v1636
        %1773 = vmatpush1.bf16.msra.mxu0 %v1635
        %1774 = vmatprep.subr.bf16.mxu0 %v1638
        %1775 = vmatpush1.bf16.msra.mxu0 %v1637
        %1776 = vmatprep.subr.bf16.mxu0 %v1640
        %1777 = vmatpush1.bf16.msra.mxu0 %v1639
        %1778 = vmatprep.subr.bf16.mxu0 %v1642
        %1779 = vmatpush1.bf16.msra.mxu0 %v1641
        %1780 = vmatprep.subr.bf16.mxu0 %v1644
        %1781 = vmatpush1.bf16.msra.mxu0 %v1643
        %1782 = vmatprep.subr.bf16.mxu0 %v1646
        %1783 = vmatpush1.bf16.msra.mxu0 %v1645
        %1784 = vmatprep.subr.bf16.mxu0 %v1648
        %1785 = vmatpush1.bf16.msra.mxu0 %v1647
        %1786 = vmatprep.subr.bf16.mxu0 %v1650
        %1787 = vmatpush1.bf16.msra.mxu0 %v1649
        %1788 = vmatprep.subr.bf16.mxu0 %v1652
        %1789 = vmatpush1.bf16.msra.mxu0 %v1651
        %1790 = vmatprep.subr.bf16.mxu0 %v1654
        %1791 = vmatpush1.bf16.msra.mxu0 %v1653
        %1792 = vmatprep.subr.bf16.mxu0 %v1656
        %1793 = vmatpush1.bf16.msra.mxu0 %v1655
        %1794 = vmatprep.subr.bf16.mxu0 %v1658
        %1795 = vmatpush1.bf16.msra.mxu0 %v1657
        %1796 = vmatprep.subr.bf16.mxu0 %v1660
        %1797 = vmatpush1.bf16.msra.mxu0 %v1659
        %1798 = vmatprep.mubr.bf16.mxu0 %v1338
        %1799 = vmatmul.mubr.bf16.gmra.mrb[0].mxu0 %v1337
        %v1800 = vpop.f32.mrb[0].mxu0
        %v1801 = vadd.f32 %v1760, %v1800
        %v1802 = vpop.f32.mrb[0].mxu0
        %v1803 = vadd.f32 %v1762, %v1802
        %v1804 = vpop.f32.mrb[0].mxu0
        %v1805 = vpop.f32.mrb[0].mxu0
        %1806 = vdwg.mxu0
        %s1807 = sld [smem:[#allocation9 + $0x2]]
        %v1808 = vstv %s1807
        %v1809 = vmul.f32 %v1340, %v1808
        %v1810 = vmul.f32 %v1801, %v1809
        %v1811 = vmul.f32 %v1803, %v1809
        %1812 = vst [vmem:[%s283] sm:$0xff] %v1810
        %1813 = vst [vmem:[%s283 + $0x8] sm:$0xff] %v1811
        %s1814 = sand.u32 %s142, 1
        %s1815 = scalar_lea.sflag [#allocation4], %s1814
        %s1816 = sand.u32 %s142, 1
        %s1817 = smul.addr %s1816, 16
        %s1818 = scalar_lea.vmem [#allocation10], %s1817
        // Predicated region
        $region57: #{tpu_custom_call.1} parent=39 // pred_check
          %p1819 = pneg %p152
        $region58: #{tpu_custom_call.1} parent=39 // pred_check_branch
          %1821 = sbr.rel (%p1819) target = $region60
        $region59: #{tpu_custom_call.1} parent=39 // pred_region
          %s1823 = ssub.s32 256, 256
          %1824 = vsyncadd %s1815, %s1823
          %s1825 = smul.addr %s24, 2
          %s1826 = smul.addr %s1825, 128
          %s1827 = scalar_lea.hbm %s5, %s1826
          %s1829 = sshll.u32 %s1818, 4
          %s1830 = int_to_ptr.vmem [resolvable:$true] %s1829
          %1832 = dma.vmem_to_hbm [thread:$0]  %s1830, 256, %s1827, %s1815
        $region60: #{tpu_custom_call.1} parent=39 // pred_fallthru
          _
      $region40: #{tpu_custom_call.1} parent=5 // pred_fallthru
        _
      %p1833 = scmp.le.s32.totalorder 2, %s19
      // Predicated region
      $region61: #{tpu_custom_call.1} parent=5 // pred_check
        %p1834 = pneg %p1833
      $region62: #{tpu_custom_call.1} parent=5 // pred_check_branch
        %1836 = sbr.rel (%p1834) target = $region64
      $region63: #{tpu_custom_call.1} parent=5 // pred_region
        %s1837 = ssub.s32 %s19, 2
        // Predicated region
        $region65: #{tpu_custom_call.1} parent=63 // pred_check
          %p1838 = pneg %p158
        $region66: #{tpu_custom_call.1} parent=63 // pred_check_branch
          %1840 = sbr.rel (%p1838) target = $region68
        $region67: #{tpu_custom_call.1} parent=63 // pred_region
          %s1841 = sand.u32 %s143, 1
          %s1842 = scalar_lea.sflag [#allocation4], %s1841
          %s1843 = sand.u32 %s143, 1
          %s1844 = smul.addr %s1843, 16
          %s1845 = scalar_lea.vmem [#allocation10], %s1844
          %1846 = dma.done %s1842, 256
        $region68: #{tpu_custom_call.1} parent=63 // pred_fallthru
          _
      $region64: #{tpu_custom_call.1} parent=5 // pred_fallthru
        _
    $region6: #{tpu_custom_call.1} parent=1 // loop_footer
      %s23 = sadd.s32 1, %s19
    $region7: #{tpu_custom_call.1} parent=1 // loop_footer_branch
      %18 = sbr.rel target = $region3
    $region8: #{tpu_custom_call.1} parent=1 // loop_exit
      _
    %1847 = vsyncpa [#allocation3], 1
    %s1848 = scalar_lea.sflag [#allocation3], 1
    %1849 = vsyncpa %s1848, 1
    %1850 = vsyncpa [#allocation7], 1
    %1851 = vsyncpa [#allocation4], 1
    %s1852 = scalar_lea.sflag [#allocation4], 1
    %1853 = vsyncpa %s1852, 1
    %1854 = vsyncpa [#allocation5], 1
    %s1855 = scalar_lea.sflag [#allocation5], 1
    %1856 = vsyncpa %s1855, 1

// kernel: tpu_custom_call.1
$region0: #{tpu_custom_call.1}
  #allocation0 [shape = 'u32[]', space=smem, size = 0x4, offset = 0x4, fixed_abs, tag = 'smem constant byte address 0x4 - core index']
  #allocation1 [shape = 'u32[144,128]{1,0:T(1,128)}', space=vmem, size = 0x12000, scoped, tag = 'internal scratch']
  %s0 = inlined_call_operand.hbm [shape: f32[16,256], index: 0, kind: input, shape index: {}]
  %s1 = inlined_call_operand.hbm [shape: bf16[256,1024], index: 1, kind: input, shape index: {}]
  %s2 = inlined_call_operand.hbm [shape: bf16[512,256], index: 2, kind: input, shape index: {}]
  %s3 = inlined_call_operand.vmem [shape: f32[1,512], index: 3, kind: input, shape index: {}]
  %s4 = inlined_call_operand.vmem [shape: f32[3], index: 4, kind: input, shape index: {}]
  %s5 = inlined_call_operand.hbm [shape: f32[16,256], index: 5, kind: output, shape index: {}]
  %s6 = sld [smem:[#allocation0]]
  $region69: #{tpu_custom_call.1} parent=0
    _
  %s8 = ssub.s32 1, %s6
  %s9 = scalar_select 0, %s8, %s6
  $region1: #{tpu_custom_call.1} parent=0
    #allocation2 [shape = 'u8[16384]{0}', space=vmem, size = 0x4000, scoped, tag = 'input window, operand 0']
    #allocation3 [shape = 's32[2]{0}', space=sflag, size = 0x8, scoped, tag = 'scoped memory for tpu_custom_call.1']
    #allocation4 [shape = 's32[2]{0}', space=sflag, size = 0x8, scoped, tag = 'scoped memory for tpu_custom_call.1']
    #allocation5 [shape = 's32[2]{0}', space=sflag, size = 0x8, scoped, tag = 'scoped memory for tpu_custom_call.1']
    #allocation6 [shape = 'u8[524288]{0}', space=vmem, size = 0x80000, scoped, tag = 'input window, operand 1, single buffered']
    #allocation7 [shape = 's32[1]{0}', space=sflag, size = 0x4, scoped, tag = 'scoped memory for tpu_custom_call.1']
    #allocation8 [shape = 'u8[262144]{0}', space=vmem, size = 0x40000, scoped, tag = 'input window, operand 2, single buffered']
    #allocation9 [shape = 'u8[512]{0}', space=smem, size = 0x200, scoped, tag = 'input window, operand 4, single buffered']
    #allocation10 [shape = 'u8[16384]{0}', space=vmem, size = 0x4000, scoped, tag = 'output window, operand 0']
    %10 = vsyncpa [#allocation3], 0
    %s11 = scalar_lea.sflag [#allocation3], 1
    %12 = vsyncpa %s11, 0
    %13 = vsyncpa [#allocation7], 0
    %14 = vsyncpa [#allocation5], 0
    %15 = vsyncpa [#allocation4], 0
    %s16 = scalar_lea.sflag [#allocation4], 1
    %17 = vsyncpa %s16, 0
    loop: start=0, step=1, limit=4
    $region2: #{tpu_custom_call.1} parent=1 // loop_pre_header
      _
    $region3: #{tpu_custom_call.1} parent=1 // loop_header
      %s19 = sphi 0, %s23
      %p20 = scmp.ge.s32.totalorder %s19, 4
      %s29 = sphi 0, %s31
      %s32 = sphi 0, %s29
      %s33 = sphi 0, %s32
      %s49 = sphi 0, %s33
      %s53 = sphi 0, %s53
      %s55 = sphi 0, %s53
      %s56 = sphi 0, %s55
      %s70 = sphi 0, %s56
      %s74 = sphi 0, %s74
      %s76 = sphi 0, %s74
      %s77 = sphi 0, %s76
      %s91 = sphi 0, %s77
      %s95 = sphi 0, %s95
      %s97 = sphi 0, %s95
      %s98 = sphi 0, %s97
      %s112 = sphi 0, %s98
      %s116 = sphi 0, %s116
      %s118 = sphi 0, %s116
      %s119 = sphi 0, %s118
      %s133 = sphi 0, %s119
      %s139 = sphi 0, %s141
      %s142 = sphi 0, %s139
      %s143 = sphi 0, %s142
      %s159 = sphi 0, %s143
    $region4: #{tpu_custom_call.1} parent=1 // loop_header_branch
      %22 = sbr.rel (%p20) target = $region8
    $region5: #{tpu_custom_call.1} parent=1 // loop_body
      %s24 = ssub.s32 %s19, 1
      %s25 = ssub.s32 %s19, 2
      %s26 = sadd.s32 %s19, 1
      %s27 = ssub.s32 %s19, %s26
      %p28 = scmp.eq.s32.totalorder %s27, 0
      %s30 = sadd.s32 %s29, 1
      %s31 = scalar_select %p28, %s29, %s30
      %p34 = pneg %p28
      %p35 = scmp.eq.s32.totalorder %s19, 1
      %p36 = por %p34, %p35
      %p37 = scmp.ne.s32.totalorder %s29, %s32
      %p38 = scmp.eq.s32.totalorder %s19, 0
      %p39 = por %p37, %p38
      %p40 = scmp.ne.s32.totalorder %s29, %s32
      %p41 = scmp.eq.s32.totalorder %s24, 1
      %p42 = por %p40, %p41
      %p43 = scmp.ne.s32.totalorder %s32, %s33
      %p44 = scmp.eq.s32.totalorder %s24, 0
      %p45 = por %p43, %p44
      %p46 = scmp.ne.s32.totalorder %s32, %s33
      %p47 = scmp.eq.s32.totalorder %s25, 1
      %p48 = por %p46, %p47
      %p50 = scmp.ne.s32.totalorder %s33, %s49
      %p51 = scmp.eq.s32.totalorder %s25, 0
      %p52 = por %p50, %p51
      %s54 = sadd.s32 %s53, 1
      %p57 = scmp.eq.s32.totalorder %s19, 1
      %p58 = scmp.ne.s32.totalorder %s53, %s55
      %p59 = scmp.eq.s32.totalorder %s19, 0
      %p60 = por %p58, %p59
      %p61 = scmp.ne.s32.totalorder %s53, %s55
      %p62 = scmp.eq.s32.totalorder %s24, 1
      %p63 = por %p61, %p62
      %p64 = scmp.ne.s32.totalorder %s55, %s56
      %p65 = scmp.eq.s32.totalorder %s24, 0
      %p66 = por %p64, %p65
      %p67 = scmp.ne.s32.totalorder %s55, %s56
      %p68 = scmp.eq.s32.totalorder %s25, 1
      %p69 = por %p67, %p68
      %p71 = scmp.ne.s32.totalorder %s56, %s70
      %p72 = scmp.eq.s32.totalorder %s25, 0
      %p73 = por %p71, %p72
      %s75 = sadd.s32 %s74, 1
      %p78 = scmp.eq.s32.totalorder %s19, 1
      %p79 = scmp.ne.s32.totalorder %s74, %s76
      %p80 = scmp.eq.s32.totalorder %s19, 0
      %p81 = por %p79, %p80
      %p82 = scmp.ne.s32.totalorder %s74, %s76
      %p83 = scmp.eq.s32.totalorder %s24, 1
      %p84 = por %p82, %p83
      %p85 = scmp.ne.s32.totalorder %s76, %s77
      %p86 = scmp.eq.s32.totalorder %s24, 0
      %p87 = por %p85, %p86
      %p88 = scmp.ne.s32.totalorder %s76, %s77
      %p89 = scmp.eq.s32.totalorder %s25, 1
      %p90 = por %p88, %p89
      %p92 = scmp.ne.s32.totalorder %s77, %s91
      %p93 = scmp.eq.s32.totalorder %s25, 0
      %p94 = por %p92, %p93
      %s96 = sadd.s32 %s95, 1
      %p99 = scmp.eq.s32.totalorder %s19, 1
      %p100 = scmp.ne.s32.totalorder %s95, %s97
      %p101 = scmp.eq.s32.totalorder %s19, 0
      %p102 = por %p100, %p101
      %p103 = scmp.ne.s32.totalorder %s95, %s97
      %p104 = scmp.eq.s32.totalorder %s24, 1
      %p105 = por %p103, %p104
      %p106 = scmp.ne.s32.totalorder %s97, %s98
      %p107 = scmp.eq.s32.totalorder %s24, 0
      %p108 = por %p106, %p107
      %p109 = scmp.ne.s32.totalorder %s97, %s98
      %p110 = scmp.eq.s32.totalorder %s25, 1
      %p111 = por %p109, %p110
      %p113 = scmp.ne.s32.totalorder %s98, %s112
      %p114 = scmp.eq.s32.totalorder %s25, 0
      %p115 = por %p113, %p114
      %s117 = sadd.s32 %s116, 1
      %p120 = scmp.eq.s32.totalorder %s19, 1
      %p121 = scmp.ne.s32.totalorder %s116, %s118
      %p122 = scmp.eq.s32.totalorder %s19, 0
      %p123 = por %p121, %p122
      %p124 = scmp.ne.s32.totalorder %s116, %s118
      %p125 = scmp.eq.s32.totalorder %s24, 1
      %p126 = por %p124, %p125
      %p127 = scmp.ne.s32.totalorder %s118, %s119
      %p128 = scmp.eq.s32.totalorder %s24, 0
      %p129 = por %p127, %p128
      %p130 = scmp.ne.s32.totalorder %s118, %s119
      %p131 = scmp.eq.s32.totalorder %s25, 1
      %p132 = por %p130, %p131
      %p134 = scmp.ne.s32.totalorder %s119, %s133
      %p135 = scmp.eq.s32.totalorder %s25, 0
      %p136 = por %p134, %p135
      %s137 = ssub.s32 %s19, %s26
      %p138 = scmp.eq.s32.totalorder %s137, 0
      %s140 = sadd.s32 %s139, 1
      %s141 = scalar_select %p138, %s139, %s140
      %p144 = pneg %p138
      %p145 = scmp.eq.s32.totalorder %s19, 1
      %p146 = por %p144, %p145
      %p147 = scmp.ne.s32.totalorder %s139, %s142
      %p148 = scmp.eq.s32.totalorder %s19, 0
      %p149 = por %p147, %p148
      %p150 = scmp.ne.s32.totalorder %s139, %s142
      %p151 = scmp.eq.s32.totalorder %s24, 1
      %p152 = por %p150, %p151
      %p153 = scmp.ne.s32.totalorder %s142, %s143
      %p154 = scmp.eq.s32.totalorder %s24, 0
      %p155 = por %p153, %p154
      %p156 = scmp.ne.s32.totalorder %s142, %s143
      %p157 = scmp.eq.s32.totalorder %s25, 1
      %p158 = por %p156, %p157
      %p160 = scmp.ne.s32.totalorder %s143, %s159
      %p161 = scmp.eq.s32.totalorder %s25, 0
      %p162 = por %p160, %p161
      %p163 = scmp.le.s32.totalorder 1, %s19
      %p164 = scmp.lt.s32.totalorder %s19, 3
      %p165 = pnand %p163, %p164
      %p166 = pneg %p165
      // Predicated region
      $region9: #{tpu_custom_call.1} parent=5 // pred_check
        _
      $region10: #{tpu_custom_call.1} parent=5 // pred_check_branch
        %168 = sbr.rel (%p165) target = $region12
      $region11: #{tpu_custom_call.1} parent=5 // pred_region
        %s169 = ssub.s32 %s19, 1
        // Predicated region
        $region13: #{tpu_custom_call.1} parent=11 // pred_check
          %p170 = pneg %p66
        $region14: #{tpu_custom_call.1} parent=11 // pred_check_branch
          %172 = sbr.rel (%p170) target = $region16
        $region15: #{tpu_custom_call.1} parent=11 // pred_region
          %s174 = ssub.s32 16384, 16384
          %175 = vsyncadd [#allocation7], %s174
          %s176 = sshll.u32 [#allocation6], 4
          %s177 = int_to_ptr.vmem [resolvable:$true] %s176
          %182 = dma.hbm_to_vmem [thread:$0]  %s1, 16384, %s177, [#allocation7], 512, 512, 32
        $region16: #{tpu_custom_call.1} parent=11 // pred_fallthru
          _
        // Predicated region
        $region17: #{tpu_custom_call.1} parent=11 // pred_check
          %p183 = pneg %p87
        $region18: #{tpu_custom_call.1} parent=11 // pred_check_branch
          %185 = sbr.rel (%p183) target = $region20
        $region19: #{tpu_custom_call.1} parent=11 // pred_region
          %s187 = ssub.s32 8192, 8192
          %188 = vsyncadd [#allocation7], %s187
          %s189 = sshll.u32 [#allocation8], 4
          %s190 = int_to_ptr.vmem [resolvable:$true] %s189
          %195 = dma.hbm_to_vmem [thread:$0]  %s2, 8192, %s190, [#allocation7], 128, 128, 8
        $region20: #{tpu_custom_call.1} parent=11 // pred_fallthru
          _
        // Predicated region
        $region21: #{tpu_custom_call.1} parent=11 // pred_check
          %p196 = pneg %p108
        $region22: #{tpu_custom_call.1} parent=11 // pred_check_branch
          %198 = sbr.rel (%p196) target = $region24
        $region23: #{tpu_custom_call.1} parent=11 // pred_region
          _
        $region24: #{tpu_custom_call.1} parent=11 // pred_fallthru
          _
        // Predicated region
        $region25: #{tpu_custom_call.1} parent=11 // pred_check
          %p199 = pneg %p129
        $region26: #{tpu_custom_call.1} parent=11 // pred_check_branch
          %201 = sbr.rel (%p199) target = $region28
        $region27: #{tpu_custom_call.1} parent=11 // pred_region
          %s203 = ssub.s32 16, 16
          %204 = vsyncadd [#allocation5], %s203
          %s206 = sshll.u32 %s4, 4
          %s207 = int_to_ptr.vmem [resolvable:$true] %s206
          %209 = dma.vmem_to_smem %s207, 16, [#allocation9], [#allocation5]
        $region28: #{tpu_custom_call.1} parent=11 // pred_fallthru
          _
      $region12: #{tpu_custom_call.1} parent=5 // pred_fallthru
        _
      %p210 = scmp.lt.s32.totalorder %s19, 2
      // Predicated region
      $region29: #{tpu_custom_call.1} parent=5 // pred_check
        %p211 = pneg %p210
      $region30: #{tpu_custom_call.1} parent=5 // pred_check_branch
        %213 = sbr.rel (%p211) target = $region32
      $region31: #{tpu_custom_call.1} parent=5 // pred_region
        // Predicated region
        $region33: #{tpu_custom_call.1} parent=31 // pred_check
          %p214 = pneg %p39
        $region34: #{tpu_custom_call.1} parent=31 // pred_check_branch
          %216 = sbr.rel (%p214) target = $region36
        $region35: #{tpu_custom_call.1} parent=31 // pred_region
          %s217 = sand.u32 %s29, 1
          %s218 = scalar_lea.sflag [#allocation3], %s217
          %s219 = sand.u32 %s29, 1
          %s220 = smul.addr %s219, 16
          %s221 = scalar_lea.vmem [#allocation2], %s220
          %s223 = ssub.s32 256, 256
          %224 = vsyncadd %s218, %s223
          %s225 = smul.addr %s19, 2
          %s226 = smul.addr %s225, 128
          %s227 = scalar_lea.hbm %s0, %s226
          %s229 = sshll.u32 %s221, 4
          %s230 = int_to_ptr.vmem [resolvable:$true] %s229
          %232 = dma.hbm_to_vmem [thread:$0]  %s227, 256, %s230, %s218
        $region36: #{tpu_custom_call.1} parent=31 // pred_fallthru
          _
      $region32: #{tpu_custom_call.1} parent=5 // pred_fallthru
        _
      %p233 = scmp.le.s32.totalorder 1, %s19
      %p234 = scmp.lt.s32.totalorder %s19, 3
      %p235 = pnand %p233, %p234
      %p236 = pneg %p235
      // Predicated region
      $region37: #{tpu_custom_call.1} parent=5 // pred_check
        _
      $region38: #{tpu_custom_call.1} parent=5 // pred_check_branch
        %238 = sbr.rel (%p235) target = $region40
      $region39: #{tpu_custom_call.1} parent=5 // pred_region
        %s239 = ssub.s32 %s19, 1
        %s240 = sand.u32 %s32, 1
        %s241 = scalar_lea.sflag [#allocation3], %s240
        %s242 = sand.u32 %s32, 1
        %s243 = smul.addr %s242, 16
        %s244 = scalar_lea.vmem [#allocation2], %s243
        // Predicated region
        $region41: #{tpu_custom_call.1} parent=39 // pred_check
          %p245 = pneg %p45
        $region42: #{tpu_custom_call.1} parent=39 // pred_check_branch
          %247 = sbr.rel (%p245) target = $region44
        $region43: #{tpu_custom_call.1} parent=39 // pred_region
          %248 = dma.done %s241, 256
        $region44: #{tpu_custom_call.1} parent=39 // pred_fallthru
          _
        // Predicated region
        $region45: #{tpu_custom_call.1} parent=39 // pred_check
          %p249 = pneg %p66
        $region46: #{tpu_custom_call.1} parent=39 // pred_check_branch
          %251 = sbr.rel (%p249) target = $region48
        $region47: #{tpu_custom_call.1} parent=39 // pred_region
          %252 = dma.done [#allocation7], 16384
        $region48: #{tpu_custom_call.1} parent=39 // pred_fallthru
          _
        // Predicated region
        $region49: #{tpu_custom_call.1} parent=39 // pred_check
          %p253 = pneg %p87
        $region50: #{tpu_custom_call.1} parent=39 // pred_check_branch
          %255 = sbr.rel (%p253) target = $region52
        $region51: #{tpu_custom_call.1} parent=39 // pred_region
          %256 = dma.done [#allocation7], 8192
        $region52: #{tpu_custom_call.1} parent=39 // pred_fallthru
          _
        // Predicated region
        $region53: #{tpu_custom_call.1} parent=39 // pred_check
          %p257 = pneg %p129
        $region54: #{tpu_custom_call.1} parent=39 // pred_check_branch
          %259 = sbr.rel (%p257) target = $region56
        $region55: #{tpu_custom_call.1} parent=39 // pred_region
          %260 = dma.done [#allocation5], 16
        $region56: #{tpu_custom_call.1} parent=39 // pred_fallthru
          _
        %261 = sfence
        %s262 = sand.u32 %s32, 1
        %s263 = scalar_lea.sflag [#allocation3], %s262
        %s264 = sand.u32 %s32, 1
        %s265 = smul.addr %s264, 16
        %s266 = scalar_lea.vmem [#allocation2], %s265
        %p267 = pneg %p45
        %p268 = pneg %p42
        %p269 = pneg %p66
        %p270 = pneg %p63
        %p271 = pneg %p87
        %p272 = pneg %p84
        %p273 = pneg %p108
        %p274 = pneg %p105
        %p275 = pneg %p129
        %p276 = pneg %p126
        %p277 = pneg %p155
        %p278 = pneg %p152
        %s279 = sand.u32 %s142, 1
        %s280 = scalar_lea.sflag [#allocation4], %s279
        %s281 = sand.u32 %s142, 1
        %s282 = smul.addr %s281, 16
        %s283 = scalar_lea.vmem [#allocation10], %s282
        %v284 = vld [vmem:[%s244] sm:$0xff]
        %v285 = vld [vmem:[%s244 + $0x8] sm:$0xff]
        %v286 = vand.u32 2147483647, %v284
        %v287 = vand.u32 2147483647, %v285
        %v288 = vmax.f32 %v286, %v287
        %289 = vmax.xlane.f32.xlu0 %v288
        %v290 = vpop.xlane.xlu0 %289
        %v291 = vmax.f32 %v290, 1e-05
        %v292 = vrcp.pop %v291
        %v293 = vmul.f32 127.0, %v292
        %v294 = vmul.f32 %v284, %v293
        %v295 = vmul.f32 %v285, %v293
        %v296 = vround.ne.pseudo %v294
        %v297 = vround.ne.pseudo %v295
        %v298 = vmax.f32 %v296, -128.0
        %v299 = vmax.f32 %v297, -128.0
        %v300 = vmin.f32 %v298, 127.0
        %v301 = vmin.f32 %v299, 127.0
        %v302 = vpack.c.bf16 %v300, %v300
        %v303 = vpack.c.bf16 %v301, %v301
        %v304 = vrcp.pop %v293
        %v305 = vmul.f32 1.0, %v304
        %v306 = vld [vmem:[#allocation6] sm:$0xff]
        %v307 = vld [vmem:[#allocation6 + $0x8] sm:$0xff]
        %v308 = vld [vmem:[#allocation6 + $0x10] sm:$0xff]
        %v309 = vld [vmem:[#allocation6 + $0x18] sm:$0xff]
        %v310 = vld [vmem:[#allocation6 + $0x20] sm:$0xff]
        %v311 = vld [vmem:[#allocation6 + $0x28] sm:$0xff]
        %v312 = vld [vmem:[#allocation6 + $0x30] sm:$0xff]
        %v313 = vld [vmem:[#allocation6 + $0x38] sm:$0xff]
        %v314 = vld [vmem:[#allocation6 + $0x40] sm:$0xff]
        %v315 = vld [vmem:[#allocation6 + $0x48] sm:$0xff]
        %v316 = vld [vmem:[#allocation6 + $0x50] sm:$0xff]
        %v317 = vld [vmem:[#allocation6 + $0x58] sm:$0xff]
        %v318 = vld [vmem:[#allocation6 + $0x60] sm:$0xff]
        %v319 = vld [vmem:[#allocation6 + $0x68] sm:$0xff]
        %v320 = vld [vmem:[#allocation6 + $0x70] sm:$0xff]
        %v321 = vld [vmem:[#allocation6 + $0x78] sm:$0xff]
        %v322 = vld [vmem:[#allocation6 + $0x80] sm:$0xff]
        %v323 = vld [vmem:[#allocation6 + $0x88] sm:$0xff]
        %v324 = vld [vmem:[#allocation6 + $0x90] sm:$0xff]
        %v325 = vld [vmem:[#allocation6 + $0x98] sm:$0xff]
        %v326 = vld [vmem:[#allocation6 + $0xa0] sm:$0xff]
        %v327 = vld [vmem:[#allocation6 + $0xa8] sm:$0xff]
        %v328 = vld [vmem:[#allocation6 + $0xb0] sm:$0xff]
        %v329 = vld [vmem:[#allocation6 + $0xb8] sm:$0xff]
        %v330 = vld [vmem:[#allocation6 + $0xc0] sm:$0xff]
        %v331 = vld [vmem:[#allocation6 + $0xc8] sm:$0xff]
        %v332 = vld [vmem:[#allocation6 + $0xd0] sm:$0xff]
        %v333 = vld [vmem:[#allocation6 + $0xd8] sm:$0xff]
        %v334 = vld [vmem:[#allocation6 + $0xe0] sm:$0xff]
        %v335 = vld [vmem:[#allocation6 + $0xe8] sm:$0xff]
        %v336 = vld [vmem:[#allocation6 + $0xf0] sm:$0xff]
        %v337 = vld [vmem:[#allocation6 + $0xf8] sm:$0xff]
        %v338 = vld [vmem:[#allocation6 + $0x100] sm:$0xff]
        %v339 = vld [vmem:[#allocation6 + $0x108] sm:$0xff]
        %v340 = vld [vmem:[#allocation6 + $0x110] sm:$0xff]
        %v341 = vld [vmem:[#allocation6 + $0x118] sm:$0xff]
        %v342 = vld [vmem:[#allocation6 + $0x120] sm:$0xff]
        %v343 = vld [vmem:[#allocation6 + $0x128] sm:$0xff]
        %v344 = vld [vmem:[#allocation6 + $0x130] sm:$0xff]
        %v345 = vld [vmem:[#allocation6 + $0x138] sm:$0xff]
        %v346 = vld [vmem:[#allocation6 + $0x140] sm:$0xff]
        %v347 = vld [vmem:[#allocation6 + $0x148] sm:$0xff]
        %v348 = vld [vmem:[#allocation6 + $0x150] sm:$0xff]
        %v349 = vld [vmem:[#allocation6 + $0x158] sm:$0xff]
        %v350 = vld [vmem:[#allocation6 + $0x160] sm:$0xff]
        %v351 = vld [vmem:[#allocation6 + $0x168] sm:$0xff]
        %v352 = vld [vmem:[#allocation6 + $0x170] sm:$0xff]
        %v353 = vld [vmem:[#allocation6 + $0x178] sm:$0xff]
        %v354 = vld [vmem:[#allocation6 + $0x180] sm:$0xff]
        %v355 = vld [vmem:[#allocation6 + $0x188] sm:$0xff]
        %v356 = vld [vmem:[#allocation6 + $0x190] sm:$0xff]
        %v357 = vld [vmem:[#allocation6 + $0x198] sm:$0xff]
        %v358 = vld [vmem:[#allocation6 + $0x1a0] sm:$0xff]
        %v359 = vld [vmem:[#allocation6 + $0x1a8] sm:$0xff]
        %v360 = vld [vmem:[#allocation6 + $0x1b0] sm:$0xff]
        %v361 = vld [vmem:[#allocation6 + $0x1b8] sm:$0xff]
        %v362 = vld [vmem:[#allocation6 + $0x1c0] sm:$0xff]
        %v363 = vld [vmem:[#allocation6 + $0x1c8] sm:$0xff]
        %v364 = vld [vmem:[#allocation6 + $0x1d0] sm:$0xff]
        %v365 = vld [vmem:[#allocation6 + $0x1d8] sm:$0xff]
        %v366 = vld [vmem:[#allocation6 + $0x1e0] sm:$0xff]
        %v367 = vld [vmem:[#allocation6 + $0x1e8] sm:$0xff]
        %v368 = vld [vmem:[#allocation6 + $0x1f0] sm:$0xff]
        %v369 = vld [vmem:[#allocation6 + $0x1f8] sm:$0xff]
        %v370 = vld [vmem:[#allocation6 + $0x200] sm:$0xff]
        %v371 = vld [vmem:[#allocation6 + $0x208] sm:$0xff]
        %v372 = vld [vmem:[#allocation6 + $0x210] sm:$0xff]
        %v373 = vld [vmem:[#allocation6 + $0x218] sm:$0xff]
        %v374 = vld [vmem:[#allocation6 + $0x220] sm:$0xff]
        %v375 = vld [vmem:[#allocation6 + $0x228] sm:$0xff]
        %v376 = vld [vmem:[#allocation6 + $0x230] sm:$0xff]
        %v377 = vld [vmem:[#allocation6 + $0x238] sm:$0xff]
        %v378 = vld [vmem:[#allocation6 + $0x240] sm:$0xff]
        %v379 = vld [vmem:[#allocation6 + $0x248] sm:$0xff]
        %v380 = vld [vmem:[#allocation6 + $0x250] sm:$0xff]
        %v381 = vld [vmem:[#allocation6 + $0x258] sm:$0xff]
        %v382 = vld [vmem:[#allocation6 + $0x260] sm:$0xff]
        %v383 = vld [vmem:[#allocation6 + $0x268] sm:$0xff]
        %v384 = vld [vmem:[#allocation6 + $0x270] sm:$0xff]
        %v385 = vld [vmem:[#allocation6 + $0x278] sm:$0xff]
        %v386 = vld [vmem:[#allocation6 + $0x280] sm:$0xff]
        %v387 = vld [vmem:[#allocation6 + $0x288] sm:$0xff]
        %v388 = vld [vmem:[#allocation6 + $0x290] sm:$0xff]
        %v389 = vld [vmem:[#allocation6 + $0x298] sm:$0xff]
        %v390 = vld [vmem:[#allocation6 + $0x2a0] sm:$0xff]
        %v391 = vld [vmem:[#allocation6 + $0x2a8] sm:$0xff]
        %v392 = vld [vmem:[#allocation6 + $0x2b0] sm:$0xff]
        %v393 = vld [vmem:[#allocation6 + $0x2b8] sm:$0xff]
        %v394 = vld [vmem:[#allocation6 + $0x2c0] sm:$0xff]
        %v395 = vld [vmem:[#allocation6 + $0x2c8] sm:$0xff]
        %v396 = vld [vmem:[#allocation6 + $0x2d0] sm:$0xff]
        %v397 = vld [vmem:[#allocation6 + $0x2d8] sm:$0xff]
        %v398 = vld [vmem:[#allocation6 + $0x2e0] sm:$0xff]
        %v399 = vld [vmem:[#allocation6 + $0x2e8] sm:$0xff]
        %v400 = vld [vmem:[#allocation6 + $0x2f0] sm:$0xff]
        %v401 = vld [vmem:[#allocation6 + $0x2f8] sm:$0xff]
        %v402 = vld [vmem:[#allocation6 + $0x300] sm:$0xff]
        %v403 = vld [vmem:[#allocation6 + $0x308] sm:$0xff]
        %v404 = vld [vmem:[#allocation6 + $0x310] sm:$0xff]
        %v405 = vld [vmem:[#allocation6 + $0x318] sm:$0xff]
        %v406 = vld [vmem:[#allocation6 + $0x320] sm:$0xff]
        %v407 = vld [vmem:[#allocation6 + $0x328] sm:$0xff]
        %v408 = vld [vmem:[#allocation6 + $0x330] sm:$0xff]
        %v409 = vld [vmem:[#allocation6 + $0x338] sm:$0xff]
        %v410 = vld [vmem:[#allocation6 + $0x340] sm:$0xff]
        %v411 = vld [vmem:[#allocation6 + $0x348] sm:$0xff]
        %v412 = vld [vmem:[#allocation6 + $0x350] sm:$0xff]
        %v413 = vld [vmem:[#allocation6 + $0x358] sm:$0xff]
        %v414 = vld [vmem:[#allocation6 + $0x360] sm:$0xff]
        %v415 = vld [vmem:[#allocation6 + $0x368] sm:$0xff]
        %v416 = vld [vmem:[#allocation6 + $0x370] sm:$0xff]
        %v417 = vld [vmem:[#allocation6 + $0x378] sm:$0xff]
        %v418 = vld [vmem:[#allocation6 + $0x380] sm:$0xff]
        %v419 = vld [vmem:[#allocation6 + $0x388] sm:$0xff]
        %v420 = vld [vmem:[#allocation6 + $0x390] sm:$0xff]
        %v421 = vld [vmem:[#allocation6 + $0x398] sm:$0xff]
        %v422 = vld [vmem:[#allocation6 + $0x3a0] sm:$0xff]
        %v423 = vld [vmem:[#allocation6 + $0x3a8] sm:$0xff]
        %v424 = vld [vmem:[#allocation6 + $0x3b0] sm:$0xff]
        %v425 = vld [vmem:[#allocation6 + $0x3b8] sm:$0xff]
        %v426 = vld [vmem:[#allocation6 + $0x3c0] sm:$0xff]
        %v427 = vld [vmem:[#allocation6 + $0x3c8] sm:$0xff]
        %v428 = vld [vmem:[#allocation6 + $0x3d0] sm:$0xff]
        %v429 = vld [vmem:[#allocation6 + $0x3d8] sm:$0xff]
        %v430 = vld [vmem:[#allocation6 + $0x3e0] sm:$0xff]
        %v431 = vld [vmem:[#allocation6 + $0x3e8] sm:$0xff]
        %v432 = vld [vmem:[#allocation6 + $0x3f0] sm:$0xff]
        %v433 = vld [vmem:[#allocation6 + $0x3f8] sm:$0xff]
        %v562 = vunpack.c.l.b16 %v306
        %v563 = vunpack.c.h.b16 %v306
        %v564 = vunpack.c.l.b16 %v307
        %v565 = vunpack.c.h.b16 %v307
        %v566 = vunpack.c.l.b16 %v308
        %v567 = vunpack.c.h.b16 %v308
        %v568 = vunpack.c.l.b16 %v309
        %v569 = vunpack.c.h.b16 %v309
        %v570 = vunpack.c.l.b16 %v310
        %v571 = vunpack.c.h.b16 %v310
        %v572 = vunpack.c.l.b16 %v311
        %v573 = vunpack.c.h.b16 %v311
        %v574 = vunpack.c.l.b16 %v312
        %v575 = vunpack.c.h.b16 %v312
        %v576 = vunpack.c.l.b16 %v313
        %v577 = vunpack.c.h.b16 %v313
        %v578 = vunpack.c.l.b16 %v314
        %v579 = vunpack.c.h.b16 %v314
        %v580 = vunpack.c.l.b16 %v315
        %v581 = vunpack.c.h.b16 %v315
        %v582 = vunpack.c.l.b16 %v316
        %v583 = vunpack.c.h.b16 %v316
        %v584 = vunpack.c.l.b16 %v317
        %v585 = vunpack.c.h.b16 %v317
        %v586 = vunpack.c.l.b16 %v318
        %v587 = vunpack.c.h.b16 %v318
        %v588 = vunpack.c.l.b16 %v319
        %v589 = vunpack.c.h.b16 %v319
        %v590 = vunpack.c.l.b16 %v320
        %v591 = vunpack.c.h.b16 %v320
        %v592 = vunpack.c.l.b16 %v321
        %v593 = vunpack.c.h.b16 %v321
        %v594 = vunpack.c.l.b16 %v322
        %v595 = vunpack.c.h.b16 %v322
        %v596 = vunpack.c.l.b16 %v323
        %v597 = vunpack.c.h.b16 %v323
        %v598 = vunpack.c.l.b16 %v324
        %v599 = vunpack.c.h.b16 %v324
        %v600 = vunpack.c.l.b16 %v325
        %v601 = vunpack.c.h.b16 %v325
        %v602 = vunpack.c.l.b16 %v326
        %v603 = vunpack.c.h.b16 %v326
        %v604 = vunpack.c.l.b16 %v327
        %v605 = vunpack.c.h.b16 %v327
        %v606 = vunpack.c.l.b16 %v328
        %v607 = vunpack.c.h.b16 %v328
        %v608 = vunpack.c.l.b16 %v329
        %v609 = vunpack.c.h.b16 %v329
        %v610 = vunpack.c.l.b16 %v330
        %v611 = vunpack.c.h.b16 %v330
        %v612 = vunpack.c.l.b16 %v331
        %v613 = vunpack.c.h.b16 %v331
        %v614 = vunpack.c.l.b16 %v332
        %v615 = vunpack.c.h.b16 %v332
        %v616 = vunpack.c.l.b16 %v333
        %v617 = vunpack.c.h.b16 %v333
        %v618 = vunpack.c.l.b16 %v334
        %v619 = vunpack.c.h.b16 %v334
        %v620 = vunpack.c.l.b16 %v335
        %v621 = vunpack.c.h.b16 %v335
        %v622 = vunpack.c.l.b16 %v336
        %v623 = vunpack.c.h.b16 %v336
        %v624 = vunpack.c.l.b16 %v337
        %v625 = vunpack.c.h.b16 %v337
        %v626 = vunpack.c.l.b16 %v338
        %v627 = vunpack.c.h.b16 %v338
        %v628 = vunpack.c.l.b16 %v339
        %v629 = vunpack.c.h.b16 %v339
        %v630 = vunpack.c.l.b16 %v340
        %v631 = vunpack.c.h.b16 %v340
        %v632 = vunpack.c.l.b16 %v341
        %v633 = vunpack.c.h.b16 %v341
        %v634 = vunpack.c.l.b16 %v342
        %v635 = vunpack.c.h.b16 %v342
        %v636 = vunpack.c.l.b16 %v343
        %v637 = vunpack.c.h.b16 %v343
        %v638 = vunpack.c.l.b16 %v344
        %v639 = vunpack.c.h.b16 %v344
        %v640 = vunpack.c.l.b16 %v345
        %v641 = vunpack.c.h.b16 %v345
        %v642 = vunpack.c.l.b16 %v346
        %v643 = vunpack.c.h.b16 %v346
        %v644 = vunpack.c.l.b16 %v347
        %v645 = vunpack.c.h.b16 %v347
        %v646 = vunpack.c.l.b16 %v348
        %v647 = vunpack.c.h.b16 %v348
        %v648 = vunpack.c.l.b16 %v349
        %v649 = vunpack.c.h.b16 %v349
        %v650 = vunpack.c.l.b16 %v350
        %v651 = vunpack.c.h.b16 %v350
        %v652 = vunpack.c.l.b16 %v351
        %v653 = vunpack.c.h.b16 %v351
        %v654 = vunpack.c.l.b16 %v352
        %v655 = vunpack.c.h.b16 %v352
        %v656 = vunpack.c.l.b16 %v353
        %v657 = vunpack.c.h.b16 %v353
        %v658 = vunpack.c.l.b16 %v354
        %v659 = vunpack.c.h.b16 %v354
        %v660 = vunpack.c.l.b16 %v355
        %v661 = vunpack.c.h.b16 %v355
        %v662 = vunpack.c.l.b16 %v356
        %v663 = vunpack.c.h.b16 %v356
        %v664 = vunpack.c.l.b16 %v357
        %v665 = vunpack.c.h.b16 %v357
        %v666 = vunpack.c.l.b16 %v358
        %v667 = vunpack.c.h.b16 %v358
        %v668 = vunpack.c.l.b16 %v359
        %v669 = vunpack.c.h.b16 %v359
        %v670 = vunpack.c.l.b16 %v360
        %v671 = vunpack.c.h.b16 %v360
        %v672 = vunpack.c.l.b16 %v361
        %v673 = vunpack.c.h.b16 %v361
        %v674 = vunpack.c.l.b16 %v362
        %v675 = vunpack.c.h.b16 %v362
        %v676 = vunpack.c.l.b16 %v363
        %v677 = vunpack.c.h.b16 %v363
        %v678 = vunpack.c.l.b16 %v364
        %v679 = vunpack.c.h.b16 %v364
        %v680 = vunpack.c.l.b16 %v365
        %v681 = vunpack.c.h.b16 %v365
        %v682 = vunpack.c.l.b16 %v366
        %v683 = vunpack.c.h.b16 %v366
        %v684 = vunpack.c.l.b16 %v367
        %v685 = vunpack.c.h.b16 %v367
        %v686 = vunpack.c.l.b16 %v368
        %v687 = vunpack.c.h.b16 %v368
        %v688 = vunpack.c.l.b16 %v369
        %v689 = vunpack.c.h.b16 %v369
        %v690 = vunpack.c.l.b16 %v370
        %v691 = vunpack.c.h.b16 %v370
        %v692 = vunpack.c.l.b16 %v371
        %v693 = vunpack.c.h.b16 %v371
        %v694 = vunpack.c.l.b16 %v372
        %v695 = vunpack.c.h.b16 %v372
        %v696 = vunpack.c.l.b16 %v373
        %v697 = vunpack.c.h.b16 %v373
        %v698 = vunpack.c.l.b16 %v374
        %v699 = vunpack.c.h.b16 %v374
        %v700 = vunpack.c.l.b16 %v375
        %v701 = vunpack.c.h.b16 %v375
        %v702 = vunpack.c.l.b16 %v376
        %v703 = vunpack.c.h.b16 %v376
        %v704 = vunpack.c.l.b16 %v377
        %v705 = vunpack.c.h.b16 %v377
        %v706 = vunpack.c.l.b16 %v378
        %v707 = vunpack.c.h.b16 %v378
        %v708 = vunpack.c.l.b16 %v379
        %v709 = vunpack.c.h.b16 %v379
        %v710 = vunpack.c.l.b16 %v380
        %v711 = vunpack.c.h.b16 %v380
        %v712 = vunpack.c.l.b16 %v381
        %v713 = vunpack.c.h.b16 %v381
        %v714 = vunpack.c.l.b16 %v382
        %v715 = vunpack.c.h.b16 %v382
        %v716 = vunpack.c.l.b16 %v383
        %v717 = vunpack.c.h.b16 %v383
        %v718 = vunpack.c.l.b16 %v384
        %v719 = vunpack.c.h.b16 %v384
        %v720 = vunpack.c.l.b16 %v385
        %v721 = vunpack.c.h.b16 %v385
        %v722 = vunpack.c.l.b16 %v386
        %v723 = vunpack.c.h.b16 %v386
        %v724 = vunpack.c.l.b16 %v387
        %v725 = vunpack.c.h.b16 %v387
        %v726 = vunpack.c.l.b16 %v388
        %v727 = vunpack.c.h.b16 %v388
        %v728 = vunpack.c.l.b16 %v389
        %v729 = vunpack.c.h.b16 %v389
        %v730 = vunpack.c.l.b16 %v390
        %v731 = vunpack.c.h.b16 %v390
        %v732 = vunpack.c.l.b16 %v391
        %v733 = vunpack.c.h.b16 %v391
        %v734 = vunpack.c.l.b16 %v392
        %v735 = vunpack.c.h.b16 %v392
        %v736 = vunpack.c.l.b16 %v393
        %v737 = vunpack.c.h.b16 %v393
        %v738 = vunpack.c.l.b16 %v394
        %v739 = vunpack.c.h.b16 %v394
        %v740 = vunpack.c.l.b16 %v395
        %v741 = vunpack.c.h.b16 %v395
        %v742 = vunpack.c.l.b16 %v396
        %v743 = vunpack.c.h.b16 %v396
        %v744 = vunpack.c.l.b16 %v397
        %v745 = vunpack.c.h.b16 %v397
        %v746 = vunpack.c.l.b16 %v398
        %v747 = vunpack.c.h.b16 %v398
        %v748 = vunpack.c.l.b16 %v399
        %v749 = vunpack.c.h.b16 %v399
        %v750 = vunpack.c.l.b16 %v400
        %v751 = vunpack.c.h.b16 %v400
        %v752 = vunpack.c.l.b16 %v401
        %v753 = vunpack.c.h.b16 %v401
        %v754 = vunpack.c.l.b16 %v402
        %v755 = vunpack.c.h.b16 %v402
        %v756 = vunpack.c.l.b16 %v403
        %v757 = vunpack.c.h.b16 %v403
        %v758 = vunpack.c.l.b16 %v404
        %v759 = vunpack.c.h.b16 %v404
        %v760 = vunpack.c.l.b16 %v405
        %v761 = vunpack.c.h.b16 %v405
        %v762 = vunpack.c.l.b16 %v406
        %v763 = vunpack.c.h.b16 %v406
        %v764 = vunpack.c.l.b16 %v407
        %v765 = vunpack.c.h.b16 %v407
        %v766 = vunpack.c.l.b16 %v408
        %v767 = vunpack.c.h.b16 %v408
        %v768 = vunpack.c.l.b16 %v409
        %v769 = vunpack.c.h.b16 %v409
        %v770 = vunpack.c.l.b16 %v410
        %v771 = vunpack.c.h.b16 %v410
        %v772 = vunpack.c.l.b16 %v411
        %v773 = vunpack.c.h.b16 %v411
        %v774 = vunpack.c.l.b16 %v412
        %v775 = vunpack.c.h.b16 %v412
        %v776 = vunpack.c.l.b16 %v413
        %v777 = vunpack.c.h.b16 %v413
        %v778 = vunpack.c.l.b16 %v414
        %v779 = vunpack.c.h.b16 %v414
        %v780 = vunpack.c.l.b16 %v415
        %v781 = vunpack.c.h.b16 %v415
        %v782 = vunpack.c.l.b16 %v416
        %v783 = vunpack.c.h.b16 %v416
        %v784 = vunpack.c.l.b16 %v417
        %v785 = vunpack.c.h.b16 %v417
        %v786 = vunpack.c.l.b16 %v418
        %v787 = vunpack.c.h.b16 %v418
        %v788 = vunpack.c.l.b16 %v419
        %v789 = vunpack.c.h.b16 %v419
        %v790 = vunpack.c.l.b16 %v420
        %v791 = vunpack.c.h.b16 %v420
        %v792 = vunpack.c.l.b16 %v421
        %v793 = vunpack.c.h.b16 %v421
        %v794 = vunpack.c.l.b16 %v422
        %v795 = vunpack.c.h.b16 %v422
        %v796 = vunpack.c.l.b16 %v423
        %v797 = vunpack.c.h.b16 %v423
        %v798 = vunpack.c.l.b16 %v424
        %v799 = vunpack.c.h.b16 %v424
        %v800 = vunpack.c.l.b16 %v425
        %v801 = vunpack.c.h.b16 %v425
        %v802 = vunpack.c.l.b16 %v426
        %v803 = vunpack.c.h.b16 %v426
        %v804 = vunpack.c.l.b16 %v427
        %v805 = vunpack.c.h.b16 %v427
        %v806 = vunpack.c.l.b16 %v428
        %v807 = vunpack.c.h.b16 %v428
        %v808 = vunpack.c.l.b16 %v429
        %v809 = vunpack.c.h.b16 %v429
        %v810 = vunpack.c.l.b16 %v430
        %v811 = vunpack.c.h.b16 %v430
        %v812 = vunpack.c.l.b16 %v431
        %v813 = vunpack.c.h.b16 %v431
        %v814 = vunpack.c.l.b16 %v432
        %v815 = vunpack.c.h.b16 %v432
        %v816 = vunpack.c.l.b16 %v433
        %v817 = vunpack.c.h.b16 %v433
        %v818 = vpack.c.b16 %v570, %v562
        %v819 = vpack.c.b16 %v571, %v563
        %v820 = vpack.c.b16 %v572, %v564
        %v821 = vpack.c.b16 %v573, %v565
        %v822 = vpack.c.b16 %v574, %v566
        %v823 = vpack.c.b16 %v575, %v567
        %v824 = vpack.c.b16 %v576, %v568
        %v825 = vpack.c.b16 %v577, %v569
        %v826 = vpack.c.b16 %v586, %v578
        %v827 = vpack.c.b16 %v587, %v579
        %v828 = vpack.c.b16 %v588, %v580
        %v829 = vpack.c.b16 %v589, %v581
        %v830 = vpack.c.b16 %v590, %v582
        %v831 = vpack.c.b16 %v591, %v583
        %v832 = vpack.c.b16 %v592, %v584
        %v833 = vpack.c.b16 %v593, %v585
        %v834 = vpack.c.b16 %v602, %v594
        %v835 = vpack.c.b16 %v603, %v595
        %v836 = vpack.c.b16 %v604, %v596
        %v837 = vpack.c.b16 %v605, %v597
        %v838 = vpack.c.b16 %v606, %v598
        %v839 = vpack.c.b16 %v607, %v599
        %v840 = vpack.c.b16 %v608, %v600
        %v841 = vpack.c.b16 %v609, %v601
        %v842 = vpack.c.b16 %v618, %v610
        %v843 = vpack.c.b16 %v619, %v611
        %v844 = vpack.c.b16 %v620, %v612
        %v845 = vpack.c.b16 %v621, %v613
        %v846 = vpack.c.b16 %v622, %v614
        %v847 = vpack.c.b16 %v623, %v615
        %v848 = vpack.c.b16 %v624, %v616
        %v849 = vpack.c.b16 %v625, %v617
        %v850 = vpack.c.b16 %v634, %v626
        %v851 = vpack.c.b16 %v635, %v627
        %v852 = vpack.c.b16 %v636, %v628
        %v853 = vpack.c.b16 %v637, %v629
        %v854 = vpack.c.b16 %v638, %v630
        %v855 = vpack.c.b16 %v639, %v631
        %v856 = vpack.c.b16 %v640, %v632
        %v857 = vpack.c.b16 %v641, %v633
        %v858 = vpack.c.b16 %v650, %v642
        %v859 = vpack.c.b16 %v651, %v643
        %v860 = vpack.c.b16 %v652, %v644
        %v861 = vpack.c.b16 %v653, %v645
        %v862 = vpack.c.b16 %v654, %v646
        %v863 = vpack.c.b16 %v655, %v647
        %v864 = vpack.c.b16 %v656, %v648
        %v865 = vpack.c.b16 %v657, %v649
        %v866 = vpack.c.b16 %v666, %v658
        %v867 = vpack.c.b16 %v667, %v659
        %v868 = vpack.c.b16 %v668, %v660
        %v869 = vpack.c.b16 %v669, %v661
        %v870 = vpack.c.b16 %v670, %v662
        %v871 = vpack.c.b16 %v671, %v663
        %v872 = vpack.c.b16 %v672, %v664
        %v873 = vpack.c.b16 %v673, %v665
        %v874 = vpack.c.b16 %v682, %v674
        %v875 = vpack.c.b16 %v683, %v675
        %v876 = vpack.c.b16 %v684, %v676
        %v877 = vpack.c.b16 %v685, %v677
        %v878 = vpack.c.b16 %v686, %v678
        %v879 = vpack.c.b16 %v687, %v679
        %v880 = vpack.c.b16 %v688, %v680
        %v881 = vpack.c.b16 %v689, %v681
        %v882 = vpack.c.b16 %v698, %v690
        %v883 = vpack.c.b16 %v699, %v691
        %v884 = vpack.c.b16 %v700, %v692
        %v885 = vpack.c.b16 %v701, %v693
        %v886 = vpack.c.b16 %v702, %v694
        %v887 = vpack.c.b16 %v703, %v695
        %v888 = vpack.c.b16 %v704, %v696
        %v889 = vpack.c.b16 %v705, %v697
        %v890 = vpack.c.b16 %v714, %v706
        %v891 = vpack.c.b16 %v715, %v707
        %v892 = vpack.c.b16 %v716, %v708
        %v893 = vpack.c.b16 %v717, %v709
        %v894 = vpack.c.b16 %v718, %v710
        %v895 = vpack.c.b16 %v719, %v711
        %v896 = vpack.c.b16 %v720, %v712
        %v897 = vpack.c.b16 %v721, %v713
        %v898 = vpack.c.b16 %v730, %v722
        %v899 = vpack.c.b16 %v731, %v723
        %v900 = vpack.c.b16 %v732, %v724
        %v901 = vpack.c.b16 %v733, %v725
        %v902 = vpack.c.b16 %v734, %v726
        %v903 = vpack.c.b16 %v735, %v727
        %v904 = vpack.c.b16 %v736, %v728
        %v905 = vpack.c.b16 %v737, %v729
        %v906 = vpack.c.b16 %v746, %v738
        %v907 = vpack.c.b16 %v747, %v739
        %v908 = vpack.c.b16 %v748, %v740
        %v909 = vpack.c.b16 %v749, %v741
        %v910 = vpack.c.b16 %v750, %v742
        %v911 = vpack.c.b16 %v751, %v743
        %v912 = vpack.c.b16 %v752, %v744
        %v913 = vpack.c.b16 %v753, %v745
        %v914 = vpack.c.b16 %v762, %v754
        %v915 = vpack.c.b16 %v763, %v755
        %v916 = vpack.c.b16 %v764, %v756
        %v917 = vpack.c.b16 %v765, %v757
        %v918 = vpack.c.b16 %v766, %v758
        %v919 = vpack.c.b16 %v767, %v759
        %v920 = vpack.c.b16 %v768, %v760
        %v921 = vpack.c.b16 %v769, %v761
        %v922 = vpack.c.b16 %v778, %v770
        %v923 = vpack.c.b16 %v779, %v771
        %v924 = vpack.c.b16 %v780, %v772
        %v925 = vpack.c.b16 %v781, %v773
        %v926 = vpack.c.b16 %v782, %v774
        %v927 = vpack.c.b16 %v783, %v775
        %v928 = vpack.c.b16 %v784, %v776
        %v929 = vpack.c.b16 %v785, %v777
        %v930 = vpack.c.b16 %v794, %v786
        %v931 = vpack.c.b16 %v795, %v787
        %v932 = vpack.c.b16 %v796, %v788
        %v933 = vpack.c.b16 %v797, %v789
        %v934 = vpack.c.b16 %v798, %v790
        %v935 = vpack.c.b16 %v799, %v791
        %v936 = vpack.c.b16 %v800, %v792
        %v937 = vpack.c.b16 %v801, %v793
        %v938 = vpack.c.b16 %v810, %v802
        %v939 = vpack.c.b16 %v811, %v803
        %v940 = vpack.c.b16 %v812, %v804
        %v941 = vpack.c.b16 %v813, %v805
        %v942 = vpack.c.b16 %v814, %v806
        %v943 = vpack.c.b16 %v815, %v807
        %v944 = vpack.c.b16 %v816, %v808
        %v945 = vpack.c.b16 %v817, %v809
        %1074 = vmatprep.subr.bf16.mxu0 %v819
        %1075 = vmatpush1.bf16.msra.mxu0 %v818
        %1076 = vmatprep.subr.bf16.mxu0 %v827
        %1077 = vmatpush1.bf16.msra.mxu0 %v826
        %1078 = vmatprep.subr.bf16.mxu0 %v835
        %1079 = vmatpush1.bf16.msra.mxu0 %v834
        %1080 = vmatprep.subr.bf16.mxu0 %v843
        %1081 = vmatpush1.bf16.msra.mxu0 %v842
        %1082 = vmatprep.subr.bf16.mxu0 %v851
        %1083 = vmatpush1.bf16.msra.mxu0 %v850
        %1084 = vmatprep.subr.bf16.mxu0 %v859
        %1085 = vmatpush1.bf16.msra.mxu0 %v858
        %1086 = vmatprep.subr.bf16.mxu0 %v867
        %1087 = vmatpush1.bf16.msra.mxu0 %v866
        %1088 = vmatprep.subr.bf16.mxu0 %v875
        %1089 = vmatpush1.bf16.msra.mxu0 %v874
        %1090 = vmatprep.subr.bf16.mxu0 %v883
        %1091 = vmatpush1.bf16.msra.mxu0 %v882
        %1092 = vmatprep.subr.bf16.mxu0 %v891
        %1093 = vmatpush1.bf16.msra.mxu0 %v890
        %1094 = vmatprep.subr.bf16.mxu0 %v899
        %1095 = vmatpush1.bf16.msra.mxu0 %v898
        %1096 = vmatprep.subr.bf16.mxu0 %v907
        %1097 = vmatpush1.bf16.msra.mxu0 %v906
        %1098 = vmatprep.subr.bf16.mxu0 %v915
        %1099 = vmatpush1.bf16.msra.mxu0 %v914
        %1100 = vmatprep.subr.bf16.mxu0 %v923
        %1101 = vmatpush1.bf16.msra.mxu0 %v922
        %1102 = vmatprep.subr.bf16.mxu0 %v931
        %1103 = vmatpush1.bf16.msra.mxu0 %v930
        %1104 = vmatprep.subr.bf16.mxu0 %v939
        %1105 = vmatpush1.bf16.msra.mxu0 %v938
        %1106 = vmatprep.mubr.bf16.mxu0 %v303
        %1107 = vmatmul.mubr.bf16.gmra.mrb[0].mxu0 %v302
        %v1108 = vpop.f32.mrb[0].mxu0
        %v1109 = vadd.f32 0.0, %v1108
        %v1110 = vpop.f32.mrb[0].mxu0
        %v1111 = vadd.f32 0.0, %v1110
        %v1112 = vpop.f32.mrb[0].mxu0
        %v1113 = vpop.f32.mrb[0].mxu0
        %1114 = vdwg.mxu0
        %1115 = vmatprep.subr.bf16.mxu0 %v821
        %1116 = vmatpush1.bf16.msra.mxu0 %v820
        %1117 = vmatprep.subr.bf16.mxu0 %v829
        %1118 = vmatpush1.bf16.msra.mxu0 %v828
        %1119 = vmatprep.subr.bf16.mxu0 %v837
        %1120 = vmatpush1.bf16.msra.mxu0 %v836
        %1121 = vmatprep.subr.bf16.mxu0 %v845
        %1122 = vmatpush1.bf16.msra.mxu0 %v844
        %1123 = vmatprep.subr.bf16.mxu0 %v853
        %1124 = vmatpush1.bf16.msra.mxu0 %v852
        %1125 = vmatprep.subr.bf16.mxu0 %v861
        %1126 = vmatpush1.bf16.msra.mxu0 %v860
        %1127 = vmatprep.subr.bf16.mxu0 %v869
        %1128 = vmatpush1.bf16.msra.mxu0 %v868
        %1129 = vmatprep.subr.bf16.mxu0 %v877
        %1130 = vmatpush1.bf16.msra.mxu0 %v876
        %1131 = vmatprep.subr.bf16.mxu0 %v885
        %1132 = vmatpush1.bf16.msra.mxu0 %v884
        %1133 = vmatprep.subr.bf16.mxu0 %v893
        %1134 = vmatpush1.bf16.msra.mxu0 %v892
        %1135 = vmatprep.subr.bf16.mxu0 %v901
        %1136 = vmatpush1.bf16.msra.mxu0 %v900
        %1137 = vmatprep.subr.bf16.mxu0 %v909
        %1138 = vmatpush1.bf16.msra.mxu0 %v908
        %1139 = vmatprep.subr.bf16.mxu0 %v917
        %1140 = vmatpush1.bf16.msra.mxu0 %v916
        %1141 = vmatprep.subr.bf16.mxu0 %v925
        %1142 = vmatpush1.bf16.msra.mxu0 %v924
        %1143 = vmatprep.subr.bf16.mxu0 %v933
        %1144 = vmatpush1.bf16.msra.mxu0 %v932
        %1145 = vmatprep.subr.bf16.mxu0 %v941
        %1146 = vmatpush1.bf16.msra.mxu0 %v940
        %1147 = vmatprep.mubr.bf16.mxu0 %v303
        %1148 = vmatmul.mubr.bf16.gmra.mrb[0].mxu0 %v302
        %v1149 = vpop.f32.mrb[0].mxu0
        %v1150 = vadd.f32 0.0, %v1149
        %v1151 = vpop.f32.mrb[0].mxu0
        %v1152 = vadd.f32 0.0, %v1151
        %v1153 = vpop.f32.mrb[0].mxu0
        %v1154 = vpop.f32.mrb[0].mxu0
        %1155 = vdwg.mxu0
        %1156 = vmatprep.subr.bf16.mxu0 %v823
        %1157 = vmatpush1.bf16.msra.mxu0 %v822
        %1158 = vmatprep.subr.bf16.mxu0 %v831
        %1159 = vmatpush1.bf16.msra.mxu0 %v830
        %1160 = vmatprep.subr.bf16.mxu0 %v839
        %1161 = vmatpush1.bf16.msra.mxu0 %v838
        %1162 = vmatprep.subr.bf16.mxu0 %v847
        %1163 = vmatpush1.bf16.msra.mxu0 %v846
        %1164 = vmatprep.subr.bf16.mxu0 %v855
        %1165 = vmatpush1.bf16.msra.mxu0 %v854
        %1166 = vmatprep.subr.bf16.mxu0 %v863
        %1167 = vmatpush1.bf16.msra.mxu0 %v862
        %1168 = vmatprep.subr.bf16.mxu0 %v871
        %1169 = vmatpush1.bf16.msra.mxu0 %v870
        %1170 = vmatprep.subr.bf16.mxu0 %v879
        %1171 = vmatpush1.bf16.msra.mxu0 %v878
        %1172 = vmatprep.subr.bf16.mxu0 %v887
        %1173 = vmatpush1.bf16.msra.mxu0 %v886
        %1174 = vmatprep.subr.bf16.mxu0 %v895
        %1175 = vmatpush1.bf16.msra.mxu0 %v894
        %1176 = vmatprep.subr.bf16.mxu0 %v903
        %1177 = vmatpush1.bf16.msra.mxu0 %v902
        %1178 = vmatprep.subr.bf16.mxu0 %v911
        %1179 = vmatpush1.bf16.msra.mxu0 %v910
        %1180 = vmatprep.subr.bf16.mxu0 %v919
        %1181 = vmatpush1.bf16.msra.mxu0 %v918
        %1182 = vmatprep.subr.bf16.mxu0 %v927
        %1183 = vmatpush1.bf16.msra.mxu0 %v926
        %1184 = vmatprep.subr.bf16.mxu0 %v935
        %1185 = vmatpush1.bf16.msra.mxu0 %v934
        %1186 = vmatprep.subr.bf16.mxu0 %v943
        %1187 = vmatpush1.bf16.msra.mxu0 %v942
        %1188 = vmatprep.mubr.bf16.mxu0 %v303
        %1189 = vmatmul.mubr.bf16.gmra.mrb[0].mxu0 %v302
        %v1190 = vpop.f32.mrb[0].mxu0
        %v1191 = vadd.f32 0.0, %v1190
        %v1192 = vpop.f32.mrb[0].mxu0
        %v1193 = vadd.f32 0.0, %v1192
        %v1194 = vpop.f32.mrb[0].mxu0
        %v1195 = vpop.f32.mrb[0].mxu0
        %1196 = vdwg.mxu0
        %1197 = vmatprep.subr.bf16.mxu0 %v825
        %1198 = vmatpush1.bf16.msra.mxu0 %v824
        %1199 = vmatprep.subr.bf16.mxu0 %v833
        %1200 = vmatpush1.bf16.msra.mxu0 %v832
        %1201 = vmatprep.subr.bf16.mxu0 %v841
        %1202 = vmatpush1.bf16.msra.mxu0 %v840
        %1203 = vmatprep.subr.bf16.mxu0 %v849
        %1204 = vmatpush1.bf16.msra.mxu0 %v848
        %1205 = vmatprep.subr.bf16.mxu0 %v857
        %1206 = vmatpush1.bf16.msra.mxu0 %v856
        %1207 = vmatprep.subr.bf16.mxu0 %v865
        %1208 = vmatpush1.bf16.msra.mxu0 %v864
        %1209 = vmatprep.subr.bf16.mxu0 %v873
        %1210 = vmatpush1.bf16.msra.mxu0 %v872
        %1211 = vmatprep.subr.bf16.mxu0 %v881
        %1212 = vmatpush1.bf16.msra.mxu0 %v880
        %1213 = vmatprep.subr.bf16.mxu0 %v889
        %1214 = vmatpush1.bf16.msra.mxu0 %v888
        %1215 = vmatprep.subr.bf16.mxu0 %v897
        %1216 = vmatpush1.bf16.msra.mxu0 %v896
        %1217 = vmatprep.subr.bf16.mxu0 %v905
        %1218 = vmatpush1.bf16.msra.mxu0 %v904
        %1219 = vmatprep.subr.bf16.mxu0 %v913
        %1220 = vmatpush1.bf16.msra.mxu0 %v912
        %1221 = vmatprep.subr.bf16.mxu0 %v921
        %1222 = vmatpush1.bf16.msra.mxu0 %v920
        %1223 = vmatprep.subr.bf16.mxu0 %v929
        %1224 = vmatpush1.bf16.msra.mxu0 %v928
        %1225 = vmatprep.subr.bf16.mxu0 %v937
        %1226 = vmatpush1.bf16.msra.mxu0 %v936
        %1227 = vmatprep.subr.bf16.mxu0 %v945
        %1228 = vmatpush1.bf16.msra.mxu0 %v944
        %1229 = vmatprep.mubr.bf16.mxu0 %v303
        %1230 = vmatmul.mubr.bf16.gmra.mrb[0].mxu0 %v302
        %v1231 = vpop.f32.mrb[0].mxu0
        %v1232 = vadd.f32 0.0, %v1231
        %v1233 = vpop.f32.mrb[0].mxu0
        %v1234 = vadd.f32 0.0, %v1233
        %v1235 = vpop.f32.mrb[0].mxu0
        %v1236 = vpop.f32.mrb[0].mxu0
        %1237 = vdwg.mxu0
        %s1238 = sld [smem:[#allocation9]]
        %v1239 = vstv %s1238
        %v1240 = vmul.f32 %v305, %v1239
        %v1241 = vmul.f32 %v1109, %v1240
        %v1242 = vmul.f32 %v1111, %v1240
        %v1243 = vmul.f32 %v1150, %v1240
        %v1244 = vmul.f32 %v1152, %v1240
        %s1245 = sld [smem:[#allocation9 + $0x1]]
        %v1246 = vstv %s1245
        %v1247 = vmul.f32 %v305, %v1246
        %v1248 = vmul.f32 %v1191, %v1247
        %v1249 = vmul.f32 %v1193, %v1247
        %v1250 = vmul.f32 %v1232, %v1247
        %v1251 = vmul.f32 %v1234, %v1247
        %v1252 = vmax.f32 %v1241, 0.0
        %v1253 = vmax.f32 %v1242, 0.0
        %v1254 = vmax.f32 %v1243, 0.0
        %v1255 = vmax.f32 %v1244, 0.0
        %v1256 = vmul.f32 %v1252, %v1252
        %v1257 = vmul.f32 %v1253, %v1253
        %v1258 = vmul.f32 %v1254, %v1254
        %v1259 = vmul.f32 %v1255, %v1255
        %v1260 = vmul.f32 %v1256, %v1248
        %v1261 = vmul.f32 %v1257, %v1249
        %v1262 = vmul.f32 %v1258, %v1250
        %v1263 = vmul.f32 %v1259, %v1251
        %v1264 = vmul.f32 %v1260, %v1260
        %v1265 = vmul.f32 %v1261, %v1261
        %v1266 = vmul.f32 %v1262, %v1262
        %v1267 = vmul.f32 %v1263, %v1263
        %v1268 = vadd.f32 %v1264, %v1265
        %v1269 = vadd.f32 %v1268, %v1266
        %v1270 = vadd.f32 %v1269, %v1267
        %1271 = vadd.xlane.f32.xlu0 %v1270
        %v1272 = vpop.xlane.xlu0 %1271
        %v1273 = vrcp.pop 512.0
        %v1274 = vmul.f32 %v1272, %v1273
        %v1275 = vadd.f32 %v1274, 1e-06
        %v1276 = vrsqrt.pop %v1275
        %v1277 = vmul.f32 %v1260, %v1276
        %v1278 = vmul.f32 %v1261, %v1276
        %v1279 = vmul.f32 %v1262, %v1276
        %v1280 = vmul.f32 %v1263, %v1276
        %v1281 = vld [vmem:[%s3] sm:$0xf]
        %v1283 = vlaneseq
        %v1284 = vshrl.u32 %v1283, 7
        %v1285 = vsub.s32 0, %v1284
        %v1286 = vrot.slane %v1281, %v1285
        %v1287 = vlaneseq
        %v1288 = vshrl.u32 %v1287, 7
        %v1289 = vsub.s32 1, %v1288
        %v1290 = vrot.slane %v1281, %v1289
        %v1291 = vlaneseq
        %v1292 = vshrl.u32 %v1291, 7
        %v1293 = vsub.s32 2, %v1292
        %v1294 = vrot.slane %v1281, %v1293
        %v1295 = vlaneseq
        %v1296 = vshrl.u32 %v1295, 7
        %v1297 = vsub.s32 3, %v1296
        %v1298 = vrot.slane %v1281, %v1297
        %v1303 = vmul.f32 %v1286, %v1277
        %v1304 = vmul.f32 %v1290, %v1278
        %v1305 = vmul.f32 %v1294, %v1279
        %v1306 = vmul.f32 %v1298, %v1280
        %v1307 = vand.u32 2147483647, %v1303
        %v1308 = vand.u32 2147483647, %v1304
        %v1309 = vand.u32 2147483647, %v1305
        %v1310 = vand.u32 2147483647, %v1306
        %v1311 = vmax.f32 %v1307, %v1308
        %v1312 = vmax.f32 %v1309, %v1310
        %v1313 = vmax.f32 %v1311, %v1312
        %1314 = vmax.xlane.f32.xlu0 %v1313
        %v1315 = vpop.xlane.xlu0 %1314
        %v1316 = vmax.f32 %v1315, 1e-05
        %v1317 = vrcp.pop %v1316
        %v1318 = vmul.f32 127.0, %v1317
        %v1319 = vmul.f32 %v1303, %v1318
        %v1320 = vmul.f32 %v1304, %v1318
        %v1321 = vmul.f32 %v1305, %v1318
        %v1322 = vmul.f32 %v1306, %v1318
        %v1323 = vround.ne.pseudo %v1319
        %v1324 = vround.ne.pseudo %v1320
        %v1325 = vround.ne.pseudo %v1321
        %v1326 = vround.ne.pseudo %v1322
        %v1327 = vmax.f32 %v1323, -128.0
        %v1328 = vmax.f32 %v1324, -128.0
        %v1329 = vmax.f32 %v1325, -128.0
        %v1330 = vmax.f32 %v1326, -128.0
        %v1331 = vmin.f32 %v1327, 127.0
        %v1332 = vmin.f32 %v1328, 127.0
        %v1333 = vmin.f32 %v1329, 127.0
        %v1334 = vmin.f32 %v1330, 127.0
        %v1335 = vpack.c.bf16 %v1331, %v1331
        %v1336 = vpack.c.bf16 %v1332, %v1332
        %v1337 = vpack.c.bf16 %v1333, %v1333
        %v1338 = vpack.c.bf16 %v1334, %v1334
        %v1339 = vrcp.pop %v1318
        %v1340 = vmul.f32 1.0, %v1339
        %v1341 = vld [vmem:[#allocation8] sm:$0xff]
        %v1342 = vld [vmem:[#allocation8 + $0x8] sm:$0xff]
        %v1343 = vld [vmem:[#allocation8 + $0x10] sm:$0xff]
        %v1344 = vld [vmem:[#allocation8 + $0x18] sm:$0xff]
        %v1345 = vld [vmem:[#allocation8 + $0x20] sm:$0xff]
        %v1346 = vld [vmem:[#allocation8 + $0x28] sm:$0xff]
        %v1347 = vld [vmem:[#allocation8 + $0x30] sm:$0xff]
        %v1348 = vld [vmem:[#allocation8 + $0x38] sm:$0xff]
        %v1349 = vld [vmem:[#allocation8 + $0x40] sm:$0xff]
        %v1350 = vld [vmem:[#allocation8 + $0x48] sm:$0xff]
        %v1351 = vld [vmem:[#allocation8 + $0x50] sm:$0xff]
        %v1352 = vld [vmem:[#allocation8 + $0x58] sm:$0xff]
        %v1353 = vld [vmem:[#allocation8 + $0x60] sm:$0xff]
        %v1354 = vld [vmem:[#allocation8 + $0x68] sm:$0xff]
        %v1355 = vld [vmem:[#allocation8 + $0x70] sm:$0xff]
        %v1356 = vld [vmem:[#allocation8 + $0x78] sm:$0xff]
        %v1357 = vld [vmem:[#allocation8 + $0x80] sm:$0xff]
        %v1358 = vld [vmem:[#allocation8 + $0x88] sm:$0xff]
        %v1359 = vld [vmem:[#allocation8 + $0x90] sm:$0xff]
        %v1360 = vld [vmem:[#allocation8 + $0x98] sm:$0xff]
        %v1361 = vld [vmem:[#allocation8 + $0xa0] sm:$0xff]
        %v1362 = vld [vmem:[#allocation8 + $0xa8] sm:$0xff]
        %v1363 = vld [vmem:[#allocation8 + $0xb0] sm:$0xff]
        %v1364 = vld [vmem:[#allocation8 + $0xb8] sm:$0xff]
        %v1365 = vld [vmem:[#allocation8 + $0xc0] sm:$0xff]
        %v1366 = vld [vmem:[#allocation8 + $0xc8] sm:$0xff]
        %v1367 = vld [vmem:[#allocation8 + $0xd0] sm:$0xff]
        %v1368 = vld [vmem:[#allocation8 + $0xd8] sm:$0xff]
        %v1369 = vld [vmem:[#allocation8 + $0xe0] sm:$0xff]
        %v1370 = vld [vmem:[#allocation8 + $0xe8] sm:$0xff]
        %v1371 = vld [vmem:[#allocation8 + $0xf0] sm:$0xff]
        %v1372 = vld [vmem:[#allocation8 + $0xf8] sm:$0xff]
        %v1373 = vld [vmem:[#allocation8 + $0x100] sm:$0xff]
        %v1374 = vld [vmem:[#allocation8 + $0x108] sm:$0xff]
        %v1375 = vld [vmem:[#allocation8 + $0x110] sm:$0xff]
        %v1376 = vld [vmem:[#allocation8 + $0x118] sm:$0xff]
        %v1377 = vld [vmem:[#allocation8 + $0x120] sm:$0xff]
        %v1378 = vld [vmem:[#allocation8 + $0x128] sm:$0xff]
        %v1379 = vld [vmem:[#allocation8 + $0x130] sm:$0xff]
        %v1380 = vld [vmem:[#allocation8 + $0x138] sm:$0xff]
        %v1381 = vld [vmem:[#allocation8 + $0x140] sm:$0xff]
        %v1382 = vld [vmem:[#allocation8 + $0x148] sm:$0xff]
        %v1383 = vld [vmem:[#allocation8 + $0x150] sm:$0xff]
        %v1384 = vld [vmem:[#allocation8 + $0x158] sm:$0xff]
        %v1385 = vld [vmem:[#allocation8 + $0x160] sm:$0xff]
        %v1386 = vld [vmem:[#allocation8 + $0x168] sm:$0xff]
        %v1387 = vld [vmem:[#allocation8 + $0x170] sm:$0xff]
        %v1388 = vld [vmem:[#allocation8 + $0x178] sm:$0xff]
        %v1389 = vld [vmem:[#allocation8 + $0x180] sm:$0xff]
        %v1390 = vld [vmem:[#allocation8 + $0x188] sm:$0xff]
        %v1391 = vld [vmem:[#allocation8 + $0x190] sm:$0xff]
        %v1392 = vld [vmem:[#allocation8 + $0x198] sm:$0xff]
        %v1393 = vld [vmem:[#allocation8 + $0x1a0] sm:$0xff]
        %v1394 = vld [vmem:[#allocation8 + $0x1a8] sm:$0xff]
        %v1395 = vld [vmem:[#allocation8 + $0x1b0] sm:$0xff]
        %v1396 = vld [vmem:[#allocation8 + $0x1b8] sm:$0xff]
        %v1397 = vld [vmem:[#allocation8 + $0x1c0] sm:$0xff]
        %v1398 = vld [vmem:[#allocation8 + $0x1c8] sm:$0xff]
        %v1399 = vld [vmem:[#allocation8 + $0x1d0] sm:$0xff]
        %v1400 = vld [vmem:[#allocation8 + $0x1d8] sm:$0xff]
        %v1401 = vld [vmem:[#allocation8 + $0x1e0] sm:$0xff]
        %v1402 = vld [vmem:[#allocation8 + $0x1e8] sm:$0xff]
        %v1403 = vld [vmem:[#allocation8 + $0x1f0] sm:$0xff]
        %v1404 = vld [vmem:[#allocation8 + $0x1f8] sm:$0xff]
        %v1469 = vunpack.c.l.b16 %v1341
        %v1470 = vunpack.c.h.b16 %v1341
        %v1471 = vunpack.c.l.b16 %v1342
        %v1472 = vunpack.c.h.b16 %v1342
        %v1473 = vunpack.c.l.b16 %v1343
        %v1474 = vunpack.c.h.b16 %v1343
        %v1475 = vunpack.c.l.b16 %v1344
        %v1476 = vunpack.c.h.b16 %v1344
        %v1477 = vunpack.c.l.b16 %v1345
        %v1478 = vunpack.c.h.b16 %v1345
        %v1479 = vunpack.c.l.b16 %v1346
        %v1480 = vunpack.c.h.b16 %v1346
        %v1481 = vunpack.c.l.b16 %v1347
        %v1482 = vunpack.c.h.b16 %v1347
        %v1483 = vunpack.c.l.b16 %v1348
        %v1484 = vunpack.c.h.b16 %v1348
        %v1485 = vunpack.c.l.b16 %v1349
        %v1486 = vunpack.c.h.b16 %v1349
        %v1487 = vunpack.c.l.b16 %v1350
        %v1488 = vunpack.c.h.b16 %v1350
        %v1489 = vunpack.c.l.b16 %v1351
        %v1490 = vunpack.c.h.b16 %v1351
        %v1491 = vunpack.c.l.b16 %v1352
        %v1492 = vunpack.c.h.b16 %v1352
        %v1493 = vunpack.c.l.b16 %v1353
        %v1494 = vunpack.c.h.b16 %v1353
        %v1495 = vunpack.c.l.b16 %v1354
        %v1496 = vunpack.c.h.b16 %v1354
        %v1497 = vunpack.c.l.b16 %v1355
        %v1498 = vunpack.c.h.b16 %v1355
        %v1499 = vunpack.c.l.b16 %v1356
        %v1500 = vunpack.c.h.b16 %v1356
        %v1501 = vunpack.c.l.b16 %v1357
        %v1502 = vunpack.c.h.b16 %v1357
        %v1503 = vunpack.c.l.b16 %v1358
        %v1504 = vunpack.c.h.b16 %v1358
        %v1505 = vunpack.c.l.b16 %v1359
        %v1506 = vunpack.c.h.b16 %v1359
        %v1507 = vunpack.c.l.b16 %v1360
        %v1508 = vunpack.c.h.b16 %v1360
        %v1509 = vunpack.c.l.b16 %v1361
        %v1510 = vunpack.c.h.b16 %v1361
        %v1511 = vunpack.c.l.b16 %v1362
        %v1512 = vunpack.c.h.b16 %v1362
        %v1513 = vunpack.c.l.b16 %v1363
        %v1514 = vunpack.c.h.b16 %v1363
        %v1515 = vunpack.c.l.b16 %v1364
        %v1516 = vunpack.c.h.b16 %v1364
        %v1517 = vunpack.c.l.b16 %v1365
        %v1518 = vunpack.c.h.b16 %v1365
        %v1519 = vunpack.c.l.b16 %v1366
        %v1520 = vunpack.c.h.b16 %v1366
        %v1521 = vunpack.c.l.b16 %v1367
        %v1522 = vunpack.c.h.b16 %v1367
        %v1523 = vunpack.c.l.b16 %v1368
        %v1524 = vunpack.c.h.b16 %v1368
        %v1525 = vunpack.c.l.b16 %v1369
        %v1526 = vunpack.c.h.b16 %v1369
        %v1527 = vunpack.c.l.b16 %v1370
        %v1528 = vunpack.c.h.b16 %v1370
        %v1529 = vunpack.c.l.b16 %v1371
        %v1530 = vunpack.c.h.b16 %v1371
        %v1531 = vunpack.c.l.b16 %v1372
        %v1532 = vunpack.c.h.b16 %v1372
        %v1533 = vunpack.c.l.b16 %v1373
        %v1534 = vunpack.c.h.b16 %v1373
        %v1535 = vunpack.c.l.b16 %v1374
        %v1536 = vunpack.c.h.b16 %v1374
        %v1537 = vunpack.c.l.b16 %v1375
        %v1538 = vunpack.c.h.b16 %v1375
        %v1539 = vunpack.c.l.b16 %v1376
        %v1540 = vunpack.c.h.b16 %v1376
        %v1541 = vunpack.c.l.b16 %v1377
        %v1542 = vunpack.c.h.b16 %v1377
        %v1543 = vunpack.c.l.b16 %v1378
        %v1544 = vunpack.c.h.b16 %v1378
        %v1545 = vunpack.c.l.b16 %v1379
        %v1546 = vunpack.c.h.b16 %v1379
        %v1547 = vunpack.c.l.b16 %v1380
        %v1548 = vunpack.c.h.b16 %v1380
        %v1549 = vunpack.c.l.b16 %v1381
        %v1550 = vunpack.c.h.b16 %v1381
        %v1551 = vunpack.c.l.b16 %v1382
        %v1552 = vunpack.c.h.b16 %v1382
        %v1553 = vunpack.c.l.b16 %v1383
        %v1554 = vunpack.c.h.b16 %v1383
        %v1555 = vunpack.c.l.b16 %v1384
        %v1556 = vunpack.c.h.b16 %v1384
        %v1557 = vunpack.c.l.b16 %v1385
        %v1558 = vunpack.c.h.b16 %v1385
        %v1559 = vunpack.c.l.b16 %v1386
        %v1560 = vunpack.c.h.b16 %v1386
        %v1561 = vunpack.c.l.b16 %v1387
        %v1562 = vunpack.c.h.b16 %v1387
        %v1563 = vunpack.c.l.b16 %v1388
        %v1564 = vunpack.c.h.b16 %v1388
        %v1565 = vunpack.c.l.b16 %v1389
        %v1566 = vunpack.c.h.b16 %v1389
        %v1567 = vunpack.c.l.b16 %v1390
        %v1568 = vunpack.c.h.b16 %v1390
        %v1569 = vunpack.c.l.b16 %v1391
        %v1570 = vunpack.c.h.b16 %v1391
        %v1571 = vunpack.c.l.b16 %v1392
        %v1572 = vunpack.c.h.b16 %v1392
        %v1573 = vunpack.c.l.b16 %v1393
        %v1574 = vunpack.c.h.b16 %v1393
        %v1575 = vunpack.c.l.b16 %v1394
        %v1576 = vunpack.c.h.b16 %v1394
        %v1577 = vunpack.c.l.b16 %v1395
        %v1578 = vunpack.c.h.b16 %v1395
        %v1579 = vunpack.c.l.b16 %v1396
        %v1580 = vunpack.c.h.b16 %v1396
        %v1581 = vunpack.c.l.b16 %v1397
        %v1582 = vunpack.c.h.b16 %v1397
        %v1583 = vunpack.c.l.b16 %v1398
        %v1584 = vunpack.c.h.b16 %v1398
        %v1585 = vunpack.c.l.b16 %v1399
        %v1586 = vunpack.c.h.b16 %v1399
        %v1587 = vunpack.c.l.b16 %v1400
        %v1588 = vunpack.c.h.b16 %v1400
        %v1589 = vunpack.c.l.b16 %v1401
        %v1590 = vunpack.c.h.b16 %v1401
        %v1591 = vunpack.c.l.b16 %v1402
        %v1592 = vunpack.c.h.b16 %v1402
        %v1593 = vunpack.c.l.b16 %v1403
        %v1594 = vunpack.c.h.b16 %v1403
        %v1595 = vunpack.c.l.b16 %v1404
        %v1596 = vunpack.c.h.b16 %v1404
        %v1597 = vpack.c.b16 %v1471, %v1469
        %v1598 = vpack.c.b16 %v1472, %v1470
        %v1599 = vpack.c.b16 %v1475, %v1473
        %v1600 = vpack.c.b16 %v1476, %v1474
        %v1601 = vpack.c.b16 %v1479, %v1477
        %v1602 = vpack.c.b16 %v1480, %v1478
        %v1603 = vpack.c.b16 %v1483, %v1481
        %v1604 = vpack.c.b16 %v1484, %v1482
        %v1605 = vpack.c.b16 %v1487, %v1485
        %v1606 = vpack.c.b16 %v1488, %v1486
        %v1607 = vpack.c.b16 %v1491, %v1489
        %v1608 = vpack.c.b16 %v1492, %v1490
        %v1609 = vpack.c.b16 %v1495, %v1493
        %v1610 = vpack.c.b16 %v1496, %v1494
        %v1611 = vpack.c.b16 %v1499, %v1497
        %v1612 = vpack.c.b16 %v1500, %v1498
        %v1613 = vpack.c.b16 %v1503, %v1501
        %v1614 = vpack.c.b16 %v1504, %v1502
        %v1615 = vpack.c.b16 %v1507, %v1505
        %v1616 = vpack.c.b16 %v1508, %v1506
        %v1617 = vpack.c.b16 %v1511, %v1509
        %v1618 = vpack.c.b16 %v1512, %v1510
        %v1619 = vpack.c.b16 %v1515, %v1513
        %v1620 = vpack.c.b16 %v1516, %v1514
        %v1621 = vpack.c.b16 %v1519, %v1517
        %v1622 = vpack.c.b16 %v1520, %v1518
        %v1623 = vpack.c.b16 %v1523, %v1521
        %v1624 = vpack.c.b16 %v1524, %v1522
        %v1625 = vpack.c.b16 %v1527, %v1525
        %v1626 = vpack.c.b16 %v1528, %v1526
        %v1627 = vpack.c.b16 %v1531, %v1529
        %v1628 = vpack.c.b16 %v1532, %v1530
        %v1629 = vpack.c.b16 %v1535, %v1533
        %v1630 = vpack.c.b16 %v1536, %v1534
        %v1631 = vpack.c.b16 %v1539, %v1537
        %v1632 = vpack.c.b16 %v1540, %v1538
        %v1633 = vpack.c.b16 %v1543, %v1541
        %v1634 = vpack.c.b16 %v1544, %v1542
        %v1635 = vpack.c.b16 %v1547, %v1545
        %v1636 = vpack.c.b16 %v1548, %v1546
        %v1637 = vpack.c.b16 %v1551, %v1549
        %v1638 = vpack.c.b16 %v1552, %v1550
        %v1639 = vpack.c.b16 %v1555, %v1553
        %v1640 = vpack.c.b16 %v1556, %v1554
        %v1641 = vpack.c.b16 %v1559, %v1557
        %v1642 = vpack.c.b16 %v1560, %v1558
        %v1643 = vpack.c.b16 %v1563, %v1561
        %v1644 = vpack.c.b16 %v1564, %v1562
        %v1645 = vpack.c.b16 %v1567, %v1565
        %v1646 = vpack.c.b16 %v1568, %v1566
        %v1647 = vpack.c.b16 %v1571, %v1569
        %v1648 = vpack.c.b16 %v1572, %v1570
        %v1649 = vpack.c.b16 %v1575, %v1573
        %v1650 = vpack.c.b16 %v1576, %v1574
        %v1651 = vpack.c.b16 %v1579, %v1577
        %v1652 = vpack.c.b16 %v1580, %v1578
        %v1653 = vpack.c.b16 %v1583, %v1581
        %v1654 = vpack.c.b16 %v1584, %v1582
        %v1655 = vpack.c.b16 %v1587, %v1585
        %v1656 = vpack.c.b16 %v1588, %v1586
        %v1657 = vpack.c.b16 %v1591, %v1589
        %v1658 = vpack.c.b16 %v1592, %v1590
        %v1659 = vpack.c.b16 %v1595, %v1593
        %v1660 = vpack.c.b16 %v1596, %v1594
        %1725 = vmatprep.subr.bf16.mxu0 %v1598
        %1726 = vmatpush1.bf16.msra.mxu0 %v1597
        %1727 = vmatprep.subr.bf16.mxu0 %v1600
        %1728 = vmatpush1.bf16.msra.mxu0 %v1599
        %1729 = vmatprep.subr.bf16.mxu0 %v1602
        %1730 = vmatpush1.bf16.msra.mxu0 %v1601
        %1731 = vmatprep.subr.bf16.mxu0 %v1604
        %1732 = vmatpush1.bf16.msra.mxu0 %v1603
        %1733 = vmatprep.subr.bf16.mxu0 %v1606
        %1734 = vmatpush1.bf16.msra.mxu0 %v1605
        %1735 = vmatprep.subr.bf16.mxu0 %v1608
        %1736 = vmatpush1.bf16.msra.mxu0 %v1607
        %1737 = vmatprep.subr.bf16.mxu0 %v1610
        %1738 = vmatpush1.bf16.msra.mxu0 %v1609
        %1739 = vmatprep.subr.bf16.mxu0 %v1612
        %1740 = vmatpush1.bf16.msra.mxu0 %v1611
        %1741 = vmatprep.subr.bf16.mxu0 %v1614
        %1742 = vmatpush1.bf16.msra.mxu0 %v1613
        %1743 = vmatprep.subr.bf16.mxu0 %v1616
        %1744 = vmatpush1.bf16.msra.mxu0 %v1615
        %1745 = vmatprep.subr.bf16.mxu0 %v1618
        %1746 = vmatpush1.bf16.msra.mxu0 %v1617
        %1747 = vmatprep.subr.bf16.mxu0 %v1620
        %1748 = vmatpush1.bf16.msra.mxu0 %v1619
        %1749 = vmatprep.subr.bf16.mxu0 %v1622
        %1750 = vmatpush1.bf16.msra.mxu0 %v1621
        %1751 = vmatprep.subr.bf16.mxu0 %v1624
        %1752 = vmatpush1.bf16.msra.mxu0 %v1623
        %1753 = vmatprep.subr.bf16.mxu0 %v1626
        %1754 = vmatpush1.bf16.msra.mxu0 %v1625
        %1755 = vmatprep.subr.bf16.mxu0 %v1628
        %1756 = vmatpush1.bf16.msra.mxu0 %v1627
        %1757 = vmatprep.mubr.bf16.mxu0 %v1336
        %1758 = vmatmul.mubr.bf16.gmra.mrb[0].mxu0 %v1335
        %v1759 = vpop.f32.mrb[0].mxu0
        %v1760 = vadd.f32 0.0, %v1759
        %v1761 = vpop.f32.mrb[0].mxu0
        %v1762 = vadd.f32 0.0, %v1761
        %v1763 = vpop.f32.mrb[0].mxu0
        %v1764 = vpop.f32.mrb[0].mxu0
        %1765 = vdwg.mxu0
        %1766 = vmatprep.subr.bf16.mxu0 %v1630
        %1767 = vmatpush1.bf16.msra.mxu0 %v1629
        %1768 = vmatprep.subr.bf16.mxu0 %v1632
        %1769 = vmatpush1.bf16.msra.mxu0 %v1631
        %1770 = vmatprep.subr.bf16.mxu0 %v1634
        %1771 = vmatpush1.bf16.msra.mxu0 %v1633
        %1772 = vmatprep.subr.bf16.mxu0 %v1636
        %1773 = vmatpush1.bf16.msra.mxu0 %v1635
        %1774 = vmatprep.subr.bf16.mxu0 %v1638
        %1775 = vmatpush1.bf16.msra.mxu0 %v1637
        %1776 = vmatprep.subr.bf16.mxu0 %v1640
        %1777 = vmatpush1.bf16.msra.mxu0 %v1639
        %1778 = vmatprep.subr.bf16.mxu0 %v1642
        %1779 = vmatpush1.bf16.msra.mxu0 %v1641
        %1780 = vmatprep.subr.bf16.mxu0 %v1644
        %1781 = vmatpush1.bf16.msra.mxu0 %v1643
        %1782 = vmatprep.subr.bf16.mxu0 %v1646
        %1783 = vmatpush1.bf16.msra.mxu0 %v1645
        %1784 = vmatprep.subr.bf16.mxu0 %v1648
        %1785 = vmatpush1.bf16.msra.mxu0 %v1647
        %1786 = vmatprep.subr.bf16.mxu0 %v1650
        %1787 = vmatpush1.bf16.msra.mxu0 %v1649
        %1788 = vmatprep.subr.bf16.mxu0 %v1652
        %1789 = vmatpush1.bf16.msra.mxu0 %v1651
        %1790 = vmatprep.subr.bf16.mxu0 %v1654
        %1791 = vmatpush1.bf16.msra.mxu0 %v1653
        %1792 = vmatprep.subr.bf16.mxu0 %v1656
        %1793 = vmatpush1.bf16.msra.mxu0 %v1655
        %1794 = vmatprep.subr.bf16.mxu0 %v1658
        %1795 = vmatpush1.bf16.msra.mxu0 %v1657
        %1796 = vmatprep.subr.bf16.mxu0 %v1660
        %1797 = vmatpush1.bf16.msra.mxu0 %v1659
        %1798 = vmatprep.mubr.bf16.mxu0 %v1338
        %1799 = vmatmul.mubr.bf16.gmra.mrb[0].mxu0 %v1337
        %v1800 = vpop.f32.mrb[0].mxu0
        %v1801 = vadd.f32 %v1760, %v1800
        %v1802 = vpop.f32.mrb[0].mxu0
        %v1803 = vadd.f32 %v1762, %v1802
        %v1804 = vpop.f32.mrb[0].mxu0
        %v1805 = vpop.f32.mrb[0].mxu0
        %1806 = vdwg.mxu0
        %s1807 = sld [smem:[#allocation9 + $0x2]]
        %v1808 = vstv %s1807
        %v1809 = vmul.f32 %v1340, %v1808
        %v1810 = vmul.f32 %v1801, %v1809
        %v1811 = vmul.f32 %v1803, %v1809
        %1812 = vst [vmem:[%s283] sm:$0xff] %v1810
        %1813 = vst [vmem:[%s283 + $0x8] sm:$0xff] %v1811
        %s1814 = sand.u32 %s142, 1
        %s1815 = scalar_lea.sflag [#allocation4], %s1814
        %s1816 = sand.u32 %s142, 1
        %s1817 = smul.addr %s1816, 16
        %s1818 = scalar_lea.vmem [#allocation10], %s1817
        // Predicated region
        $region57: #{tpu_custom_call.1} parent=39 // pred_check
          %p1819 = pneg %p152
        $region58: #{tpu_custom_call.1} parent=39 // pred_check_branch
          %1821 = sbr.rel (%p1819) target = $region60
        $region59: #{tpu_custom_call.1} parent=39 // pred_region
          %s1823 = ssub.s32 256, 256
          %1824 = vsyncadd %s1815, %s1823
          %s1825 = smul.addr %s24, 2
          %s1826 = smul.addr %s1825, 128
          %s1827 = scalar_lea.hbm %s5, %s1826
          %s1829 = sshll.u32 %s1818, 4
          %s1830 = int_to_ptr.vmem [resolvable:$true] %s1829
          %1832 = dma.vmem_to_hbm [thread:$0]  %s1830, 256, %s1827, %s1815
        $region60: #{tpu_custom_call.1} parent=39 // pred_fallthru
          _
      $region40: #{tpu_custom_call.1} parent=5 // pred_fallthru
        _
      %p1833 = scmp.le.s32.totalorder 2, %s19
      // Predicated region
      $region61: #{tpu_custom_call.1} parent=5 // pred_check
        %p1834 = pneg %p1833
      $region62: #{tpu_custom_call.1} parent=5 // pred_check_branch
        %1836 = sbr.rel (%p1834) target = $region64
      $region63: #{tpu_custom_call.1} parent=5 // pred_region
        %s1837 = ssub.s32 %s19, 2
        // Predicated region
        $region65: #{tpu_custom_call.1} parent=63 // pred_check
          %p1838 = pneg %p158
        $region66: #{tpu_custom_call.1} parent=63 // pred_check_branch
          %1840 = sbr.rel (%p1838) target = $region68
        $region67: #{tpu_custom_call.1} parent=63 // pred_region
          %s1841 = sand.u32 %s143, 1
          %s1842 = scalar_lea.sflag [#allocation4], %s1841
          %s1843 = sand.u32 %s143, 1
          %s1844 = smul.addr %s1843, 16
          %s1845 = scalar_lea.vmem [#allocation10], %s1844
          %1846 = dma.done %s1842, 256
        $region68: #{tpu_custom_call.1} parent=63 // pred_fallthru
          _
      $region64: #{tpu_custom_call.1} parent=5 // pred_fallthru
        _
    $region6: #{tpu_custom_call.1} parent=1 // loop_footer
      %s23 = sadd.s32 1, %s19
    $region7: #{tpu_custom_call.1} parent=1 // loop_footer_branch
      %18 = sbr.rel target = $region3
    $region8: #{tpu_custom_call.1} parent=1 // loop_exit
      _
    %1847 = vsyncpa [#allocation3], 1
    %s1848 = scalar_lea.sflag [#allocation3], 1
    %1849 = vsyncpa %s1848, 1
    %1850 = vsyncpa [#allocation7], 1
    %1851 = vsyncpa [#allocation4], 1
    %s1852 = scalar_lea.sflag [#allocation4], 1
    %1853 = vsyncpa %s1852, 1
    %1854 = vsyncpa [#allocation5], 1
    %s1855 = scalar_lea.sflag [#allocation5], 1
    %1856 = vsyncpa %s1855, 1

</llo_original>
